<compile_context>
chip_gen: v7x
topology: tpu7x:2x2x1
jax: 0.10.0
libtpu: 0.0.40
codegen_flags: <defaults>
</compile_context>

<pallas_src>
import math

import jax
import jax.numpy as jnp
from jax.experimental import pallas as pl
from jax.experimental.pallas import tpu as pltpu


_STRIDES = (1, 2, 2, 2, 2, 2)          # encoder conv strides (kernel=3, pad=1)


def _conv_out_len(l_in, stride):
    return (l_in + 2 - 3) // stride + 1


def _round_up(x, m):
    return ((x + m - 1) // m) * m


# ---------------------------------------------------------------------------
# Pallas kernel (one grid step = TB batch samples; batch folded into matmul M)
# ---------------------------------------------------------------------------
def make_cnn_rul_kernel(*, tb, l0, c_pad, d):
    f32 = jnp.float32
    bf16 = jnp.bfloat16

    def kernel(x_ref, cw_ref, cb_ref, dw_ref, db_ref, out_ref):
        # ---------------- encoder: 6 x Conv1d(k=3, pad=1) ----------------
        h = x_ref[...]                               # (l0, tb, c_pad) bf16
        l_in, cin = l0, c_pad
        for i, s in enumerate(_STRIDES):
            l_out = _conv_out_len(l_in, s)
            # Zero-pad along L (1 leading + 2 trailing rows == conv padding=1,
            # trailing extra row only ever read past the valid range).
            zlead = jnp.zeros((1, tb, cin), bf16)
            ztail = jnp.zeros((2, tb, cin), bf16)
            hp = jnp.concatenate([zlead, h, ztail], axis=0)  # (l_in+3, tb, cin)

            acc = jnp.zeros((l_out * tb, 8), f32)
            for k in range(3):                       # select-then-mix per tap
                if s == 1:
                    g = hp[k:k + l_out]                          # (l_out, tb, cin)
                else:
                    # stride-2 decimation via free leading-dim slice + reshape
                    g = hp[k:k + 2 * l_out]                      # (2*l_out, tb, cin)
                    g = g.reshape(l_out, 2 * tb, cin)[:, 0:tb, :]
                g2 = g.reshape(l_out * tb, cin)                  # batch folded into M
                wk = cw_ref[i, k, 0:cin, :]                      # (cin, 8) bf16
                acc = acc + jnp.dot(g2, wk, preferred_element_type=f32)
            acc = acc + cb_ref[i]                                # bias (1, 8)
            if i < len(_STRIDES) - 1:                            # last conv: no ReLU
                acc = jnp.maximum(acc, 0.0)
            h = acc.astype(bf16).reshape(l_out, tb, 8)
            l_in, cin = l_out, 8

        # Flatten: final conv length is 1 -> (tb, 8)
        v = h.reshape(tb, 8)

        # ---------------- dense head (weights padded to (D, D)) -----------
        def dense(act_bf16, idx, k_rows):
            w = dw_ref[idx, 0:k_rows, :]                         # (k_rows, D) bf16
            return jnp.dot(act_bf16, w, preferred_element_type=f32) + db_ref[idx]

        feat = dense(v, 0, 8)                                    # encoder Linear(8, H)
        # TODO(synk): nn.Dropout (training-mode random masking) not implemented;
        # this is the eval-mode forward (dropout == identity).
        r = jnp.maximum(dense(feat.astype(bf16), 1, d), 0.0)
        r = jnp.maximum(dense(r.astype(bf16), 2, d), 0.0)
        pred = dense(r.astype(bf16), 3, d)                       # valid col 0

        # Single lane-dense store: features in [0:D], prediction at lane D.
        out_ref[...] = jnp.concatenate([feat, pred], axis=1)     # (tb, 2*D)

    return kernel


# ---------------------------------------------------------------------------
# Glue: parameter packing + pallas_call wrapper
# ---------------------------------------------------------------------------
def cnn_rul_forward(x, convs, linears, *, block_b=64):
    """x: (B, input_dim, L) float32.  Returns (predictions (B,1), features (B,H))."""
    B, c_in, L = x.shape
    l = L
    for s in _STRIDES:
        l = _conv_out_len(l, s)
    assert l == 1, "final conv length must be 1 to match Flatten -> Linear(8, hidden)"

    c_pad = _round_up(max(c_in, 8), 8)
    hidden = linears[0][0].shape[0]
    d = _round_up(max(hidden, 1), 128)                # lane-dense dense width
    tb = _round_up(max(8, min(int(block_b), _round_up(B, 8))), 8)
    b_pad = _round_up(B, tb)

    # -- conv params: (6, 3, c_pad, 8) = [layer, tap, cin, cout], tap by leading idx
    cw, cb = [], []
    for (w, b) in convs:
        cout, cin_i, _ = w.shape
        wt = jnp.transpose(w, (2, 1, 0))              # (3, cin, cout)
        wp = jnp.zeros((3, c_pad, 8), jnp.float32).at[:, :cin_i, :cout].set(wt)
        cw.append(wp)
        cb.append(jnp.zeros((1, 8), jnp.float32).at[0, :cout].set(b))
    conv_w = jnp.stack(cw).astype(jnp.bfloat16)       # (6, 3, c_pad, 8)
    conv_b = jnp.stack(cb)                            # (6, 1, 8) f32

    # -- dense params: transposed, zero-padded to (D, D) / (1, D)
    dws, dbs = [], []
    for (w, b) in linears:
        wt = jnp.transpose(w)                         # (in, out)
        pin, pout = wt.shape
        dws.append(jnp.zeros((d, d), jnp.float32).at[:pin, :pout].set(wt))
        dbs.append(jnp.zeros((1, d), jnp.float32).at[0, :pout].set(b))
    dense_w = jnp.stack(dws).astype(jnp.bfloat16)     # (4, D, D)
    dense_b = jnp.stack(dbs)                          # (4, 1, D) f32

    # -- input: (B, C, L) -> (L, B_pad, C_pad) bf16 (L leading, batch in sublanes)
    xt = jnp.transpose(x, (2, 0, 1))
    xt = jnp.pad(xt, ((0, 0), (0, b_pad - B), (0, c_pad - c_in))).astype(jnp.bfloat16)

    kernel = make_cnn_rul_kernel(tb=tb, l0=L, c_pad=c_pad, d=d)

    out = pl.pallas_call(
        kernel,
        out_shape=jax.ShapeDtypeStruct((b_pad, 2 * d), jnp.float32),
        grid_spec=pltpu.PrefetchScalarGridSpec(
            num_scalar_prefetch=0,
            grid=(b_pad // tb,),
            in_specs=[
                pl.BlockSpec((L, tb, c_pad), lambda i: (0, i, 0)),       # x block
                pl.BlockSpec((6, 3, c_pad, 8), lambda i: (0, 0, 0, 0)),  # conv W
                pl.BlockSpec((6, 1, 8), lambda i: (0, 0, 0)),            # conv b
                pl.BlockSpec((4, d, d), lambda i: (0, 0, 0)),            # dense W
                pl.BlockSpec((4, 1, d), lambda i: (0, 0, 0)),            # dense b
            ],
            out_specs=pl.BlockSpec((tb, 2 * d), lambda i: (i, 0))),
        compiler_params=pltpu.CompilerParams(
            dimension_semantics=("parallel",)),
    )(xt, conv_w, conv_b, dense_w, dense_b)

    predictions = out[:B, d:d + 1]                    # (B, 1)
    features = out[:B, :hidden]                       # (B, hidden)
    return predictions, features


# ---------------------------------------------------------------------------
# Parameter init (PyTorch default uniform) and pure-JAX reference
# ---------------------------------------------------------------------------
def init_params(key, input_dim, hidden_dim):
    def uniform(k, shape, fan_in):
        bound = 1.0 / math.sqrt(fan_in)
        return jax.random.uniform(k, shape, jnp.float32, -bound, bound)

    keys = iter(list(jax.random.split(key, 20)))

    convs = []
    for cin, cout in [(input_dim, 8)] + [(8, 8)] * 5:
        w = uniform(next(keys), (cout, cin, 3), cin * 3)      # Conv1d (out, in, k)
        b = uniform(next(keys), (cout,), cin * 3)
        convs.append((w, b))

    linears = []
    for fin, fout in [(8, hidden_dim), (hidden_dim, hidden_dim),
                      (hidden_dim, hidden_dim // 2), (hidden_dim // 2, 1)]:
        w = uniform(next(keys), (fout, fin), fin)             # Linear (out, in)
        b = uniform(next(keys), (fout,), fin)
        linears.append((w, b))
    return convs, linears


def _conv1d_ref(x, w, b, stride):
    xp = jnp.pad(x, ((0, 0), (0, 0), (1, 1)))
    l_out = _conv_out_len(x.shape[-1], stride)
    out = jnp.zeros((x.shape[0], w.shape[0], l_out), jnp.float32)
    for k in range(3):
        sl = xp[:, :, k:k + stride * (l_out - 1) + 1:stride]
        out = out + jnp.einsum('oc,bcl->bol', w[:, :, k], sl)
    return out + b[None, :, None]


def ref_forward(x, convs, linears):
    h = x
    for i, ((w, b), s) in enumerate(zip(convs, _STRIDES)):
        h = _conv1d_ref(h, w, b, s)
        if i < len(_STRIDES) - 1:
            h = jax.nn.relu(h)
    flat = h.reshape(x.shape[0], -1)
    (we, be), (w1, b1), (w2, b2), (w3, b3) = linears
    feat = flat @ we.T + be
    r = jax.nn.relu(feat @ w1.T + b1)
    r = jax.nn.relu(r @ w2.T + b2)
    pred = r @ w3.T + b3
    return pred, feat


# ---------------------------------------------------------------------------
if __name__ == "__main__":
    B, input_dim, L = 24, 4, 32       # seq length 32 -> final conv length 1
    hidden_dim = 32
    dropout = 0.5                     # unused (eval-mode forward)

    key = jax.random.PRNGKey(0)
    k_x, k_p = jax.random.split(key)
    x = jax.random.normal(k_x, (B, input_dim, L), jnp.float32)
    convs, linears = init_params(k_p, input_dim, hidden_dim)

    # block_b=16 -> b_pad=32, grid=(2,): exercises batch padding and gives the
    # v7x megacore two parallel grid steps.
    pred, feat = cnn_rul_forward(x, convs, linears, block_b=16)
    jax.block_until_ready((pred, feat))

    pred_ref, feat_ref = ref_forward(x, convs, linears)
    assert pred.shape == (B, 1) and feat.shape == (B, hidden_dim)
    assert jnp.allclose(feat, feat_ref, atol=7e-2, rtol=7e-2), (
        float(jnp.max(jnp.abs(feat - feat_ref))))
    assert jnp.allclose(pred, pred_ref, atol=7e-2, rtol=7e-2), (
        float(jnp.max(jnp.abs(pred - pred_ref))))

    print("KERNEL_OK")
</pallas_src>

<mosaic_0001>
module attributes {stable_mosaic.version = 11 : i64} {
  func.func @kernel(%arg0: i32, %arg1: memref<32x16x8xbf16, #tpu.memory_space<vmem>>, %arg2: memref<6x3x8x8xbf16, #tpu.memory_space<vmem>>, %arg3: memref<6x1x8xf32, #tpu.memory_space<vmem>>, %arg4: memref<4x128x128xbf16, #tpu.memory_space<vmem>>, %arg5: memref<4x1x128xf32, #tpu.memory_space<vmem>>, %arg6: memref<16x256xf32, #tpu.memory_space<vmem>>) attributes {dimension_semantics = [#tpu.dimension_semantics<parallel>], iteration_bounds = array<i64: 2>, scalar_prefetch = 0 : i64, scratch_operands = 0 : i64, tpu.core_type = #tpu.core_type<tc>, window_params = [{transform_indices = @transform_0, window_bounds = array<i64: 32, 16, 8>}, {pipeline_mode = #tpu.pipeline_mode<synchronous>, transform_indices = @transform_1, window_bounds = array<i64: 6, 3, 8, 8>}, {pipeline_mode = #tpu.pipeline_mode<synchronous>, transform_indices = @transform_2, window_bounds = array<i64: 6, 1, 8>}, {pipeline_mode = #tpu.pipeline_mode<synchronous>, transform_indices = @transform_3, window_bounds = array<i64: 4, 128, 128>}, {pipeline_mode = #tpu.pipeline_mode<synchronous>, transform_indices = @transform_4, window_bounds = array<i64: 4, 1, 128>}, {transform_indices = @transform_5, window_bounds = array<i64: 16, 256>}]} {
    %c0 = arith.constant 0 : index
    %c0_0 = arith.constant 0 : index
    %c0_1 = arith.constant 0 : index
    %0 = vector.load %arg1[%c0, %c0_0, %c0_1] : memref<32x16x8xbf16, #tpu.memory_space<vmem>>, vector<32x16x8xbf16>
    %cst = arith.constant 0.000000e+00 : bf16
    %1 = vector.broadcast %cst : bf16 to vector<1x16x8xbf16>
    %cst_2 = arith.constant 0.000000e+00 : bf16
    %2 = vector.broadcast %cst_2 : bf16 to vector<2x16x8xbf16>
    %3 = tpu.concatenate %1, %0, %2 in 0 : vector<1x16x8xbf16>, vector<32x16x8xbf16>, vector<2x16x8xbf16> -> vector<35x16x8xbf16>
    %cst_3 = arith.constant 0.000000e+00 : f32
    %4 = vector.broadcast %cst_3 : f32 to vector<512x8xf32>
    %5 = vector.extract_strided_slice %3 {offsets = [0, 0, 0], sizes = [32, 16, 8], strides = [1, 1, 1]} : vector<35x16x8xbf16> to vector<32x16x8xbf16>
    %6 = vector.shape_cast %5 : vector<32x16x8xbf16> to vector<512x8xbf16>
    %c0_4 = arith.constant 0 : index
    %c0_5 = arith.constant 0 : index
    %c0_6 = arith.constant 0 : index
    %c0_7 = arith.constant 0 : index
    %7 = vector.load %arg2[%c0_4, %c0_5, %c0_6, %c0_7] : memref<6x3x8x8xbf16, #tpu.memory_space<vmem>>, vector<1x1x8x8xbf16>
    %8 = vector.shape_cast %7 : vector<1x1x8x8xbf16> to vector<8x8xbf16>
    %cst_8 = arith.constant dense<0.000000e+00> : vector<512x8xf32>
    %9 = tpu.matmul %6, %8, %cst_8 {dimension_numbers = #tpu.dot_dimension_numbers<[1], [0], [0], [1], [0, 0, 1, 1], [], []>} : vector<512x8xbf16>, vector<8x8xbf16>, vector<512x8xf32> -> vector<512x8xf32>
    %10 = arith.addf %4, %9 : vector<512x8xf32>
    %11 = vector.extract_strided_slice %3 {offsets = [1, 0, 0], sizes = [32, 16, 8], strides = [1, 1, 1]} : vector<35x16x8xbf16> to vector<32x16x8xbf16>
    %12 = vector.shape_cast %11 : vector<32x16x8xbf16> to vector<512x8xbf16>
    %c0_9 = arith.constant 0 : index
    %c1 = arith.constant 1 : index
    %c0_10 = arith.constant 0 : index
    %c0_11 = arith.constant 0 : index
    %13 = vector.load %arg2[%c0_9, %c1, %c0_10, %c0_11] : memref<6x3x8x8xbf16, #tpu.memory_space<vmem>>, vector<1x1x8x8xbf16>
    %14 = vector.shape_cast %13 : vector<1x1x8x8xbf16> to vector<8x8xbf16>
    %cst_12 = arith.constant dense<0.000000e+00> : vector<512x8xf32>
    %15 = tpu.matmul %12, %14, %cst_12 {dimension_numbers = #tpu.dot_dimension_numbers<[1], [0], [0], [1], [0, 0, 1, 1], [], []>} : vector<512x8xbf16>, vector<8x8xbf16>, vector<512x8xf32> -> vector<512x8xf32>
    %16 = arith.addf %10, %15 : vector<512x8xf32>
    %17 = vector.extract_strided_slice %3 {offsets = [2, 0, 0], sizes = [32, 16, 8], strides = [1, 1, 1]} : vector<35x16x8xbf16> to vector<32x16x8xbf16>
    %18 = vector.shape_cast %17 : vector<32x16x8xbf16> to vector<512x8xbf16>
    %c0_13 = arith.constant 0 : index
    %c2 = arith.constant 2 : index
    %c0_14 = arith.constant 0 : index
    %c0_15 = arith.constant 0 : index
    %19 = vector.load %arg2[%c0_13, %c2, %c0_14, %c0_15] : memref<6x3x8x8xbf16, #tpu.memory_space<vmem>>, vector<1x1x8x8xbf16>
    %20 = vector.shape_cast %19 : vector<1x1x8x8xbf16> to vector<8x8xbf16>
    %cst_16 = arith.constant dense<0.000000e+00> : vector<512x8xf32>
    %21 = tpu.matmul %18, %20, %cst_16 {dimension_numbers = #tpu.dot_dimension_numbers<[1], [0], [0], [1], [0, 0, 1, 1], [], []>} : vector<512x8xbf16>, vector<8x8xbf16>, vector<512x8xf32> -> vector<512x8xf32>
    %22 = arith.addf %16, %21 : vector<512x8xf32>
    %c0_17 = arith.constant 0 : index
    %c0_18 = arith.constant 0 : index
    %c0_19 = arith.constant 0 : index
    %23 = vector.load %arg3[%c0_17, %c0_18, %c0_19] : memref<6x1x8xf32, #tpu.memory_space<vmem>>, vector<1x1x8xf32>
    %24 = vector.shape_cast %23 : vector<1x1x8xf32> to vector<1x8xf32>
    %25 = vector.broadcast %24 : vector<1x8xf32> to vector<512x8xf32>
    %26 = arith.addf %22, %25 : vector<512x8xf32>
    %cst_20 = arith.constant 0.000000e+00 : f32
    %27 = vector.broadcast %cst_20 : f32 to vector<512x8xf32>
    %28 = arith.maximumf %26, %27 : vector<512x8xf32>
    %29 = arith.truncf %28 : vector<512x8xf32> to vector<512x8xbf16>
    %30 = vector.shape_cast %29 : vector<512x8xbf16> to vector<32x16x8xbf16>
    %cst_21 = arith.constant 0.000000e+00 : bf16
    %31 = vector.broadcast %cst_21 : bf16 to vector<1x16x8xbf16>
    %cst_22 = arith.constant 0.000000e+00 : bf16
    %32 = vector.broadcast %cst_22 : bf16 to vector<2x16x8xbf16>
    %33 = tpu.concatenate %31, %30, %32 in 0 : vector<1x16x8xbf16>, vector<32x16x8xbf16>, vector<2x16x8xbf16> -> vector<35x16x8xbf16>
    %cst_23 = arith.constant 0.000000e+00 : f32
    %34 = vector.broadcast %cst_23 : f32 to vector<256x8xf32>
    %35 = vector.extract_strided_slice %33 {offsets = [0, 0, 0], sizes = [32, 16, 8], strides = [1, 1, 1]} : vector<35x16x8xbf16> to vector<32x16x8xbf16>
    %36 = vector.shape_cast %35 : vector<32x16x8xbf16> to vector<16x32x8xbf16>
    %37 = vector.extract_strided_slice %36 {offsets = [0, 0, 0], sizes = [16, 16, 8], strides = [1, 1, 1]} : vector<16x32x8xbf16> to vector<16x16x8xbf16>
    %38 = vector.shape_cast %37 : vector<16x16x8xbf16> to vector<256x8xbf16>
    %c1_24 = arith.constant 1 : index
    %c0_25 = arith.constant 0 : index
    %c0_26 = arith.constant 0 : index
    %c0_27 = arith.constant 0 : index
    %39 = vector.load %arg2[%c1_24, %c0_25, %c0_26, %c0_27] : memref<6x3x8x8xbf16, #tpu.memory_space<vmem>>, vector<1x1x8x8xbf16>
    %40 = vector.shape_cast %39 : vector<1x1x8x8xbf16> to vector<8x8xbf16>
    %cst_28 = arith.constant dense<0.000000e+00> : vector<256x8xf32>
    %41 = tpu.matmul %38, %40, %cst_28 {dimension_numbers = #tpu.dot_dimension_numbers<[1], [0], [0], [1], [0, 0, 1, 1], [], []>} : vector<256x8xbf16>, vector<8x8xbf16>, vector<256x8xf32> -> vector<256x8xf32>
    %42 = arith.addf %34, %41 : vector<256x8xf32>
    %43 = vector.extract_strided_slice %33 {offsets = [1, 0, 0], sizes = [32, 16, 8], strides = [1, 1, 1]} : vector<35x16x8xbf16> to vector<32x16x8xbf16>
    %44 = vector.shape_cast %43 : vector<32x16x8xbf16> to vector<16x32x8xbf16>
    %45 = vector.extract_strided_slice %44 {offsets = [0, 0, 0], sizes = [16, 16, 8], strides = [1, 1, 1]} : vector<16x32x8xbf16> to vector<16x16x8xbf16>
    %46 = vector.shape_cast %45 : vector<16x16x8xbf16> to vector<256x8xbf16>
    %c1_29 = arith.constant 1 : index
    %c1_30 = arith.constant 1 : index
    %c0_31 = arith.constant 0 : index
    %c0_32 = arith.constant 0 : index
    %47 = vector.load %arg2[%c1_29, %c1_30, %c0_31, %c0_32] : memref<6x3x8x8xbf16, #tpu.memory_space<vmem>>, vector<1x1x8x8xbf16>
    %48 = vector.shape_cast %47 : vector<1x1x8x8xbf16> to vector<8x8xbf16>
    %cst_33 = arith.constant dense<0.000000e+00> : vector<256x8xf32>
    %49 = tpu.matmul %46, %48, %cst_33 {dimension_numbers = #tpu.dot_dimension_numbers<[1], [0], [0], [1], [0, 0, 1, 1], [], []>} : vector<256x8xbf16>, vector<8x8xbf16>, vector<256x8xf32> -> vector<256x8xf32>
    %50 = arith.addf %42, %49 : vector<256x8xf32>
    %51 = vector.extract_strided_slice %33 {offsets = [2, 0, 0], sizes = [32, 16, 8], strides = [1, 1, 1]} : vector<35x16x8xbf16> to vector<32x16x8xbf16>
    %52 = vector.shape_cast %51 : vector<32x16x8xbf16> to vector<16x32x8xbf16>
    %53 = vector.extract_strided_slice %52 {offsets = [0, 0, 0], sizes = [16, 16, 8], strides = [1, 1, 1]} : vector<16x32x8xbf16> to vector<16x16x8xbf16>
    %54 = vector.shape_cast %53 : vector<16x16x8xbf16> to vector<256x8xbf16>
    %c1_34 = arith.constant 1 : index
    %c2_35 = arith.constant 2 : index
    %c0_36 = arith.constant 0 : index
    %c0_37 = arith.constant 0 : index
    %55 = vector.load %arg2[%c1_34, %c2_35, %c0_36, %c0_37] : memref<6x3x8x8xbf16, #tpu.memory_space<vmem>>, vector<1x1x8x8xbf16>
    %56 = vector.shape_cast %55 : vector<1x1x8x8xbf16> to vector<8x8xbf16>
    %cst_38 = arith.constant dense<0.000000e+00> : vector<256x8xf32>
    %57 = tpu.matmul %54, %56, %cst_38 {dimension_numbers = #tpu.dot_dimension_numbers<[1], [0], [0], [1], [0, 0, 1, 1], [], []>} : vector<256x8xbf16>, vector<8x8xbf16>, vector<256x8xf32> -> vector<256x8xf32>
    %58 = arith.addf %50, %57 : vector<256x8xf32>
    %c1_39 = arith.constant 1 : index
    %c0_40 = arith.constant 0 : index
    %c0_41 = arith.constant 0 : index
    %59 = vector.load %arg3[%c1_39, %c0_40, %c0_41] : memref<6x1x8xf32, #tpu.memory_space<vmem>>, vector<1x1x8xf32>
    %60 = vector.shape_cast %59 : vector<1x1x8xf32> to vector<1x8xf32>
    %61 = vector.broadcast %60 : vector<1x8xf32> to vector<256x8xf32>
    %62 = arith.addf %58, %61 : vector<256x8xf32>
    %cst_42 = arith.constant 0.000000e+00 : f32
    %63 = vector.broadcast %cst_42 : f32 to vector<256x8xf32>
    %64 = arith.maximumf %62, %63 : vector<256x8xf32>
    %65 = arith.truncf %64 : vector<256x8xf32> to vector<256x8xbf16>
    %66 = vector.shape_cast %65 : vector<256x8xbf16> to vector<16x16x8xbf16>
    %cst_43 = arith.constant 0.000000e+00 : bf16
    %67 = vector.broadcast %cst_43 : bf16 to vector<1x16x8xbf16>
    %cst_44 = arith.constant 0.000000e+00 : bf16
    %68 = vector.broadcast %cst_44 : bf16 to vector<2x16x8xbf16>
    %69 = tpu.concatenate %67, %66, %68 in 0 : vector<1x16x8xbf16>, vector<16x16x8xbf16>, vector<2x16x8xbf16> -> vector<19x16x8xbf16>
    %cst_45 = arith.constant 0.000000e+00 : f32
    %70 = vector.broadcast %cst_45 : f32 to vector<128x8xf32>
    %71 = vector.extract_strided_slice %69 {offsets = [0, 0, 0], sizes = [16, 16, 8], strides = [1, 1, 1]} : vector<19x16x8xbf16> to vector<16x16x8xbf16>
    %72 = vector.shape_cast %71 : vector<16x16x8xbf16> to vector<8x32x8xbf16>
    %73 = vector.extract_strided_slice %72 {offsets = [0, 0, 0], sizes = [8, 16, 8], strides = [1, 1, 1]} : vector<8x32x8xbf16> to vector<8x16x8xbf16>
    %74 = vector.shape_cast %73 : vector<8x16x8xbf16> to vector<128x8xbf16>
    %c2_46 = arith.constant 2 : index
    %c0_47 = arith.constant 0 : index
    %c0_48 = arith.constant 0 : index
    %c0_49 = arith.constant 0 : index
    %75 = vector.load %arg2[%c2_46, %c0_47, %c0_48, %c0_49] : memref<6x3x8x8xbf16, #tpu.memory_space<vmem>>, vector<1x1x8x8xbf16>
    %76 = vector.shape_cast %75 : vector<1x1x8x8xbf16> to vector<8x8xbf16>
    %cst_50 = arith.constant dense<0.000000e+00> : vector<128x8xf32>
    %77 = tpu.matmul %74, %76, %cst_50 {dimension_numbers = #tpu.dot_dimension_numbers<[1], [0], [0], [1], [0, 0, 1, 1], [], []>} : vector<128x8xbf16>, vector<8x8xbf16>, vector<128x8xf32> -> vector<128x8xf32>
    %78 = arith.addf %70, %77 : vector<128x8xf32>
    %79 = vector.extract_strided_slice %69 {offsets = [1, 0, 0], sizes = [16, 16, 8], strides = [1, 1, 1]} : vector<19x16x8xbf16> to vector<16x16x8xbf16>
    %80 = vector.shape_cast %79 : vector<16x16x8xbf16> to vector<8x32x8xbf16>
    %81 = vector.extract_strided_slice %80 {offsets = [0, 0, 0], sizes = [8, 16, 8], strides = [1, 1, 1]} : vector<8x32x8xbf16> to vector<8x16x8xbf16>
    %82 = vector.shape_cast %81 : vector<8x16x8xbf16> to vector<128x8xbf16>
    %c2_51 = arith.constant 2 : index
    %c1_52 = arith.constant 1 : index
    %c0_53 = arith.constant 0 : index
    %c0_54 = arith.constant 0 : index
    %83 = vector.load %arg2[%c2_51, %c1_52, %c0_53, %c0_54] : memref<6x3x8x8xbf16, #tpu.memory_space<vmem>>, vector<1x1x8x8xbf16>
    %84 = vector.shape_cast %83 : vector<1x1x8x8xbf16> to vector<8x8xbf16>
    %cst_55 = arith.constant dense<0.000000e+00> : vector<128x8xf32>
    %85 = tpu.matmul %82, %84, %cst_55 {dimension_numbers = #tpu.dot_dimension_numbers<[1], [0], [0], [1], [0, 0, 1, 1], [], []>} : vector<128x8xbf16>, vector<8x8xbf16>, vector<128x8xf32> -> vector<128x8xf32>
    %86 = arith.addf %78, %85 : vector<128x8xf32>
    %87 = vector.extract_strided_slice %69 {offsets = [2, 0, 0], sizes = [16, 16, 8], strides = [1, 1, 1]} : vector<19x16x8xbf16> to vector<16x16x8xbf16>
    %88 = vector.shape_cast %87 : vector<16x16x8xbf16> to vector<8x32x8xbf16>
    %89 = vector.extract_strided_slice %88 {offsets = [0, 0, 0], sizes = [8, 16, 8], strides = [1, 1, 1]} : vector<8x32x8xbf16> to vector<8x16x8xbf16>
    %90 = vector.shape_cast %89 : vector<8x16x8xbf16> to vector<128x8xbf16>
    %c2_56 = arith.constant 2 : index
    %c2_57 = arith.constant 2 : index
    %c0_58 = arith.constant 0 : index
    %c0_59 = arith.constant 0 : index
    %91 = vector.load %arg2[%c2_56, %c2_57, %c0_58, %c0_59] : memref<6x3x8x8xbf16, #tpu.memory_space<vmem>>, vector<1x1x8x8xbf16>
    %92 = vector.shape_cast %91 : vector<1x1x8x8xbf16> to vector<8x8xbf16>
    %cst_60 = arith.constant dense<0.000000e+00> : vector<128x8xf32>
    %93 = tpu.matmul %90, %92, %cst_60 {dimension_numbers = #tpu.dot_dimension_numbers<[1], [0], [0], [1], [0, 0, 1, 1], [], []>} : vector<128x8xbf16>, vector<8x8xbf16>, vector<128x8xf32> -> vector<128x8xf32>
    %94 = arith.addf %86, %93 : vector<128x8xf32>
    %c2_61 = arith.constant 2 : index
    %c0_62 = arith.constant 0 : index
    %c0_63 = arith.constant 0 : index
    %95 = vector.load %arg3[%c2_61, %c0_62, %c0_63] : memref<6x1x8xf32, #tpu.memory_space<vmem>>, vector<1x1x8xf32>
    %96 = vector.shape_cast %95 : vector<1x1x8xf32> to vector<1x8xf32>
    %97 = vector.broadcast %96 : vector<1x8xf32> to vector<128x8xf32>
    %98 = arith.addf %94, %97 : vector<128x8xf32>
    %cst_64 = arith.constant 0.000000e+00 : f32
    %99 = vector.broadcast %cst_64 : f32 to vector<128x8xf32>
    %100 = arith.maximumf %98, %99 : vector<128x8xf32>
    %101 = arith.truncf %100 : vector<128x8xf32> to vector<128x8xbf16>
    %102 = vector.shape_cast %101 : vector<128x8xbf16> to vector<8x16x8xbf16>
    %cst_65 = arith.constant 0.000000e+00 : bf16
    %103 = vector.broadcast %cst_65 : bf16 to vector<1x16x8xbf16>
    %cst_66 = arith.constant 0.000000e+00 : bf16
    %104 = vector.broadcast %cst_66 : bf16 to vector<2x16x8xbf16>
    %105 = tpu.concatenate %103, %102, %104 in 0 : vector<1x16x8xbf16>, vector<8x16x8xbf16>, vector<2x16x8xbf16> -> vector<11x16x8xbf16>
    %cst_67 = arith.constant 0.000000e+00 : f32
    %106 = vector.broadcast %cst_67 : f32 to vector<64x8xf32>
    %107 = vector.extract_strided_slice %105 {offsets = [0, 0, 0], sizes = [8, 16, 8], strides = [1, 1, 1]} : vector<11x16x8xbf16> to vector<8x16x8xbf16>
    %108 = vector.shape_cast %107 : vector<8x16x8xbf16> to vector<4x32x8xbf16>
    %109 = vector.extract_strided_slice %108 {offsets = [0, 0, 0], sizes = [4, 16, 8], strides = [1, 1, 1]} : vector<4x32x8xbf16> to vector<4x16x8xbf16>
    %110 = vector.shape_cast %109 : vector<4x16x8xbf16> to vector<64x8xbf16>
    %c3 = arith.constant 3 : index
    %c0_68 = arith.constant 0 : index
    %c0_69 = arith.constant 0 : index
    %c0_70 = arith.constant 0 : index
    %111 = vector.load %arg2[%c3, %c0_68, %c0_69, %c0_70] : memref<6x3x8x8xbf16, #tpu.memory_space<vmem>>, vector<1x1x8x8xbf16>
    %112 = vector.shape_cast %111 : vector<1x1x8x8xbf16> to vector<8x8xbf16>
    %cst_71 = arith.constant dense<0.000000e+00> : vector<64x8xf32>
    %113 = tpu.matmul %110, %112, %cst_71 {dimension_numbers = #tpu.dot_dimension_numbers<[1], [0], [0], [1], [0, 0, 1, 1], [], []>} : vector<64x8xbf16>, vector<8x8xbf16>, vector<64x8xf32> -> vector<64x8xf32>
    %114 = arith.addf %106, %113 : vector<64x8xf32>
    %115 = vector.extract_strided_slice %105 {offsets = [1, 0, 0], sizes = [8, 16, 8], strides = [1, 1, 1]} : vector<11x16x8xbf16> to vector<8x16x8xbf16>
    %116 = vector.shape_cast %115 : vector<8x16x8xbf16> to vector<4x32x8xbf16>
    %117 = vector.extract_strided_slice %116 {offsets = [0, 0, 0], sizes = [4, 16, 8], strides = [1, 1, 1]} : vector<4x32x8xbf16> to vector<4x16x8xbf16>
    %118 = vector.shape_cast %117 : vector<4x16x8xbf16> to vector<64x8xbf16>
    %c3_72 = arith.constant 3 : index
    %c1_73 = arith.constant 1 : index
    %c0_74 = arith.constant 0 : index
    %c0_75 = arith.constant 0 : index
    %119 = vector.load %arg2[%c3_72, %c1_73, %c0_74, %c0_75] : memref<6x3x8x8xbf16, #tpu.memory_space<vmem>>, vector<1x1x8x8xbf16>
    %120 = vector.shape_cast %119 : vector<1x1x8x8xbf16> to vector<8x8xbf16>
    %cst_76 = arith.constant dense<0.000000e+00> : vector<64x8xf32>
    %121 = tpu.matmul %118, %120, %cst_76 {dimension_numbers = #tpu.dot_dimension_numbers<[1], [0], [0], [1], [0, 0, 1, 1], [], []>} : vector<64x8xbf16>, vector<8x8xbf16>, vector<64x8xf32> -> vector<64x8xf32>
    %122 = arith.addf %114, %121 : vector<64x8xf32>
    %123 = vector.extract_strided_slice %105 {offsets = [2, 0, 0], sizes = [8, 16, 8], strides = [1, 1, 1]} : vector<11x16x8xbf16> to vector<8x16x8xbf16>
    %124 = vector.shape_cast %123 : vector<8x16x8xbf16> to vector<4x32x8xbf16>
    %125 = vector.extract_strided_slice %124 {offsets = [0, 0, 0], sizes = [4, 16, 8], strides = [1, 1, 1]} : vector<4x32x8xbf16> to vector<4x16x8xbf16>
    %126 = vector.shape_cast %125 : vector<4x16x8xbf16> to vector<64x8xbf16>
    %c3_77 = arith.constant 3 : index
    %c2_78 = arith.constant 2 : index
    %c0_79 = arith.constant 0 : index
    %c0_80 = arith.constant 0 : index
    %127 = vector.load %arg2[%c3_77, %c2_78, %c0_79, %c0_80] : memref<6x3x8x8xbf16, #tpu.memory_space<vmem>>, vector<1x1x8x8xbf16>
    %128 = vector.shape_cast %127 : vector<1x1x8x8xbf16> to vector<8x8xbf16>
    %cst_81 = arith.constant dense<0.000000e+00> : vector<64x8xf32>
    %129 = tpu.matmul %126, %128, %cst_81 {dimension_numbers = #tpu.dot_dimension_numbers<[1], [0], [0], [1], [0, 0, 1, 1], [], []>} : vector<64x8xbf16>, vector<8x8xbf16>, vector<64x8xf32> -> vector<64x8xf32>
    %130 = arith.addf %122, %129 : vector<64x8xf32>
    %c3_82 = arith.constant 3 : index
    %c0_83 = arith.constant 0 : index
    %c0_84 = arith.constant 0 : index
    %131 = vector.load %arg3[%c3_82, %c0_83, %c0_84] : memref<6x1x8xf32, #tpu.memory_space<vmem>>, vector<1x1x8xf32>
    %132 = vector.shape_cast %131 : vector<1x1x8xf32> to vector<1x8xf32>
    %133 = vector.broadcast %132 : vector<1x8xf32> to vector<64x8xf32>
    %134 = arith.addf %130, %133 : vector<64x8xf32>
    %cst_85 = arith.constant 0.000000e+00 : f32
    %135 = vector.broadcast %cst_85 : f32 to vector<64x8xf32>
    %136 = arith.maximumf %134, %135 : vector<64x8xf32>
    %137 = arith.truncf %136 : vector<64x8xf32> to vector<64x8xbf16>
    %138 = vector.shape_cast %137 : vector<64x8xbf16> to vector<4x16x8xbf16>
    %cst_86 = arith.constant 0.000000e+00 : bf16
    %139 = vector.broadcast %cst_86 : bf16 to vector<1x16x8xbf16>
    %cst_87 = arith.constant 0.000000e+00 : bf16
    %140 = vector.broadcast %cst_87 : bf16 to vector<2x16x8xbf16>
    %141 = tpu.concatenate %139, %138, %140 in 0 : vector<1x16x8xbf16>, vector<4x16x8xbf16>, vector<2x16x8xbf16> -> vector<7x16x8xbf16>
    %cst_88 = arith.constant 0.000000e+00 : f32
    %142 = vector.broadcast %cst_88 : f32 to vector<32x8xf32>
    %143 = vector.extract_strided_slice %141 {offsets = [0, 0, 0], sizes = [4, 16, 8], strides = [1, 1, 1]} : vector<7x16x8xbf16> to vector<4x16x8xbf16>
    %144 = vector.shape_cast %143 : vector<4x16x8xbf16> to vector<2x32x8xbf16>
    %145 = vector.extract_strided_slice %144 {offsets = [0, 0, 0], sizes = [2, 16, 8], strides = [1, 1, 1]} : vector<2x32x8xbf16> to vector<2x16x8xbf16>
    %146 = vector.shape_cast %145 : vector<2x16x8xbf16> to vector<32x8xbf16>
    %c4 = arith.constant 4 : index
    %c0_89 = arith.constant 0 : index
    %c0_90 = arith.constant 0 : index
    %c0_91 = arith.constant 0 : index
    %147 = vector.load %arg2[%c4, %c0_89, %c0_90, %c0_91] : memref<6x3x8x8xbf16, #tpu.memory_space<vmem>>, vector<1x1x8x8xbf16>
    %148 = vector.shape_cast %147 : vector<1x1x8x8xbf16> to vector<8x8xbf16>
    %cst_92 = arith.constant dense<0.000000e+00> : vector<32x8xf32>
    %149 = tpu.matmul %146, %148, %cst_92 {dimension_numbers = #tpu.dot_dimension_numbers<[1], [0], [0], [1], [0, 0, 1, 1], [], []>} : vector<32x8xbf16>, vector<8x8xbf16>, vector<32x8xf32> -> vector<32x8xf32>
    %150 = arith.addf %142, %149 : vector<32x8xf32>
    %151 = vector.extract_strided_slice %141 {offsets = [1, 0, 0], sizes = [4, 16, 8], strides = [1, 1, 1]} : vector<7x16x8xbf16> to vector<4x16x8xbf16>
    %152 = vector.shape_cast %151 : vector<4x16x8xbf16> to vector<2x32x8xbf16>
    %153 = vector.extract_strided_slice %152 {offsets = [0, 0, 0], sizes = [2, 16, 8], strides = [1, 1, 1]} : vector<2x32x8xbf16> to vector<2x16x8xbf16>
    %154 = vector.shape_cast %153 : vector<2x16x8xbf16> to vector<32x8xbf16>
    %c4_93 = arith.constant 4 : index
    %c1_94 = arith.constant 1 : index
    %c0_95 = arith.constant 0 : index
    %c0_96 = arith.constant 0 : index
    %155 = vector.load %arg2[%c4_93, %c1_94, %c0_95, %c0_96] : memref<6x3x8x8xbf16, #tpu.memory_space<vmem>>, vector<1x1x8x8xbf16>
    %156 = vector.shape_cast %155 : vector<1x1x8x8xbf16> to vector<8x8xbf16>
    %cst_97 = arith.constant dense<0.000000e+00> : vector<32x8xf32>
    %157 = tpu.matmul %154, %156, %cst_97 {dimension_numbers = #tpu.dot_dimension_numbers<[1], [0], [0], [1], [0, 0, 1, 1], [], []>} : vector<32x8xbf16>, vector<8x8xbf16>, vector<32x8xf32> -> vector<32x8xf32>
    %158 = arith.addf %150, %157 : vector<32x8xf32>
    %159 = vector.extract_strided_slice %141 {offsets = [2, 0, 0], sizes = [4, 16, 8], strides = [1, 1, 1]} : vector<7x16x8xbf16> to vector<4x16x8xbf16>
    %160 = vector.shape_cast %159 : vector<4x16x8xbf16> to vector<2x32x8xbf16>
    %161 = vector.extract_strided_slice %160 {offsets = [0, 0, 0], sizes = [2, 16, 8], strides = [1, 1, 1]} : vector<2x32x8xbf16> to vector<2x16x8xbf16>
    %162 = vector.shape_cast %161 : vector<2x16x8xbf16> to vector<32x8xbf16>
    %c4_98 = arith.constant 4 : index
    %c2_99 = arith.constant 2 : index
    %c0_100 = arith.constant 0 : index
    %c0_101 = arith.constant 0 : index
    %163 = vector.load %arg2[%c4_98, %c2_99, %c0_100, %c0_101] : memref<6x3x8x8xbf16, #tpu.memory_space<vmem>>, vector<1x1x8x8xbf16>
    %164 = vector.shape_cast %163 : vector<1x1x8x8xbf16> to vector<8x8xbf16>
    %cst_102 = arith.constant dense<0.000000e+00> : vector<32x8xf32>
    %165 = tpu.matmul %162, %164, %cst_102 {dimension_numbers = #tpu.dot_dimension_numbers<[1], [0], [0], [1], [0, 0, 1, 1], [], []>} : vector<32x8xbf16>, vector<8x8xbf16>, vector<32x8xf32> -> vector<32x8xf32>
    %166 = arith.addf %158, %165 : vector<32x8xf32>
    %c4_103 = arith.constant 4 : index
    %c0_104 = arith.constant 0 : index
    %c0_105 = arith.constant 0 : index
    %167 = vector.load %arg3[%c4_103, %c0_104, %c0_105] : memref<6x1x8xf32, #tpu.memory_space<vmem>>, vector<1x1x8xf32>
    %168 = vector.shape_cast %167 : vector<1x1x8xf32> to vector<1x8xf32>
    %169 = vector.broadcast %168 : vector<1x8xf32> to vector<32x8xf32>
    %170 = arith.addf %166, %169 : vector<32x8xf32>
    %cst_106 = arith.constant 0.000000e+00 : f32
    %171 = vector.broadcast %cst_106 : f32 to vector<32x8xf32>
    %172 = arith.maximumf %170, %171 : vector<32x8xf32>
    %173 = arith.truncf %172 : vector<32x8xf32> to vector<32x8xbf16>
    %174 = vector.shape_cast %173 : vector<32x8xbf16> to vector<2x16x8xbf16>
    %cst_107 = arith.constant 0.000000e+00 : bf16
    %175 = vector.broadcast %cst_107 : bf16 to vector<1x16x8xbf16>
    %cst_108 = arith.constant 0.000000e+00 : bf16
    %176 = vector.broadcast %cst_108 : bf16 to vector<2x16x8xbf16>
    %177 = tpu.concatenate %175, %174, %176 in 0 : vector<1x16x8xbf16>, vector<2x16x8xbf16>, vector<2x16x8xbf16> -> vector<5x16x8xbf16>
    %cst_109 = arith.constant 0.000000e+00 : f32
    %178 = vector.broadcast %cst_109 : f32 to vector<16x8xf32>
    %179 = vector.extract_strided_slice %177 {offsets = [0, 0, 0], sizes = [2, 16, 8], strides = [1, 1, 1]} : vector<5x16x8xbf16> to vector<2x16x8xbf16>
    %180 = vector.shape_cast %179 : vector<2x16x8xbf16> to vector<1x32x8xbf16>
    %181 = vector.extract_strided_slice %180 {offsets = [0, 0, 0], sizes = [1, 16, 8], strides = [1, 1, 1]} : vector<1x32x8xbf16> to vector<1x16x8xbf16>
    %182 = vector.shape_cast %181 : vector<1x16x8xbf16> to vector<16x8xbf16>
    %c5 = arith.constant 5 : index
    %c0_110 = arith.constant 0 : index
    %c0_111 = arith.constant 0 : index
    %c0_112 = arith.constant 0 : index
    %183 = vector.load %arg2[%c5, %c0_110, %c0_111, %c0_112] : memref<6x3x8x8xbf16, #tpu.memory_space<vmem>>, vector<1x1x8x8xbf16>
    %184 = vector.shape_cast %183 : vector<1x1x8x8xbf16> to vector<8x8xbf16>
    %cst_113 = arith.constant dense<0.000000e+00> : vector<16x8xf32>
    %185 = tpu.matmul %182, %184, %cst_113 {dimension_numbers = #tpu.dot_dimension_numbers<[1], [0], [0], [1], [0, 0, 1, 1], [], []>} : vector<16x8xbf16>, vector<8x8xbf16>, vector<16x8xf32> -> vector<16x8xf32>
    %186 = arith.addf %178, %185 : vector<16x8xf32>
    %187 = vector.extract_strided_slice %177 {offsets = [1, 0, 0], sizes = [2, 16, 8], strides = [1, 1, 1]} : vector<5x16x8xbf16> to vector<2x16x8xbf16>
    %188 = vector.shape_cast %187 : vector<2x16x8xbf16> to vector<1x32x8xbf16>
    %189 = vector.extract_strided_slice %188 {offsets = [0, 0, 0], sizes = [1, 16, 8], strides = [1, 1, 1]} : vector<1x32x8xbf16> to vector<1x16x8xbf16>
    %190 = vector.shape_cast %189 : vector<1x16x8xbf16> to vector<16x8xbf16>
    %c5_114 = arith.constant 5 : index
    %c1_115 = arith.constant 1 : index
    %c0_116 = arith.constant 0 : index
    %c0_117 = arith.constant 0 : index
    %191 = vector.load %arg2[%c5_114, %c1_115, %c0_116, %c0_117] : memref<6x3x8x8xbf16, #tpu.memory_space<vmem>>, vector<1x1x8x8xbf16>
    %192 = vector.shape_cast %191 : vector<1x1x8x8xbf16> to vector<8x8xbf16>
    %cst_118 = arith.constant dense<0.000000e+00> : vector<16x8xf32>
    %193 = tpu.matmul %190, %192, %cst_118 {dimension_numbers = #tpu.dot_dimension_numbers<[1], [0], [0], [1], [0, 0, 1, 1], [], []>} : vector<16x8xbf16>, vector<8x8xbf16>, vector<16x8xf32> -> vector<16x8xf32>
    %194 = arith.addf %186, %193 : vector<16x8xf32>
    %195 = vector.extract_strided_slice %177 {offsets = [2, 0, 0], sizes = [2, 16, 8], strides = [1, 1, 1]} : vector<5x16x8xbf16> to vector<2x16x8xbf16>
    %196 = vector.shape_cast %195 : vector<2x16x8xbf16> to vector<1x32x8xbf16>
    %197 = vector.extract_strided_slice %196 {offsets = [0, 0, 0], sizes = [1, 16, 8], strides = [1, 1, 1]} : vector<1x32x8xbf16> to vector<1x16x8xbf16>
    %198 = vector.shape_cast %197 : vector<1x16x8xbf16> to vector<16x8xbf16>
    %c5_119 = arith.constant 5 : index
    %c2_120 = arith.constant 2 : index
    %c0_121 = arith.constant 0 : index
    %c0_122 = arith.constant 0 : index
    %199 = vector.load %arg2[%c5_119, %c2_120, %c0_121, %c0_122] : memref<6x3x8x8xbf16, #tpu.memory_space<vmem>>, vector<1x1x8x8xbf16>
    %200 = vector.shape_cast %199 : vector<1x1x8x8xbf16> to vector<8x8xbf16>
    %cst_123 = arith.constant dense<0.000000e+00> : vector<16x8xf32>
    %201 = tpu.matmul %198, %200, %cst_123 {dimension_numbers = #tpu.dot_dimension_numbers<[1], [0], [0], [1], [0, 0, 1, 1], [], []>} : vector<16x8xbf16>, vector<8x8xbf16>, vector<16x8xf32> -> vector<16x8xf32>
    %202 = arith.addf %194, %201 : vector<16x8xf32>
    %c5_124 = arith.constant 5 : index
    %c0_125 = arith.constant 0 : index
    %c0_126 = arith.constant 0 : index
    %203 = vector.load %arg3[%c5_124, %c0_125, %c0_126] : memref<6x1x8xf32, #tpu.memory_space<vmem>>, vector<1x1x8xf32>
    %204 = vector.shape_cast %203 : vector<1x1x8xf32> to vector<1x8xf32>
    %205 = vector.broadcast %204 : vector<1x8xf32> to vector<16x8xf32>
    %206 = arith.addf %202, %205 : vector<16x8xf32>
    %207 = arith.truncf %206 : vector<16x8xf32> to vector<16x8xbf16>
    %208 = vector.shape_cast %207 : vector<16x8xbf16> to vector<1x16x8xbf16>
    %209 = vector.shape_cast %208 : vector<1x16x8xbf16> to vector<16x8xbf16>
    %c0_127 = arith.constant 0 : index
    %c0_128 = arith.constant 0 : index
    %c0_129 = arith.constant 0 : index
    %210 = vector.load %arg4[%c0_127, %c0_128, %c0_129] : memref<4x128x128xbf16, #tpu.memory_space<vmem>>, vector<1x8x128xbf16>
    %211 = vector.shape_cast %210 : vector<1x8x128xbf16> to vector<8x128xbf16>
    %cst_130 = arith.constant dense<0.000000e+00> : vector<16x128xf32>
    %212 = tpu.matmul %209, %211, %cst_130 {dimension_numbers = #tpu.dot_dimension_numbers<[1], [0], [0], [1], [0, 0, 1, 1], [], []>} : vector<16x8xbf16>, vector<8x128xbf16>, vector<16x128xf32> -> vector<16x128xf32>
    %c0_131 = arith.constant 0 : index
    %c0_132 = arith.constant 0 : index
    %c0_133 = arith.constant 0 : index
    %213 = vector.load %arg5[%c0_131, %c0_132, %c0_133] : memref<4x1x128xf32, #tpu.memory_space<vmem>>, vector<1x1x128xf32>
    %214 = vector.shape_cast %213 : vector<1x1x128xf32> to vector<1x128xf32>
    %215 = vector.broadcast %214 : vector<1x128xf32> to vector<16x128xf32>
    %216 = arith.addf %212, %215 : vector<16x128xf32>
    %217 = arith.truncf %216 : vector<16x128xf32> to vector<16x128xbf16>
    %c1_134 = arith.constant 1 : index
    %c0_135 = arith.constant 0 : index
    %c0_136 = arith.constant 0 : index
    %218 = vector.load %arg4[%c1_134, %c0_135, %c0_136] : memref<4x128x128xbf16, #tpu.memory_space<vmem>>, vector<1x128x128xbf16>
    %219 = vector.shape_cast %218 : vector<1x128x128xbf16> to vector<128x128xbf16>
    %cst_137 = arith.constant dense<0.000000e+00> : vector<16x128xf32>
    %220 = tpu.matmul %217, %219, %cst_137 {dimension_numbers = #tpu.dot_dimension_numbers<[1], [0], [0], [1], [0, 0, 1, 1], [], []>} : vector<16x128xbf16>, vector<128x128xbf16>, vector<16x128xf32> -> vector<16x128xf32>
    %c1_138 = arith.constant 1 : index
    %c0_139 = arith.constant 0 : index
    %c0_140 = arith.constant 0 : index
    %221 = vector.load %arg5[%c1_138, %c0_139, %c0_140] : memref<4x1x128xf32, #tpu.memory_space<vmem>>, vector<1x1x128xf32>
    %222 = vector.shape_cast %221 : vector<1x1x128xf32> to vector<1x128xf32>
    %223 = vector.broadcast %222 : vector<1x128xf32> to vector<16x128xf32>
    %224 = arith.addf %220, %223 : vector<16x128xf32>
    %cst_141 = arith.constant 0.000000e+00 : f32
    %225 = vector.broadcast %cst_141 : f32 to vector<16x128xf32>
    %226 = arith.maximumf %224, %225 : vector<16x128xf32>
    %227 = arith.truncf %226 : vector<16x128xf32> to vector<16x128xbf16>
    %c2_142 = arith.constant 2 : index
    %c0_143 = arith.constant 0 : index
    %c0_144 = arith.constant 0 : index
    %228 = vector.load %arg4[%c2_142, %c0_143, %c0_144] : memref<4x128x128xbf16, #tpu.memory_space<vmem>>, vector<1x128x128xbf16>
    %229 = vector.shape_cast %228 : vector<1x128x128xbf16> to vector<128x128xbf16>
    %cst_145 = arith.constant dense<0.000000e+00> : vector<16x128xf32>
    %230 = tpu.matmul %227, %229, %cst_145 {dimension_numbers = #tpu.dot_dimension_numbers<[1], [0], [0], [1], [0, 0, 1, 1], [], []>} : vector<16x128xbf16>, vector<128x128xbf16>, vector<16x128xf32> -> vector<16x128xf32>
    %c2_146 = arith.constant 2 : index
    %c0_147 = arith.constant 0 : index
    %c0_148 = arith.constant 0 : index
    %231 = vector.load %arg5[%c2_146, %c0_147, %c0_148] : memref<4x1x128xf32, #tpu.memory_space<vmem>>, vector<1x1x128xf32>
    %232 = vector.shape_cast %231 : vector<1x1x128xf32> to vector<1x128xf32>
    %233 = vector.broadcast %232 : vector<1x128xf32> to vector<16x128xf32>
    %234 = arith.addf %230, %233 : vector<16x128xf32>
    %cst_149 = arith.constant 0.000000e+00 : f32
    %235 = vector.broadcast %cst_149 : f32 to vector<16x128xf32>
    %236 = arith.maximumf %234, %235 : vector<16x128xf32>
    %237 = arith.truncf %236 : vector<16x128xf32> to vector<16x128xbf16>
    %c3_150 = arith.constant 3 : index
    %c0_151 = arith.constant 0 : index
    %c0_152 = arith.constant 0 : index
    %238 = vector.load %arg4[%c3_150, %c0_151, %c0_152] : memref<4x128x128xbf16, #tpu.memory_space<vmem>>, vector<1x128x128xbf16>
    %239 = vector.shape_cast %238 : vector<1x128x128xbf16> to vector<128x128xbf16>
    %cst_153 = arith.constant dense<0.000000e+00> : vector<16x128xf32>
    %240 = tpu.matmul %237, %239, %cst_153 {dimension_numbers = #tpu.dot_dimension_numbers<[1], [0], [0], [1], [0, 0, 1, 1], [], []>} : vector<16x128xbf16>, vector<128x128xbf16>, vector<16x128xf32> -> vector<16x128xf32>
    %c3_154 = arith.constant 3 : index
    %c0_155 = arith.constant 0 : index
    %c0_156 = arith.constant 0 : index
    %241 = vector.load %arg5[%c3_154, %c0_155, %c0_156] : memref<4x1x128xf32, #tpu.memory_space<vmem>>, vector<1x1x128xf32>
    %242 = vector.shape_cast %241 : vector<1x1x128xf32> to vector<1x128xf32>
    %243 = vector.broadcast %242 : vector<1x128xf32> to vector<16x128xf32>
    %244 = arith.addf %240, %243 : vector<16x128xf32>
    %245 = tpu.concatenate %216, %244 in 1 : vector<16x128xf32>, vector<16x128xf32> -> vector<16x256xf32>
    %c0_157 = arith.constant 0 : index
    %c0_158 = arith.constant 0 : index
    %246 = vector.load %arg6[%c0_157, %c0_158] : memref<16x256xf32, #tpu.memory_space<vmem>>, vector<16x256xf32>
    tpu.vector_store %arg6[%c0_157, %c0_158], %245 {strides = array<i32>} : memref<16x256xf32, #tpu.memory_space<vmem>>, vector<16x256xf32>,
    return
  }
  func.func @transform_0(%arg0: i32) -> (i32, i32, i32) {
    %c0_i32 = arith.constant 0 : i32
    %c0_i32_0 = arith.constant 0 : i32
    %c0_i32_1 = arith.constant 0 : i32
    return %c0_i32, %arg0, %c0_i32_0 : i32, i32, i32
  }
  func.func @transform_1(%arg0: i32) -> (i32, i32, i32, i32) {
    %c0_i32 = arith.constant 0 : i32
    %c0_i32_0 = arith.constant 0 : i32
    %c0_i32_1 = arith.constant 0 : i32
    %c0_i32_2 = arith.constant 0 : i32
    %c0_i32_3 = arith.constant 0 : i32
    return %c0_i32, %c0_i32_0, %c0_i32_1, %c0_i32_2 : i32, i32, i32, i32
  }
  func.func @transform_2(%arg0: i32) -> (i32, i32, i32) {
    %c0_i32 = arith.constant 0 : i32
    %c0_i32_0 = arith.constant 0 : i32
    %c0_i32_1 = arith.constant 0 : i32
    %c0_i32_2 = arith.constant 0 : i32
    return %c0_i32, %c0_i32_0, %c0_i32_1 : i32, i32, i32
  }
  func.func @transform_3(%arg0: i32) -> (i32, i32, i32) {
    %c0_i32 = arith.constant 0 : i32
    %c0_i32_0 = arith.constant 0 : i32
    %c0_i32_1 = arith.constant 0 : i32
    %c0_i32_2 = arith.constant 0 : i32
    return %c0_i32, %c0_i32_0, %c0_i32_1 : i32, i32, i32
  }
  func.func @transform_4(%arg0: i32) -> (i32, i32, i32) {
    %c0_i32 = arith.constant 0 : i32
    %c0_i32_0 = arith.constant 0 : i32
    %c0_i32_1 = arith.constant 0 : i32
    %c0_i32_2 = arith.constant 0 : i32
    return %c0_i32, %c0_i32_0, %c0_i32_1 : i32, i32, i32
  }
  func.func @transform_5(%arg0: i32) -> (i32, i32) {
    %c0_i32 = arith.constant 0 : i32
    %c0_i32_0 = arith.constant 0 : i32
    return %arg0, %c0_i32 : i32, i32
  }
}

</mosaic_0001>

<llo_original>
// kernel: tpu_custom_call.1
$region0: #{tpu_custom_call.1}
  #allocation0 [shape = 'u32[]', space=smem, size = 0x4, offset = 0x4, fixed_abs, tag = 'smem constant byte address 0x4 - core index']
  #allocation1 [shape = 'u32[144,128]{1,0:T(1,128)}', space=vmem, size = 0x12000, scoped, tag = 'internal scratch']
  %s0 = inlined_call_operand.vmem [shape: bf16[32,32,8], index: 0, kind: input, shape index: {}]
  %s1 = inlined_call_operand.vmem [shape: bf16[6,3,8,8], index: 1, kind: input, shape index: {}]
  %s2 = inlined_call_operand.vmem [shape: f32[6,1,8], index: 2, kind: input, shape index: {}]
  %s3 = inlined_call_operand.vmem [shape: bf16[4,128,128], index: 3, kind: input, shape index: {}]
  %s4 = inlined_call_operand.vmem [shape: f32[4,1,128], index: 4, kind: input, shape index: {}]
  %s5 = inlined_call_operand.hbm [shape: f32[32,256], index: 5, kind: output, shape index: {}]
  %s6 = sld [smem:[#allocation0]]
  $region94: #{tpu_custom_call.1} parent=0
    _
  %s8 = ssub.s32 1, %s6
  %s9 = scalar_select 0, %s8, %s6
  $region1: #{tpu_custom_call.1} parent=0
    #allocation2 [shape = 'u8[262144]{0}', space=vmem, size = 0x40000, scoped, tag = 'input window, operand 0']
    #allocation3 [shape = 'u8[32768]{0}', space=vmem, size = 0x8000, scoped, tag = 'output window, operand 0']
    #allocation4 [shape = 's32[2]{0}', space=sflag, size = 0x8, scoped, tag = 'scoped memory for tpu_custom_call.1']
    %10 = vsyncpa [#allocation4], 0
    %s11 = scalar_lea.sflag [#allocation4], 1
    %12 = vsyncpa %s11, 0
    loop: start=0, step=1, limit=4
    $region2: #{tpu_custom_call.1} parent=1 // loop_pre_header
      _
    $region3: #{tpu_custom_call.1} parent=1 // loop_header
      %s14 = sphi 0, %s18
      %p15 = scmp.ge.s32.totalorder %s14, 4
      %s24 = sphi 0, %s26
      %s27 = sphi 0, %s24
      %s28 = sphi 0, %s27
      %s44 = sphi 0, %s28
      %s48 = sphi 0, %s48
      %s50 = sphi 0, %s48
      %s51 = sphi 0, %s50
      %s65 = sphi 0, %s51
      %s69 = sphi 0, %s69
      %s71 = sphi 0, %s69
      %s72 = sphi 0, %s71
      %s86 = sphi 0, %s72
      %s90 = sphi 0, %s90
      %s92 = sphi 0, %s90
      %s93 = sphi 0, %s92
      %s107 = sphi 0, %s93
      %s111 = sphi 0, %s111
      %s113 = sphi 0, %s111
      %s114 = sphi 0, %s113
      %s128 = sphi 0, %s114
      %s134 = sphi 0, %s136
      %s137 = sphi 0, %s134
      %s138 = sphi 0, %s137
      %s154 = sphi 0, %s138
    $region4: #{tpu_custom_call.1} parent=1 // loop_header_branch
      %17 = sbr.rel (%p15) target = $region8
    $region5: #{tpu_custom_call.1} parent=1 // loop_body
      %s19 = ssub.s32 %s14, 1
      %s20 = ssub.s32 %s14, 2
      %s21 = sadd.s32 %s14, 1
      %s22 = ssub.s32 %s14, %s21
      %p23 = scmp.eq.s32.totalorder %s22, 0
      %s25 = sadd.s32 %s24, 1
      %s26 = scalar_select %p23, %s24, %s25
      %p29 = pneg %p23
      %p30 = scmp.eq.s32.totalorder %s14, 1
      %p31 = por %p29, %p30
      %p32 = scmp.ne.s32.totalorder %s24, %s27
      %p33 = scmp.eq.s32.totalorder %s14, 0
      %p34 = por %p32, %p33
      %p35 = scmp.ne.s32.totalorder %s24, %s27
      %p36 = scmp.eq.s32.totalorder %s19, 1
      %p37 = por %p35, %p36
      %p38 = scmp.ne.s32.totalorder %s27, %s28
      %p39 = scmp.eq.s32.totalorder %s19, 0
      %p40 = por %p38, %p39
      %p41 = scmp.ne.s32.totalorder %s27, %s28
      %p42 = scmp.eq.s32.totalorder %s20, 1
      %p43 = por %p41, %p42
      %p45 = scmp.ne.s32.totalorder %s28, %s44
      %p46 = scmp.eq.s32.totalorder %s20, 0
      %p47 = por %p45, %p46
      %s49 = sadd.s32 %s48, 1
      %p52 = scmp.eq.s32.totalorder %s14, 1
      %p53 = scmp.ne.s32.totalorder %s48, %s50
      %p54 = scmp.eq.s32.totalorder %s14, 0
      %p55 = por %p53, %p54
      %p56 = scmp.ne.s32.totalorder %s48, %s50
      %p57 = scmp.eq.s32.totalorder %s19, 1
      %p58 = por %p56, %p57
      %p59 = scmp.ne.s32.totalorder %s50, %s51
      %p60 = scmp.eq.s32.totalorder %s19, 0
      %p61 = por %p59, %p60
      %p62 = scmp.ne.s32.totalorder %s50, %s51
      %p63 = scmp.eq.s32.totalorder %s20, 1
      %p64 = por %p62, %p63
      %p66 = scmp.ne.s32.totalorder %s51, %s65
      %p67 = scmp.eq.s32.totalorder %s20, 0
      %p68 = por %p66, %p67
      %s70 = sadd.s32 %s69, 1
      %p73 = scmp.eq.s32.totalorder %s14, 1
      %p74 = scmp.ne.s32.totalorder %s69, %s71
      %p75 = scmp.eq.s32.totalorder %s14, 0
      %p76 = por %p74, %p75
      %p77 = scmp.ne.s32.totalorder %s69, %s71
      %p78 = scmp.eq.s32.totalorder %s19, 1
      %p79 = por %p77, %p78
      %p80 = scmp.ne.s32.totalorder %s71, %s72
      %p81 = scmp.eq.s32.totalorder %s19, 0
      %p82 = por %p80, %p81
      %p83 = scmp.ne.s32.totalorder %s71, %s72
      %p84 = scmp.eq.s32.totalorder %s20, 1
      %p85 = por %p83, %p84
      %p87 = scmp.ne.s32.totalorder %s72, %s86
      %p88 = scmp.eq.s32.totalorder %s20, 0
      %p89 = por %p87, %p88
      %s91 = sadd.s32 %s90, 1
      %p94 = scmp.eq.s32.totalorder %s14, 1
      %p95 = scmp.ne.s32.totalorder %s90, %s92
      %p96 = scmp.eq.s32.totalorder %s14, 0
      %p97 = por %p95, %p96
      %p98 = scmp.ne.s32.totalorder %s90, %s92
      %p99 = scmp.eq.s32.totalorder %s19, 1
      %p100 = por %p98, %p99
      %p101 = scmp.ne.s32.totalorder %s92, %s93
      %p102 = scmp.eq.s32.totalorder %s19, 0
      %p103 = por %p101, %p102
      %p104 = scmp.ne.s32.totalorder %s92, %s93
      %p105 = scmp.eq.s32.totalorder %s20, 1
      %p106 = por %p104, %p105
      %p108 = scmp.ne.s32.totalorder %s93, %s107
      %p109 = scmp.eq.s32.totalorder %s20, 0
      %p110 = por %p108, %p109
      %s112 = sadd.s32 %s111, 1
      %p115 = scmp.eq.s32.totalorder %s14, 1
      %p116 = scmp.ne.s32.totalorder %s111, %s113
      %p117 = scmp.eq.s32.totalorder %s14, 0
      %p118 = por %p116, %p117
      %p119 = scmp.ne.s32.totalorder %s111, %s113
      %p120 = scmp.eq.s32.totalorder %s19, 1
      %p121 = por %p119, %p120
      %p122 = scmp.ne.s32.totalorder %s113, %s114
      %p123 = scmp.eq.s32.totalorder %s19, 0
      %p124 = por %p122, %p123
      %p125 = scmp.ne.s32.totalorder %s113, %s114
      %p126 = scmp.eq.s32.totalorder %s20, 1
      %p127 = por %p125, %p126
      %p129 = scmp.ne.s32.totalorder %s114, %s128
      %p130 = scmp.eq.s32.totalorder %s20, 0
      %p131 = por %p129, %p130
      %s132 = ssub.s32 %s14, %s21
      %p133 = scmp.eq.s32.totalorder %s132, 0
      %s135 = sadd.s32 %s134, 1
      %s136 = scalar_select %p133, %s134, %s135
      %p139 = pneg %p133
      %p140 = scmp.eq.s32.totalorder %s14, 1
      %p141 = por %p139, %p140
      %p142 = scmp.ne.s32.totalorder %s134, %s137
      %p143 = scmp.eq.s32.totalorder %s14, 0
      %p144 = por %p142, %p143
      %p145 = scmp.ne.s32.totalorder %s134, %s137
      %p146 = scmp.eq.s32.totalorder %s19, 1
      %p147 = por %p145, %p146
      %p148 = scmp.ne.s32.totalorder %s137, %s138
      %p149 = scmp.eq.s32.totalorder %s19, 0
      %p150 = por %p148, %p149
      %p151 = scmp.ne.s32.totalorder %s137, %s138
      %p152 = scmp.eq.s32.totalorder %s20, 1
      %p153 = por %p151, %p152
      %p155 = scmp.ne.s32.totalorder %s138, %s154
      %p156 = scmp.eq.s32.totalorder %s20, 0
      %p157 = por %p155, %p156
      %p158 = scmp.le.s32.totalorder 1, %s14
      %p159 = scmp.lt.s32.totalorder %s14, 3
      %p160 = pnand %p158, %p159
      %p161 = pneg %p160
      // Predicated region
      $region9: #{tpu_custom_call.1} parent=5 // pred_check
        _
      $region10: #{tpu_custom_call.1} parent=5 // pred_check_branch
        %163 = sbr.rel (%p160) target = $region12
      $region11: #{tpu_custom_call.1} parent=5 // pred_region
        %s164 = ssub.s32 %s14, 1
        // Predicated region
        $region13: #{tpu_custom_call.1} parent=11 // pred_check
          %p165 = pneg %p61
        $region14: #{tpu_custom_call.1} parent=11 // pred_check_branch
          %167 = sbr.rel (%p165) target = $region16
        $region15: #{tpu_custom_call.1} parent=11 // pred_region
          _
        $region16: #{tpu_custom_call.1} parent=11 // pred_fallthru
          _
        // Predicated region
        $region17: #{tpu_custom_call.1} parent=11 // pred_check
          %p168 = pneg %p82
        $region18: #{tpu_custom_call.1} parent=11 // pred_check_branch
          %170 = sbr.rel (%p168) target = $region20
        $region19: #{tpu_custom_call.1} parent=11 // pred_region
          _
        $region20: #{tpu_custom_call.1} parent=11 // pred_fallthru
          _
        // Predicated region
        $region21: #{tpu_custom_call.1} parent=11 // pred_check
          %p171 = pneg %p103
        $region22: #{tpu_custom_call.1} parent=11 // pred_check_branch
          %173 = sbr.rel (%p171) target = $region24
        $region23: #{tpu_custom_call.1} parent=11 // pred_region
          _
        $region24: #{tpu_custom_call.1} parent=11 // pred_fallthru
          _
        // Predicated region
        $region25: #{tpu_custom_call.1} parent=11 // pred_check
          %p174 = pneg %p124
        $region26: #{tpu_custom_call.1} parent=11 // pred_check_branch
          %176 = sbr.rel (%p174) target = $region28
        $region27: #{tpu_custom_call.1} parent=11 // pred_region
          _
        $region28: #{tpu_custom_call.1} parent=11 // pred_fallthru
          _
      $region12: #{tpu_custom_call.1} parent=5 // pred_fallthru
        _
      %p177 = scmp.lt.s32.totalorder %s14, 2
      // Predicated region
      $region29: #{tpu_custom_call.1} parent=5 // pred_check
        %p178 = pneg %p177
      $region30: #{tpu_custom_call.1} parent=5 // pred_check_branch
        %180 = sbr.rel (%p178) target = $region32
      $region31: #{tpu_custom_call.1} parent=5 // pred_region
        // Predicated region
        $region33: #{tpu_custom_call.1} parent=31 // pred_check
          %p181 = pneg %p34
        $region34: #{tpu_custom_call.1} parent=31 // pred_check_branch
          %183 = sbr.rel (%p181) target = $region36
        $region35: #{tpu_custom_call.1} parent=31 // pred_region
          %s184 = sand.u32 %s24, 1
          %s185 = sand.u32 %s24, 1
          %s186 = smul.addr %s185, 256
          %s187 = scalar_lea.vmem [#allocation2], %s186
          %s188 = smul.u32 2, %s14
          %s189 = smul.addr %s188, 4
          %s190 = scalar_lea.vmem %s0, %s189
          // Predicated region
          $region37: #{tpu_custom_call.1} parent=35 // pred_check
            _
          $region38: #{tpu_custom_call.1} parent=35 // pred_check_branch
            %192 = sbr.rel (0) target = $region40
          $region39: #{tpu_custom_call.1} parent=35 // pred_region
            // Predicated region
            $region41: #{tpu_custom_call.1} parent=39 // pred_check
              _
            $region42: #{tpu_custom_call.1} parent=39 // pred_check_branch
              %194 = sbr.rel target = $region44
            $region43: #{tpu_custom_call.1} parent=39 // pred_region
              // Predicated region
              $region56: #{tpu_custom_call.1} parent=43 // pred_check
                _
              $region57: #{tpu_custom_call.1} parent=43 // pred_check_branch
                %335 = sbr.rel (0) target = $region59
              $region58: #{tpu_custom_call.1} parent=43 // pred_region
                loop: start=0, step=1, limit=1
                $region60: #{tpu_custom_call.1} parent=58 // loop_pre_header
                  _
                $region61: #{tpu_custom_call.1} parent=58 // loop_header
                  %s337 = sphi 0, %s341
                  %p338 = scmp.ge.s32.totalorder %s337, 1
                  %s342 = sphi %s190, %s190
                  %s343 = sphi %s187, %s187
                $region62: #{tpu_custom_call.1} parent=58 // loop_header_branch
                  %340 = sbr.rel (%p338) target = $region66
                $region63: #{tpu_custom_call.1} parent=58 // loop_body
                  _
                $region64: #{tpu_custom_call.1} parent=58 // loop_footer
                  %s341 = sadd.s32 1, %s337
                $region65: #{tpu_custom_call.1} parent=58 // loop_footer_branch
                  %336 = sbr.rel target = $region61
                $region66: #{tpu_custom_call.1} parent=58 // loop_exit
                  _
                loop: start=0, step=1, limit=1
                $region67: #{tpu_custom_call.1} parent=58 // loop_pre_header
                  _
                $region68: #{tpu_custom_call.1} parent=58 // loop_header
                  %s346 = sphi 0, %s350
                  %p347 = scmp.ge.s32.totalorder %s346, 1
                  %s351 = sphi %s190, %s190
                  %s352 = sphi %s187, %s187
                $region69: #{tpu_custom_call.1} parent=58 // loop_header_branch
                  %349 = sbr.rel (%p347) target = $region73
                $region70: #{tpu_custom_call.1} parent=58 // loop_body
                  %v353 = vld [vmem:[%s351] sm:$0xf]
                  %354 = vst [vmem:[%s352] sm:$0xf] %v353
                  %v355 = vld [vmem:[%s351 + $0x4] sm:$0xf]
                  %356 = vst [vmem:[%s352 + $0x4] sm:$0xf] %v355
                  %v357 = vld [vmem:[%s351 + $0x10] sm:$0xf]
                  %358 = vst [vmem:[%s352 + $0x8] sm:$0xf] %v357
                  %v359 = vld [vmem:[%s351 + $0x14] sm:$0xf]
                  %360 = vst [vmem:[%s352 + $0xc] sm:$0xf] %v359
                  %v361 = vld [vmem:[%s351 + $0x20] sm:$0xf]
                  %362 = vst [vmem:[%s352 + $0x10] sm:$0xf] %v361
                  %v363 = vld [vmem:[%s351 + $0x24] sm:$0xf]
                  %364 = vst [vmem:[%s352 + $0x14] sm:$0xf] %v363
                  %v365 = vld [vmem:[%s351 + $0x30] sm:$0xf]
                  %366 = vst [vmem:[%s352 + $0x18] sm:$0xf] %v365
                  %v367 = vld [vmem:[%s351 + $0x34] sm:$0xf]
                  %368 = vst [vmem:[%s352 + $0x1c] sm:$0xf] %v367
                  %v369 = vld [vmem:[%s351 + $0x40] sm:$0xf]
                  %370 = vst [vmem:[%s352 + $0x20] sm:$0xf] %v369
                  %v371 = vld [vmem:[%s351 + $0x44] sm:$0xf]
                  %372 = vst [vmem:[%s352 + $0x24] sm:$0xf] %v371
                  %v373 = vld [vmem:[%s351 + $0x50] sm:$0xf]
                  %374 = vst [vmem:[%s352 + $0x28] sm:$0xf] %v373
                  %v375 = vld [vmem:[%s351 + $0x54] sm:$0xf]
                  %376 = vst [vmem:[%s352 + $0x2c] sm:$0xf] %v375
                  %v377 = vld [vmem:[%s351 + $0x60] sm:$0xf]
                  %378 = vst [vmem:[%s352 + $0x30] sm:$0xf] %v377
                  %v379 = vld [vmem:[%s351 + $0x64] sm:$0xf]
                  %380 = vst [vmem:[%s352 + $0x34] sm:$0xf] %v379
                  %v381 = vld [vmem:[%s351 + $0x70] sm:$0xf]
                  %382 = vst [vmem:[%s352 + $0x38] sm:$0xf] %v381
                  %v383 = vld [vmem:[%s351 + $0x74] sm:$0xf]
                  %384 = vst [vmem:[%s352 + $0x3c] sm:$0xf] %v383
                  %v385 = vld [vmem:[%s351 + $0x80] sm:$0xf]
                  %386 = vst [vmem:[%s352 + $0x40] sm:$0xf] %v385
                  %v387 = vld [vmem:[%s351 + $0x84] sm:$0xf]
                  %388 = vst [vmem:[%s352 + $0x44] sm:$0xf] %v387
                  %v389 = vld [vmem:[%s351 + $0x90] sm:$0xf]
                  %390 = vst [vmem:[%s352 + $0x48] sm:$0xf] %v389
                  %v391 = vld [vmem:[%s351 + $0x94] sm:$0xf]
                  %392 = vst [vmem:[%s352 + $0x4c] sm:$0xf] %v391
                  %v393 = vld [vmem:[%s351 + $0xa0] sm:$0xf]
                  %394 = vst [vmem:[%s352 + $0x50] sm:$0xf] %v393
                  %v395 = vld [vmem:[%s351 + $0xa4] sm:$0xf]
                  %396 = vst [vmem:[%s352 + $0x54] sm:$0xf] %v395
                  %v397 = vld [vmem:[%s351 + $0xb0] sm:$0xf]
                  %398 = vst [vmem:[%s352 + $0x58] sm:$0xf] %v397
                  %v399 = vld [vmem:[%s351 + $0xb4] sm:$0xf]
                  %400 = vst [vmem:[%s352 + $0x5c] sm:$0xf] %v399
                  %v401 = vld [vmem:[%s351 + $0xc0] sm:$0xf]
                  %402 = vst [vmem:[%s352 + $0x60] sm:$0xf] %v401
                  %v403 = vld [vmem:[%s351 + $0xc4] sm:$0xf]
                  %404 = vst [vmem:[%s352 + $0x64] sm:$0xf] %v403
                  %v405 = vld [vmem:[%s351 + $0xd0] sm:$0xf]
                  %406 = vst [vmem:[%s352 + $0x68] sm:$0xf] %v405
                  %v407 = vld [vmem:[%s351 + $0xd4] sm:$0xf]
                  %408 = vst [vmem:[%s352 + $0x6c] sm:$0xf] %v407
                  %v409 = vld [vmem:[%s351 + $0xe0] sm:$0xf]
                  %410 = vst [vmem:[%s352 + $0x70] sm:$0xf] %v409
                  %v411 = vld [vmem:[%s351 + $0xe4] sm:$0xf]
                  %412 = vst [vmem:[%s352 + $0x74] sm:$0xf] %v411
                  %v413 = vld [vmem:[%s351 + $0xf0] sm:$0xf]
                  %414 = vst [vmem:[%s352 + $0x78] sm:$0xf] %v413
                  %v415 = vld [vmem:[%s351 + $0xf4] sm:$0xf]
                  %416 = vst [vmem:[%s352 + $0x7c] sm:$0xf] %v415
                  %v417 = vld [vmem:[%s351 + $0x100] sm:$0xf]
                  %418 = vst [vmem:[%s352 + $0x80] sm:$0xf] %v417
                  %v419 = vld [vmem:[%s351 + $0x104] sm:$0xf]
                  %420 = vst [vmem:[%s352 + $0x84] sm:$0xf] %v419
                  %v421 = vld [vmem:[%s351 + $0x110] sm:$0xf]
                  %422 = vst [vmem:[%s352 + $0x88] sm:$0xf] %v421
                  %v423 = vld [vmem:[%s351 + $0x114] sm:$0xf]
                  %424 = vst [vmem:[%s352 + $0x8c] sm:$0xf] %v423
                  %v425 = vld [vmem:[%s351 + $0x120] sm:$0xf]
                  %426 = vst [vmem:[%s352 + $0x90] sm:$0xf] %v425
                  %v427 = vld [vmem:[%s351 + $0x124] sm:$0xf]
                  %428 = vst [vmem:[%s352 + $0x94] sm:$0xf] %v427
                  %v429 = vld [vmem:[%s351 + $0x130] sm:$0xf]
                  %430 = vst [vmem:[%s352 + $0x98] sm:$0xf] %v429
                  %v431 = vld [vmem:[%s351 + $0x134] sm:$0xf]
                  %432 = vst [vmem:[%s352 + $0x9c] sm:$0xf] %v431
                  %v433 = vld [vmem:[%s351 + $0x140] sm:$0xf]
                  %434 = vst [vmem:[%s352 + $0xa0] sm:$0xf] %v433
                  %v435 = vld [vmem:[%s351 + $0x144] sm:$0xf]
                  %436 = vst [vmem:[%s352 + $0xa4] sm:$0xf] %v435
                  %v437 = vld [vmem:[%s351 + $0x150] sm:$0xf]
                  %438 = vst [vmem:[%s352 + $0xa8] sm:$0xf] %v437
                  %v439 = vld [vmem:[%s351 + $0x154] sm:$0xf]
                  %440 = vst [vmem:[%s352 + $0xac] sm:$0xf] %v439
                  %v441 = vld [vmem:[%s351 + $0x160] sm:$0xf]
                  %442 = vst [vmem:[%s352 + $0xb0] sm:$0xf] %v441
                  %v443 = vld [vmem:[%s351 + $0x164] sm:$0xf]
                  %444 = vst [vmem:[%s352 + $0xb4] sm:$0xf] %v443
                  %v445 = vld [vmem:[%s351 + $0x170] sm:$0xf]
                  %446 = vst [vmem:[%s352 + $0xb8] sm:$0xf] %v445
                  %v447 = vld [vmem:[%s351 + $0x174] sm:$0xf]
                  %448 = vst [vmem:[%s352 + $0xbc] sm:$0xf] %v447
                  %v449 = vld [vmem:[%s351 + $0x180] sm:$0xf]
                  %450 = vst [vmem:[%s352 + $0xc0] sm:$0xf] %v449
                  %v451 = vld [vmem:[%s351 + $0x184] sm:$0xf]
                  %452 = vst [vmem:[%s352 + $0xc4] sm:$0xf] %v451
                  %v453 = vld [vmem:[%s351 + $0x190] sm:$0xf]
                  %454 = vst [vmem:[%s352 + $0xc8] sm:$0xf] %v453
                  %v455 = vld [vmem:[%s351 + $0x194] sm:$0xf]
                  %456 = vst [vmem:[%s352 + $0xcc] sm:$0xf] %v455
                  %v457 = vld [vmem:[%s351 + $0x1a0] sm:$0xf]
                  %458 = vst [vmem:[%s352 + $0xd0] sm:$0xf] %v457
                  %v459 = vld [vmem:[%s351 + $0x1a4] sm:$0xf]
                  %460 = vst [vmem:[%s352 + $0xd4] sm:$0xf] %v459
                  %v461 = vld [vmem:[%s351 + $0x1b0] sm:$0xf]
                  %462 = vst [vmem:[%s352 + $0xd8] sm:$0xf] %v461
                  %v463 = vld [vmem:[%s351 + $0x1b4] sm:$0xf]
                  %464 = vst [vmem:[%s352 + $0xdc] sm:$0xf] %v463
                  %v465 = vld [vmem:[%s351 + $0x1c0] sm:$0xf]
                  %466 = vst [vmem:[%s352 + $0xe0] sm:$0xf] %v465
                  %v467 = vld [vmem:[%s351 + $0x1c4] sm:$0xf]
                  %468 = vst [vmem:[%s352 + $0xe4] sm:$0xf] %v467
                  %v469 = vld [vmem:[%s351 + $0x1d0] sm:$0xf]
                  %470 = vst [vmem:[%s352 + $0xe8] sm:$0xf] %v469
                  %v471 = vld [vmem:[%s351 + $0x1d4] sm:$0xf]
                  %472 = vst [vmem:[%s352 + $0xec] sm:$0xf] %v471
                  %v473 = vld [vmem:[%s351 + $0x1e0] sm:$0xf]
                  %474 = vst [vmem:[%s352 + $0xf0] sm:$0xf] %v473
                  %v475 = vld [vmem:[%s351 + $0x1e4] sm:$0xf]
                  %476 = vst [vmem:[%s352 + $0xf4] sm:$0xf] %v475
                  %v477 = vld [vmem:[%s351 + $0x1f0] sm:$0xf]
                  %478 = vst [vmem:[%s352 + $0xf8] sm:$0xf] %v477
                  %v479 = vld [vmem:[%s351 + $0x1f4] sm:$0xf]
                  %480 = vst [vmem:[%s352 + $0xfc] sm:$0xf] %v479
                $region71: #{tpu_custom_call.1} parent=58 // loop_footer
                  %s350 = sadd.s32 1, %s346
                $region72: #{tpu_custom_call.1} parent=58 // loop_footer_branch
                  %345 = sbr.rel target = $region68
                $region73: #{tpu_custom_call.1} parent=58 // loop_exit
                  _
              $region59: #{tpu_custom_call.1} parent=43 // pred_fallthru
                _
            $region44: #{tpu_custom_call.1} parent=39 // pred_fallthru
              _
            // Predicated region
            $region45: #{tpu_custom_call.1} parent=39 // pred_check
              _
            $region46: #{tpu_custom_call.1} parent=39 // pred_check_branch
              %196 = sbr.rel (0) target = $region48
            $region47: #{tpu_custom_call.1} parent=39 // pred_region
              loop: start=0, step=1, limit=1
              $region49: #{tpu_custom_call.1} parent=47 // loop_pre_header
                _
              $region50: #{tpu_custom_call.1} parent=47 // loop_header
                %s199 = sphi 0, %s203
                %p200 = scmp.ge.s32.totalorder %s199, 1
                %s204 = sphi %s190, %s190
                %s205 = sphi %s187, %s187
              $region51: #{tpu_custom_call.1} parent=47 // loop_header_branch
                %202 = sbr.rel (%p200) target = $region55
              $region52: #{tpu_custom_call.1} parent=47 // loop_body
                %v206 = vld [vmem:[%s204] sm:$0xf]
                %207 = vst [vmem:[%s205] sm:$0xf] %v206
                %v208 = vld [vmem:[%s204 + $0x4] sm:$0xf]
                %209 = vst [vmem:[%s205 + $0x4] sm:$0xf] %v208
                %v210 = vld [vmem:[%s204 + $0x10] sm:$0xf]
                %211 = vst [vmem:[%s205 + $0x8] sm:$0xf] %v210
                %v212 = vld [vmem:[%s204 + $0x14] sm:$0xf]
                %213 = vst [vmem:[%s205 + $0xc] sm:$0xf] %v212
                %v214 = vld [vmem:[%s204 + $0x20] sm:$0xf]
                %215 = vst [vmem:[%s205 + $0x10] sm:$0xf] %v214
                %v216 = vld [vmem:[%s204 + $0x24] sm:$0xf]
                %217 = vst [vmem:[%s205 + $0x14] sm:$0xf] %v216
                %v218 = vld [vmem:[%s204 + $0x30] sm:$0xf]
                %219 = vst [vmem:[%s205 + $0x18] sm:$0xf] %v218
                %v220 = vld [vmem:[%s204 + $0x34] sm:$0xf]
                %221 = vst [vmem:[%s205 + $0x1c] sm:$0xf] %v220
                %v222 = vld [vmem:[%s204 + $0x40] sm:$0xf]
                %223 = vst [vmem:[%s205 + $0x20] sm:$0xf] %v222
                %v224 = vld [vmem:[%s204 + $0x44] sm:$0xf]
                %225 = vst [vmem:[%s205 + $0x24] sm:$0xf] %v224
                %v226 = vld [vmem:[%s204 + $0x50] sm:$0xf]
                %227 = vst [vmem:[%s205 + $0x28] sm:$0xf] %v226
                %v228 = vld [vmem:[%s204 + $0x54] sm:$0xf]
                %229 = vst [vmem:[%s205 + $0x2c] sm:$0xf] %v228
                %v230 = vld [vmem:[%s204 + $0x60] sm:$0xf]
                %231 = vst [vmem:[%s205 + $0x30] sm:$0xf] %v230
                %v232 = vld [vmem:[%s204 + $0x64] sm:$0xf]
                %233 = vst [vmem:[%s205 + $0x34] sm:$0xf] %v232
                %v234 = vld [vmem:[%s204 + $0x70] sm:$0xf]
                %235 = vst [vmem:[%s205 + $0x38] sm:$0xf] %v234
                %v236 = vld [vmem:[%s204 + $0x74] sm:$0xf]
                %237 = vst [vmem:[%s205 + $0x3c] sm:$0xf] %v236
                %v238 = vld [vmem:[%s204 + $0x80] sm:$0xf]
                %239 = vst [vmem:[%s205 + $0x40] sm:$0xf] %v238
                %v240 = vld [vmem:[%s204 + $0x84] sm:$0xf]
                %241 = vst [vmem:[%s205 + $0x44] sm:$0xf] %v240
                %v242 = vld [vmem:[%s204 + $0x90] sm:$0xf]
                %243 = vst [vmem:[%s205 + $0x48] sm:$0xf] %v242
                %v244 = vld [vmem:[%s204 + $0x94] sm:$0xf]
                %245 = vst [vmem:[%s205 + $0x4c] sm:$0xf] %v244
                %v246 = vld [vmem:[%s204 + $0xa0] sm:$0xf]
                %247 = vst [vmem:[%s205 + $0x50] sm:$0xf] %v246
                %v248 = vld [vmem:[%s204 + $0xa4] sm:$0xf]
                %249 = vst [vmem:[%s205 + $0x54] sm:$0xf] %v248
                %v250 = vld [vmem:[%s204 + $0xb0] sm:$0xf]
                %251 = vst [vmem:[%s205 + $0x58] sm:$0xf] %v250
                %v252 = vld [vmem:[%s204 + $0xb4] sm:$0xf]
                %253 = vst [vmem:[%s205 + $0x5c] sm:$0xf] %v252
                %v254 = vld [vmem:[%s204 + $0xc0] sm:$0xf]
                %255 = vst [vmem:[%s205 + $0x60] sm:$0xf] %v254
                %v256 = vld [vmem:[%s204 + $0xc4] sm:$0xf]
                %257 = vst [vmem:[%s205 + $0x64] sm:$0xf] %v256
                %v258 = vld [vmem:[%s204 + $0xd0] sm:$0xf]
                %259 = vst [vmem:[%s205 + $0x68] sm:$0xf] %v258
                %v260 = vld [vmem:[%s204 + $0xd4] sm:$0xf]
                %261 = vst [vmem:[%s205 + $0x6c] sm:$0xf] %v260
                %v262 = vld [vmem:[%s204 + $0xe0] sm:$0xf]
                %263 = vst [vmem:[%s205 + $0x70] sm:$0xf] %v262
                %v264 = vld [vmem:[%s204 + $0xe4] sm:$0xf]
                %265 = vst [vmem:[%s205 + $0x74] sm:$0xf] %v264
                %v266 = vld [vmem:[%s204 + $0xf0] sm:$0xf]
                %267 = vst [vmem:[%s205 + $0x78] sm:$0xf] %v266
                %v268 = vld [vmem:[%s204 + $0xf4] sm:$0xf]
                %269 = vst [vmem:[%s205 + $0x7c] sm:$0xf] %v268
                %v270 = vld [vmem:[%s204 + $0x100] sm:$0xf]
                %271 = vst [vmem:[%s205 + $0x80] sm:$0xf] %v270
                %v272 = vld [vmem:[%s204 + $0x104] sm:$0xf]
                %273 = vst [vmem:[%s205 + $0x84] sm:$0xf] %v272
                %v274 = vld [vmem:[%s204 + $0x110] sm:$0xf]
                %275 = vst [vmem:[%s205 + $0x88] sm:$0xf] %v274
                %v276 = vld [vmem:[%s204 + $0x114] sm:$0xf]
                %277 = vst [vmem:[%s205 + $0x8c] sm:$0xf] %v276
                %v278 = vld [vmem:[%s204 + $0x120] sm:$0xf]
                %279 = vst [vmem:[%s205 + $0x90] sm:$0xf] %v278
                %v280 = vld [vmem:[%s204 + $0x124] sm:$0xf]
                %281 = vst [vmem:[%s205 + $0x94] sm:$0xf] %v280
                %v282 = vld [vmem:[%s204 + $0x130] sm:$0xf]
                %283 = vst [vmem:[%s205 + $0x98] sm:$0xf] %v282
                %v284 = vld [vmem:[%s204 + $0x134] sm:$0xf]
                %285 = vst [vmem:[%s205 + $0x9c] sm:$0xf] %v284
                %v286 = vld [vmem:[%s204 + $0x140] sm:$0xf]
                %287 = vst [vmem:[%s205 + $0xa0] sm:$0xf] %v286
                %v288 = vld [vmem:[%s204 + $0x144] sm:$0xf]
                %289 = vst [vmem:[%s205 + $0xa4] sm:$0xf] %v288
                %v290 = vld [vmem:[%s204 + $0x150] sm:$0xf]
                %291 = vst [vmem:[%s205 + $0xa8] sm:$0xf] %v290
                %v292 = vld [vmem:[%s204 + $0x154] sm:$0xf]
                %293 = vst [vmem:[%s205 + $0xac] sm:$0xf] %v292
                %v294 = vld [vmem:[%s204 + $0x160] sm:$0xf]
                %295 = vst [vmem:[%s205 + $0xb0] sm:$0xf] %v294
                %v296 = vld [vmem:[%s204 + $0x164] sm:$0xf]
                %297 = vst [vmem:[%s205 + $0xb4] sm:$0xf] %v296
                %v298 = vld [vmem:[%s204 + $0x170] sm:$0xf]
                %299 = vst [vmem:[%s205 + $0xb8] sm:$0xf] %v298
                %v300 = vld [vmem:[%s204 + $0x174] sm:$0xf]
                %301 = vst [vmem:[%s205 + $0xbc] sm:$0xf] %v300
                %v302 = vld [vmem:[%s204 + $0x180] sm:$0xf]
                %303 = vst [vmem:[%s205 + $0xc0] sm:$0xf] %v302
                %v304 = vld [vmem:[%s204 + $0x184] sm:$0xf]
                %305 = vst [vmem:[%s205 + $0xc4] sm:$0xf] %v304
                %v306 = vld [vmem:[%s204 + $0x190] sm:$0xf]
                %307 = vst [vmem:[%s205 + $0xc8] sm:$0xf] %v306
                %v308 = vld [vmem:[%s204 + $0x194] sm:$0xf]
                %309 = vst [vmem:[%s205 + $0xcc] sm:$0xf] %v308
                %v310 = vld [vmem:[%s204 + $0x1a0] sm:$0xf]
                %311 = vst [vmem:[%s205 + $0xd0] sm:$0xf] %v310
                %v312 = vld [vmem:[%s204 + $0x1a4] sm:$0xf]
                %313 = vst [vmem:[%s205 + $0xd4] sm:$0xf] %v312
                %v314 = vld [vmem:[%s204 + $0x1b0] sm:$0xf]
                %315 = vst [vmem:[%s205 + $0xd8] sm:$0xf] %v314
                %v316 = vld [vmem:[%s204 + $0x1b4] sm:$0xf]
                %317 = vst [vmem:[%s205 + $0xdc] sm:$0xf] %v316
                %v318 = vld [vmem:[%s204 + $0x1c0] sm:$0xf]
                %319 = vst [vmem:[%s205 + $0xe0] sm:$0xf] %v318
                %v320 = vld [vmem:[%s204 + $0x1c4] sm:$0xf]
                %321 = vst [vmem:[%s205 + $0xe4] sm:$0xf] %v320
                %v322 = vld [vmem:[%s204 + $0x1d0] sm:$0xf]
                %323 = vst [vmem:[%s205 + $0xe8] sm:$0xf] %v322
                %v324 = vld [vmem:[%s204 + $0x1d4] sm:$0xf]
                %325 = vst [vmem:[%s205 + $0xec] sm:$0xf] %v324
                %v326 = vld [vmem:[%s204 + $0x1e0] sm:$0xf]
                %327 = vst [vmem:[%s205 + $0xf0] sm:$0xf] %v326
                %v328 = vld [vmem:[%s204 + $0x1e4] sm:$0xf]
                %329 = vst [vmem:[%s205 + $0xf4] sm:$0xf] %v328
                %v330 = vld [vmem:[%s204 + $0x1f0] sm:$0xf]
                %331 = vst [vmem:[%s205 + $0xf8] sm:$0xf] %v330
                %v332 = vld [vmem:[%s204 + $0x1f4] sm:$0xf]
                %333 = vst [vmem:[%s205 + $0xfc] sm:$0xf] %v332
              $region53: #{tpu_custom_call.1} parent=47 // loop_footer
                %s203 = sadd.s32 1, %s199
              $region54: #{tpu_custom_call.1} parent=47 // loop_footer_branch
                %198 = sbr.rel target = $region50
              $region55: #{tpu_custom_call.1} parent=47 // loop_exit
                _
            $region48: #{tpu_custom_call.1} parent=39 // pred_fallthru
              _
          $region40: #{tpu_custom_call.1} parent=35 // pred_fallthru
            _
          %481 = vnop
        $region36: #{tpu_custom_call.1} parent=31 // pred_fallthru
          _
      $region32: #{tpu_custom_call.1} parent=5 // pred_fallthru
        _
      %p482 = scmp.le.s32.totalorder 1, %s14
      %p483 = scmp.lt.s32.totalorder %s14, 3
      %p484 = pnand %p482, %p483
      %p485 = pneg %p484
      // Predicated region
      $region74: #{tpu_custom_call.1} parent=5 // pred_check
        _
      $region75: #{tpu_custom_call.1} parent=5 // pred_check_branch
        %487 = sbr.rel (%p484) target = $region77
      $region76: #{tpu_custom_call.1} parent=5 // pred_region
        %s488 = ssub.s32 %s14, 1
        %s489 = sand.u32 %s27, 1
        %s490 = sand.u32 %s27, 1
        %s491 = smul.addr %s490, 256
        %s492 = scalar_lea.vmem [#allocation2], %s491
        // Predicated region
        $region78: #{tpu_custom_call.1} parent=76 // pred_check
          %p493 = pneg %p40
        $region79: #{tpu_custom_call.1} parent=76 // pred_check_branch
          %495 = sbr.rel (%p493) target = $region81
        $region80: #{tpu_custom_call.1} parent=76 // pred_region
          _
        $region81: #{tpu_custom_call.1} parent=76 // pred_fallthru
          _
        %s496 = sand.u32 %s27, 1
        %s497 = sand.u32 %s27, 1
        %s498 = smul.addr %s497, 256
        %s499 = scalar_lea.vmem [#allocation2], %s498
        %p500 = pneg %p40
        %p501 = pneg %p37
        %p502 = pneg %p61
        %p503 = pneg %p58
        %p504 = pneg %p82
        %p505 = pneg %p79
        %p506 = pneg %p103
        %p507 = pneg %p100
        %p508 = pneg %p124
        %p509 = pneg %p121
        %p510 = pneg %p150
        %p511 = pneg %p147
        %s512 = sand.u32 %s137, 1
        %s513 = scalar_lea.sflag [#allocation4], %s512
        %s514 = sand.u32 %s137, 1
        %s515 = smul.addr %s514, 32
        %s516 = scalar_lea.vmem [#allocation3], %s515
        %s517 = smul.u32 2, %s19
        %s518 = smul.u32 2, %s19
        %v520 = vld [vmem:[%s492] sm:$0xf]
        %v521 = vld [vmem:[%s492 + $0x4] sm:$0xf]
        %v522 = vld [vmem:[%s492 + $0x8] sm:$0xf]
        %v523 = vld [vmem:[%s492 + $0xc] sm:$0xf]
        %v524 = vld [vmem:[%s492 + $0x10] sm:$0xf]
        %v525 = vld [vmem:[%s492 + $0x14] sm:$0xf]
        %v526 = vld [vmem:[%s492 + $0x18] sm:$0xf]
        %v527 = vld [vmem:[%s492 + $0x1c] sm:$0xf]
        %v528 = vld [vmem:[%s492 + $0x20] sm:$0xf]
        %v529 = vld [vmem:[%s492 + $0x24] sm:$0xf]
        %v530 = vld [vmem:[%s492 + $0x28] sm:$0xf]
        %v531 = vld [vmem:[%s492 + $0x2c] sm:$0xf]
        %v532 = vld [vmem:[%s492 + $0x30] sm:$0xf]
        %v533 = vld [vmem:[%s492 + $0x34] sm:$0xf]
        %v534 = vld [vmem:[%s492 + $0x38] sm:$0xf]
        %v535 = vld [vmem:[%s492 + $0x3c] sm:$0xf]
        %v536 = vld [vmem:[%s492 + $0x40] sm:$0xf]
        %v537 = vld [vmem:[%s492 + $0x44] sm:$0xf]
        %v538 = vld [vmem:[%s492 + $0x48] sm:$0xf]
        %v539 = vld [vmem:[%s492 + $0x4c] sm:$0xf]
        %v540 = vld [vmem:[%s492 + $0x50] sm:$0xf]
        %v541 = vld [vmem:[%s492 + $0x54] sm:$0xf]
        %v542 = vld [vmem:[%s492 + $0x58] sm:$0xf]
        %v543 = vld [vmem:[%s492 + $0x5c] sm:$0xf]
        %v544 = vld [vmem:[%s492 + $0x60] sm:$0xf]
        %v545 = vld [vmem:[%s492 + $0x64] sm:$0xf]
        %v546 = vld [vmem:[%s492 + $0x68] sm:$0xf]
        %v547 = vld [vmem:[%s492 + $0x6c] sm:$0xf]
        %v548 = vld [vmem:[%s492 + $0x70] sm:$0xf]
        %v549 = vld [vmem:[%s492 + $0x74] sm:$0xf]
        %v550 = vld [vmem:[%s492 + $0x78] sm:$0xf]
        %v551 = vld [vmem:[%s492 + $0x7c] sm:$0xf]
        %v552 = vld [vmem:[%s492 + $0x80] sm:$0xf]
        %v553 = vld [vmem:[%s492 + $0x84] sm:$0xf]
        %v554 = vld [vmem:[%s492 + $0x88] sm:$0xf]
        %v555 = vld [vmem:[%s492 + $0x8c] sm:$0xf]
        %v556 = vld [vmem:[%s492 + $0x90] sm:$0xf]
        %v557 = vld [vmem:[%s492 + $0x94] sm:$0xf]
        %v558 = vld [vmem:[%s492 + $0x98] sm:$0xf]
        %v559 = vld [vmem:[%s492 + $0x9c] sm:$0xf]
        %v560 = vld [vmem:[%s492 + $0xa0] sm:$0xf]
        %v561 = vld [vmem:[%s492 + $0xa4] sm:$0xf]
        %v562 = vld [vmem:[%s492 + $0xa8] sm:$0xf]
        %v563 = vld [vmem:[%s492 + $0xac] sm:$0xf]
        %v564 = vld [vmem:[%s492 + $0xb0] sm:$0xf]
        %v565 = vld [vmem:[%s492 + $0xb4] sm:$0xf]
        %v566 = vld [vmem:[%s492 + $0xb8] sm:$0xf]
        %v567 = vld [vmem:[%s492 + $0xbc] sm:$0xf]
        %v568 = vld [vmem:[%s492 + $0xc0] sm:$0xf]
        %v569 = vld [vmem:[%s492 + $0xc4] sm:$0xf]
        %v570 = vld [vmem:[%s492 + $0xc8] sm:$0xf]
        %v571 = vld [vmem:[%s492 + $0xcc] sm:$0xf]
        %v572 = vld [vmem:[%s492 + $0xd0] sm:$0xf]
        %v573 = vld [vmem:[%s492 + $0xd4] sm:$0xf]
        %v574 = vld [vmem:[%s492 + $0xd8] sm:$0xf]
        %v575 = vld [vmem:[%s492 + $0xdc] sm:$0xf]
        %v576 = vld [vmem:[%s492 + $0xe0] sm:$0xf]
        %v577 = vld [vmem:[%s492 + $0xe4] sm:$0xf]
        %v578 = vld [vmem:[%s492 + $0xe8] sm:$0xf]
        %v579 = vld [vmem:[%s492 + $0xec] sm:$0xf]
        %v580 = vld [vmem:[%s492 + $0xf0] sm:$0xf]
        %v581 = vld [vmem:[%s492 + $0xf4] sm:$0xf]
        %v582 = vld [vmem:[%s492 + $0xf8] sm:$0xf]
        %v583 = vld [vmem:[%s492 + $0xfc] sm:$0xf]
        %v648 = vunpack.c.l.b16 %v520
        %v649 = vunpack.c.l.b16 %v521
        %v650 = vunpack.c.l.b16 %v522
        %v651 = vunpack.c.l.b16 %v523
        %v652 = vunpack.c.l.b16 %v524
        %v653 = vunpack.c.l.b16 %v525
        %v654 = vunpack.c.l.b16 %v526
        %v655 = vunpack.c.l.b16 %v527
        %v656 = vunpack.c.l.b16 %v528
        %v657 = vunpack.c.l.b16 %v529
        %v658 = vunpack.c.l.b16 %v530
        %v659 = vunpack.c.l.b16 %v531
        %v660 = vunpack.c.l.b16 %v532
        %v661 = vunpack.c.l.b16 %v533
        %v662 = vunpack.c.l.b16 %v534
        %v663 = vunpack.c.l.b16 %v535
        %v664 = vunpack.c.l.b16 %v536
        %v665 = vunpack.c.l.b16 %v537
        %v666 = vunpack.c.l.b16 %v538
        %v667 = vunpack.c.l.b16 %v539
        %v668 = vunpack.c.l.b16 %v540
        %v669 = vunpack.c.l.b16 %v541
        %v670 = vunpack.c.l.b16 %v542
        %v671 = vunpack.c.l.b16 %v543
        %v672 = vunpack.c.l.b16 %v544
        %v673 = vunpack.c.l.b16 %v545
        %v674 = vunpack.c.l.b16 %v546
        %v675 = vunpack.c.l.b16 %v547
        %v676 = vunpack.c.l.b16 %v548
        %v677 = vunpack.c.l.b16 %v549
        %v678 = vunpack.c.l.b16 %v550
        %v679 = vunpack.c.l.b16 %v551
        %v680 = vunpack.c.l.b16 %v552
        %v681 = vunpack.c.l.b16 %v553
        %v682 = vunpack.c.l.b16 %v554
        %v683 = vunpack.c.l.b16 %v555
        %v684 = vunpack.c.l.b16 %v556
        %v685 = vunpack.c.l.b16 %v557
        %v686 = vunpack.c.l.b16 %v558
        %v687 = vunpack.c.l.b16 %v559
        %v688 = vunpack.c.l.b16 %v560
        %v689 = vunpack.c.l.b16 %v561
        %v690 = vunpack.c.l.b16 %v562
        %v691 = vunpack.c.l.b16 %v563
        %v692 = vunpack.c.l.b16 %v564
        %v693 = vunpack.c.l.b16 %v565
        %v694 = vunpack.c.l.b16 %v566
        %v695 = vunpack.c.l.b16 %v567
        %v696 = vunpack.c.l.b16 %v568
        %v697 = vunpack.c.l.b16 %v569
        %v698 = vunpack.c.l.b16 %v570
        %v699 = vunpack.c.l.b16 %v571
        %v700 = vunpack.c.l.b16 %v572
        %v701 = vunpack.c.l.b16 %v573
        %v702 = vunpack.c.l.b16 %v574
        %v703 = vunpack.c.l.b16 %v575
        %v704 = vunpack.c.l.b16 %v576
        %v705 = vunpack.c.l.b16 %v577
        %v706 = vunpack.c.l.b16 %v578
        %v707 = vunpack.c.l.b16 %v579
        %v708 = vunpack.c.l.b16 %v580
        %v709 = vunpack.c.l.b16 %v581
        %v710 = vunpack.c.l.b16 %v582
        %v711 = vunpack.c.l.b16 %v583
        %v712 = vpack.c.b16 %v649, %v648
        %v713 = vpack.c.b16 %v651, %v650
        %v714 = vpack.c.b16 %v653, %v652
        %v715 = vpack.c.b16 %v655, %v654
        %v716 = vpack.c.b16 %v657, %v656
        %v717 = vpack.c.b16 %v659, %v658
        %v718 = vpack.c.b16 %v661, %v660
        %v719 = vpack.c.b16 %v663, %v662
        %v720 = vpack.c.b16 %v665, %v664
        %v721 = vpack.c.b16 %v667, %v666
        %v722 = vpack.c.b16 %v669, %v668
        %v723 = vpack.c.b16 %v671, %v670
        %v724 = vpack.c.b16 %v673, %v672
        %v725 = vpack.c.b16 %v675, %v674
        %v726 = vpack.c.b16 %v677, %v676
        %v727 = vpack.c.b16 %v679, %v678
        %v728 = vpack.c.b16 %v681, %v680
        %v729 = vpack.c.b16 %v683, %v682
        %v730 = vpack.c.b16 %v685, %v684
        %v731 = vpack.c.b16 %v687, %v686
        %v732 = vpack.c.b16 %v689, %v688
        %v733 = vpack.c.b16 %v691, %v690
        %v734 = vpack.c.b16 %v693, %v692
        %v735 = vpack.c.b16 %v695, %v694
        %v736 = vpack.c.b16 %v697, %v696
        %v737 = vpack.c.b16 %v699, %v698
        %v738 = vpack.c.b16 %v701, %v700
        %v739 = vpack.c.b16 %v703, %v702
        %v740 = vpack.c.b16 %v705, %v704
        %v741 = vpack.c.b16 %v707, %v706
        %v742 = vpack.c.b16 %v709, %v708
        %v743 = vpack.c.b16 %v711, %v710
        %v744 = vld [vmem:[%s1] sm:$0xf]
        %s745 = scalar_lea.vmem %s1, 4
        %v746 = vld [vmem:[%s745] sm:$0xf]
        %vm747 = vcmask 64512
        %v749 = vsel %vm747, %v712, 0
        %v752 = vsel %vm747, %v713, 0
        %v755 = vsel %vm747, %v714, 0
        %v758 = vsel %vm747, %v715, 0
        %v761 = vsel %vm747, %v716, 0
        %v764 = vsel %vm747, %v717, 0
        %v767 = vsel %vm747, %v718, 0
        %v770 = vsel %vm747, %v719, 0
        %v773 = vsel %vm747, %v720, 0
        %v776 = vsel %vm747, %v721, 0
        %v779 = vsel %vm747, %v722, 0
        %v782 = vsel %vm747, %v723, 0
        %v785 = vsel %vm747, %v724, 0
        %v788 = vsel %vm747, %v725, 0
        %v791 = vsel %vm747, %v726, 0
        %v794 = vsel %vm747, %v727, 0
        %v797 = vsel %vm747, %v728, 0
        %v800 = vsel %vm747, %v729, 0
        %v803 = vsel %vm747, %v730, 0
        %v806 = vsel %vm747, %v731, 0
        %v809 = vsel %vm747, %v732, 0
        %v812 = vsel %vm747, %v733, 0
        %v815 = vsel %vm747, %v734, 0
        %v818 = vsel %vm747, %v735, 0
        %v821 = vsel %vm747, %v736, 0
        %v824 = vsel %vm747, %v737, 0
        %v827 = vsel %vm747, %v738, 0
        %v830 = vsel %vm747, %v739, 0
        %v833 = vsel %vm747, %v740, 0
        %v836 = vsel %vm747, %v741, 0
        %v839 = vsel %vm747, %v742, 0
        %v842 = vsel %vm747, %v743, 0
        %vm844 = vcmask 1043456
        %v846 = vsel %vm844, %v746, 0
        %848 = vmatprep.subr.bf16.mxu0 0
        %849 = vmatpush1.bf16.msra.mxu0 %v846
        %850 = vmatprep.subr.bf16.mxu0 0
        %851 = vmatpush1.bf16.msra.mxu0 0
        %852 = vmatprep.subr.bf16.mxu0 0
        %853 = vmatpush1.bf16.msra.mxu0 0
        %854 = vmatprep.subr.bf16.mxu0 0
        %855 = vmatpush1.bf16.msra.mxu0 0
        %856 = vmatprep.subr.bf16.mxu0 0
        %857 = vmatpush1.bf16.msra.mxu0 0
        %858 = vmatprep.subr.bf16.mxu0 0
        %859 = vmatpush1.bf16.msra.mxu0 0
        %860 = vmatprep.subr.bf16.mxu0 0
        %861 = vmatpush1.bf16.msra.mxu0 0
        %862 = vmatprep.subr.bf16.mxu0 0
        %863 = vmatpush1.bf16.msra.mxu0 0
        %864 = vmatprep.subr.bf16.mxu0 0
        %865 = vmatpush1.bf16.msra.mxu0 0
        %866 = vmatprep.subr.bf16.mxu0 0
        %867 = vmatpush1.bf16.msra.mxu0 0
        %868 = vmatprep.subr.bf16.mxu0 0
        %869 = vmatpush1.bf16.msra.mxu0 0
        %870 = vmatprep.subr.bf16.mxu0 0
        %871 = vmatpush1.bf16.msra.mxu0 0
        %872 = vmatprep.subr.bf16.mxu0 0
        %873 = vmatpush1.bf16.msra.mxu0 0
        %874 = vmatprep.subr.bf16.mxu0 0
        %875 = vmatpush1.bf16.msra.mxu0 0
        %876 = vmatprep.subr.bf16.mxu0 0
        %877 = vmatpush1.bf16.msra.mxu0 0
        %878 = vmatprep.subr.bf16.mxu0 0
        %879 = vmatpush1.bf16.msra.mxu0 0
        %880 = vmatprep.mubr.bf16.mxu0 0
        %881 = vmatmul.mubr.bf16.gmra.mrb[0].mxu0 %v749
        %v882 = vpop.f32.mrb[0].mxu0
        %v883 = vadd.f32 0.0, %v882
        %v884 = vpop.f32.mrb[0].mxu0
        %v885 = vpop.f32.mrb[0].mxu0
        %v886 = vadd.f32 0.0, %v885
        %v887 = vpop.f32.mrb[0].mxu0
        %888 = vmatprep.mubr.bf16.mxu0 0
        %889 = vmatmul.mubr.bf16.gmra.mrb[0].mxu0 %v752
        %v890 = vpop.f32.mrb[0].mxu0
        %v891 = vadd.f32 0.0, %v890
        %v892 = vpop.f32.mrb[0].mxu0
        %v893 = vpop.f32.mrb[0].mxu0
        %v894 = vadd.f32 0.0, %v893
        %v895 = vpop.f32.mrb[0].mxu0
        %896 = vmatprep.mubr.bf16.mxu0 0
        %897 = vmatmul.mubr.bf16.gmra.mrb[0].mxu0 %v755
        %v898 = vpop.f32.mrb[0].mxu0
        %v899 = vadd.f32 0.0, %v898
        %v900 = vpop.f32.mrb[0].mxu0
        %v901 = vpop.f32.mrb[0].mxu0
        %v902 = vadd.f32 0.0, %v901
        %v903 = vpop.f32.mrb[0].mxu0
        %904 = vmatprep.mubr.bf16.mxu0 0
        %905 = vmatmul.mubr.bf16.gmra.mrb[0].mxu0 %v758
        %v906 = vpop.f32.mrb[0].mxu0
        %v907 = vadd.f32 0.0, %v906
        %v908 = vpop.f32.mrb[0].mxu0
        %v909 = vpop.f32.mrb[0].mxu0
        %v910 = vadd.f32 0.0, %v909
        %v911 = vpop.f32.mrb[0].mxu0
        %912 = vmatprep.mubr.bf16.mxu0 0
        %913 = vmatmul.mubr.bf16.gmra.mrb[0].mxu0 %v761
        %v914 = vpop.f32.mrb[0].mxu0
        %v915 = vadd.f32 0.0, %v914
        %v916 = vpop.f32.mrb[0].mxu0
        %v917 = vpop.f32.mrb[0].mxu0
        %v918 = vadd.f32 0.0, %v917
        %v919 = vpop.f32.mrb[0].mxu0
        %920 = vmatprep.mubr.bf16.mxu0 0
        %921 = vmatmul.mubr.bf16.gmra.mrb[0].mxu0 %v764
        %v922 = vpop.f32.mrb[0].mxu0
        %v923 = vadd.f32 0.0, %v922
        %v924 = vpop.f32.mrb[0].mxu0
        %v925 = vpop.f32.mrb[0].mxu0
        %v926 = vadd.f32 0.0, %v925
        %v927 = vpop.f32.mrb[0].mxu0
        %928 = vmatprep.mubr.bf16.mxu0 0
        %929 = vmatmul.mubr.bf16.gmra.mrb[0].mxu0 %v767
        %v930 = vpop.f32.mrb[0].mxu0
        %v931 = vadd.f32 0.0, %v930
        %v932 = vpop.f32.mrb[0].mxu0
        %v933 = vpop.f32.mrb[0].mxu0
        %v934 = vadd.f32 0.0, %v933
        %v935 = vpop.f32.mrb[0].mxu0
        %936 = vmatprep.mubr.bf16.mxu0 0
        %937 = vmatmul.mubr.bf16.gmra.mrb[0].mxu0 %v770
        %v938 = vpop.f32.mrb[0].mxu0
        %v939 = vadd.f32 0.0, %v938
        %v940 = vpop.f32.mrb[0].mxu0
        %v941 = vpop.f32.mrb[0].mxu0
        %v942 = vadd.f32 0.0, %v941
        %v943 = vpop.f32.mrb[0].mxu0
        %944 = vmatprep.mubr.bf16.mxu0 0
        %945 = vmatmul.mubr.bf16.gmra.mrb[0].mxu0 %v773
        %v946 = vpop.f32.mrb[0].mxu0
        %v947 = vadd.f32 0.0, %v946
        %v948 = vpop.f32.mrb[0].mxu0
        %v949 = vpop.f32.mrb[0].mxu0
        %v950 = vadd.f32 0.0, %v949
        %v951 = vpop.f32.mrb[0].mxu0
        %952 = vmatprep.mubr.bf16.mxu0 0
        %953 = vmatmul.mubr.bf16.gmra.mrb[0].mxu0 %v776
        %v954 = vpop.f32.mrb[0].mxu0
        %v955 = vadd.f32 0.0, %v954
        %v956 = vpop.f32.mrb[0].mxu0
        %v957 = vpop.f32.mrb[0].mxu0
        %v958 = vadd.f32 0.0, %v957
        %v959 = vpop.f32.mrb[0].mxu0
        %960 = vmatprep.mubr.bf16.mxu0 0
        %961 = vmatmul.mubr.bf16.gmra.mrb[0].mxu0 %v779
        %v962 = vpop.f32.mrb[0].mxu0
        %v963 = vadd.f32 0.0, %v962
        %v964 = vpop.f32.mrb[0].mxu0
        %v965 = vpop.f32.mrb[0].mxu0
        %v966 = vadd.f32 0.0, %v965
        %v967 = vpop.f32.mrb[0].mxu0
        %968 = vmatprep.mubr.bf16.mxu0 0
        %969 = vmatmul.mubr.bf16.gmra.mrb[0].mxu0 %v782
        %v970 = vpop.f32.mrb[0].mxu0
        %v971 = vadd.f32 0.0, %v970
        %v972 = vpop.f32.mrb[0].mxu0
        %v973 = vpop.f32.mrb[0].mxu0
        %v974 = vadd.f32 0.0, %v973
        %v975 = vpop.f32.mrb[0].mxu0
        %976 = vmatprep.mubr.bf16.mxu0 0
        %977 = vmatmul.mubr.bf16.gmra.mrb[0].mxu0 %v785
        %v978 = vpop.f32.mrb[0].mxu0
        %v979 = vadd.f32 0.0, %v978
        %v980 = vpop.f32.mrb[0].mxu0
        %v981 = vpop.f32.mrb[0].mxu0
        %v982 = vadd.f32 0.0, %v981
        %v983 = vpop.f32.mrb[0].mxu0
        %984 = vmatprep.mubr.bf16.mxu0 0
        %985 = vmatmul.mubr.bf16.gmra.mrb[0].mxu0 %v788
        %v986 = vpop.f32.mrb[0].mxu0
        %v987 = vadd.f32 0.0, %v986
        %v988 = vpop.f32.mrb[0].mxu0
        %v989 = vpop.f32.mrb[0].mxu0
        %v990 = vadd.f32 0.0, %v989
        %v991 = vpop.f32.mrb[0].mxu0
        %992 = vmatprep.mubr.bf16.mxu0 0
        %993 = vmatmul.mubr.bf16.gmra.mrb[0].mxu0 %v791
        %v994 = vpop.f32.mrb[0].mxu0
        %v995 = vadd.f32 0.0, %v994
        %v996 = vpop.f32.mrb[0].mxu0
        %v997 = vpop.f32.mrb[0].mxu0
        %v998 = vadd.f32 0.0, %v997
        %v999 = vpop.f32.mrb[0].mxu0
        %1000 = vmatprep.mubr.bf16.mxu0 0
        %1001 = vmatmul.mubr.bf16.gmra.mrb[0].mxu0 %v794
        %v1002 = vpop.f32.mrb[0].mxu0
        %v1003 = vadd.f32 0.0, %v1002
        %v1004 = vpop.f32.mrb[0].mxu0
        %v1005 = vpop.f32.mrb[0].mxu0
        %v1006 = vadd.f32 0.0, %v1005
        %v1007 = vpop.f32.mrb[0].mxu0
        %1008 = vmatprep.mubr.bf16.mxu0 0
        %1009 = vmatmul.mubr.bf16.gmra.mrb[0].mxu0 %v797
        %v1010 = vpop.f32.mrb[0].mxu0
        %v1011 = vadd.f32 0.0, %v1010
        %v1012 = vpop.f32.mrb[0].mxu0
        %v1013 = vpop.f32.mrb[0].mxu0
        %v1014 = vadd.f32 0.0, %v1013
        %v1015 = vpop.f32.mrb[0].mxu0
        %1016 = vmatprep.mubr.bf16.mxu0 0
        %1017 = vmatmul.mubr.bf16.gmra.mrb[0].mxu0 %v800
        %v1018 = vpop.f32.mrb[0].mxu0
        %v1019 = vadd.f32 0.0, %v1018
        %v1020 = vpop.f32.mrb[0].mxu0
        %v1021 = vpop.f32.mrb[0].mxu0
        %v1022 = vadd.f32 0.0, %v1021
        %v1023 = vpop.f32.mrb[0].mxu0
        %1024 = vmatprep.mubr.bf16.mxu0 0
        %1025 = vmatmul.mubr.bf16.gmra.mrb[0].mxu0 %v803
        %v1026 = vpop.f32.mrb[0].mxu0
        %v1027 = vadd.f32 0.0, %v1026
        %v1028 = vpop.f32.mrb[0].mxu0
        %v1029 = vpop.f32.mrb[0].mxu0
        %v1030 = vadd.f32 0.0, %v1029
        %v1031 = vpop.f32.mrb[0].mxu0
        %1032 = vmatprep.mubr.bf16.mxu0 0
        %1033 = vmatmul.mubr.bf16.gmra.mrb[0].mxu0 %v806
        %v1034 = vpop.f32.mrb[0].mxu0
        %v1035 = vadd.f32 0.0, %v1034
        %v1036 = vpop.f32.mrb[0].mxu0
        %v1037 = vpop.f32.mrb[0].mxu0
        %v1038 = vadd.f32 0.0, %v1037
        %v1039 = vpop.f32.mrb[0].mxu0
        %1040 = vmatprep.mubr.bf16.mxu0 0
        %1041 = vmatmul.mubr.bf16.gmra.mrb[0].mxu0 %v809
        %v1042 = vpop.f32.mrb[0].mxu0
        %v1043 = vadd.f32 0.0, %v1042
        %v1044 = vpop.f32.mrb[0].mxu0
        %v1045 = vpop.f32.mrb[0].mxu0
        %v1046 = vadd.f32 0.0, %v1045
        %v1047 = vpop.f32.mrb[0].mxu0
        %1048 = vmatprep.mubr.bf16.mxu0 0
        %1049 = vmatmul.mubr.bf16.gmra.mrb[0].mxu0 %v812
        %v1050 = vpop.f32.mrb[0].mxu0
        %v1051 = vadd.f32 0.0, %v1050
        %v1052 = vpop.f32.mrb[0].mxu0
        %v1053 = vpop.f32.mrb[0].mxu0
        %v1054 = vadd.f32 0.0, %v1053
        %v1055 = vpop.f32.mrb[0].mxu0
        %1056 = vmatprep.mubr.bf16.mxu0 0
        %1057 = vmatmul.mubr.bf16.gmra.mrb[0].mxu0 %v815
        %v1058 = vpop.f32.mrb[0].mxu0
        %v1059 = vadd.f32 0.0, %v1058
        %v1060 = vpop.f32.mrb[0].mxu0
        %v1061 = vpop.f32.mrb[0].mxu0
        %v1062 = vadd.f32 0.0, %v1061
        %v1063 = vpop.f32.mrb[0].mxu0
        %1064 = vmatprep.mubr.bf16.mxu0 0
        %1065 = vmatmul.mubr.bf16.gmra.mrb[0].mxu0 %v818
        %v1066 = vpop.f32.mrb[0].mxu0
        %v1067 = vadd.f32 0.0, %v1066
        %v1068 = vpop.f32.mrb[0].mxu0
        %v1069 = vpop.f32.mrb[0].mxu0
        %v1070 = vadd.f32 0.0, %v1069
        %v1071 = vpop.f32.mrb[0].mxu0
        %1072 = vmatprep.mubr.bf16.mxu0 0
        %1073 = vmatmul.mubr.bf16.gmra.mrb[0].mxu0 %v821
        %v1074 = vpop.f32.mrb[0].mxu0
        %v1075 = vadd.f32 0.0, %v1074
        %v1076 = vpop.f32.mrb[0].mxu0
        %v1077 = vpop.f32.mrb[0].mxu0
        %v1078 = vadd.f32 0.0, %v1077
        %v1079 = vpop.f32.mrb[0].mxu0
        %1080 = vmatprep.mubr.bf16.mxu0 0
        %1081 = vmatmul.mubr.bf16.gmra.mrb[0].mxu0 %v824
        %v1082 = vpop.f32.mrb[0].mxu0
        %v1083 = vadd.f32 0.0, %v1082
        %v1084 = vpop.f32.mrb[0].mxu0
        %v1085 = vpop.f32.mrb[0].mxu0
        %v1086 = vadd.f32 0.0, %v1085
        %v1087 = vpop.f32.mrb[0].mxu0
        %1088 = vmatprep.mubr.bf16.mxu0 0
        %1089 = vmatmul.mubr.bf16.gmra.mrb[0].mxu0 %v827
        %v1090 = vpop.f32.mrb[0].mxu0
        %v1091 = vadd.f32 0.0, %v1090
        %v1092 = vpop.f32.mrb[0].mxu0
        %v1093 = vpop.f32.mrb[0].mxu0
        %v1094 = vadd.f32 0.0, %v1093
        %v1095 = vpop.f32.mrb[0].mxu0
        %1096 = vmatprep.mubr.bf16.mxu0 0
        %1097 = vmatmul.mubr.bf16.gmra.mrb[0].mxu0 %v830
        %v1098 = vpop.f32.mrb[0].mxu0
        %v1099 = vadd.f32 0.0, %v1098
        %v1100 = vpop.f32.mrb[0].mxu0
        %v1101 = vpop.f32.mrb[0].mxu0
        %v1102 = vadd.f32 0.0, %v1101
        %v1103 = vpop.f32.mrb[0].mxu0
        %1104 = vmatprep.mubr.bf16.mxu0 0
        %1105 = vmatmul.mubr.bf16.gmra.mrb[0].mxu0 %v833
        %v1106 = vpop.f32.mrb[0].mxu0
        %v1107 = vadd.f32 0.0, %v1106
        %v1108 = vpop.f32.mrb[0].mxu0
        %v1109 = vpop.f32.mrb[0].mxu0
        %v1110 = vadd.f32 0.0, %v1109
        %v1111 = vpop.f32.mrb[0].mxu0
        %1112 = vmatprep.mubr.bf16.mxu0 0
        %1113 = vmatmul.mubr.bf16.gmra.mrb[0].mxu0 %v836
        %v1114 = vpop.f32.mrb[0].mxu0
        %v1115 = vadd.f32 0.0, %v1114
        %v1116 = vpop.f32.mrb[0].mxu0
        %v1117 = vpop.f32.mrb[0].mxu0
        %v1118 = vadd.f32 0.0, %v1117
        %v1119 = vpop.f32.mrb[0].mxu0
        %1120 = vmatprep.mubr.bf16.mxu0 0
        %1121 = vmatmul.mubr.bf16.gmra.mrb[0].mxu0 %v839
        %v1122 = vpop.f32.mrb[0].mxu0
        %v1123 = vadd.f32 0.0, %v1122
        %v1124 = vpop.f32.mrb[0].mxu0
        %v1125 = vpop.f32.mrb[0].mxu0
        %v1126 = vadd.f32 0.0, %v1125
        %v1127 = vpop.f32.mrb[0].mxu0
        %1128 = vmatprep.mubr.bf16.mxu0 0
        %1129 = vmatmul.mubr.bf16.gmra.mrb[0].mxu0 %v842
        %v1130 = vpop.f32.mrb[0].mxu0
        %v1131 = vadd.f32 0.0, %v1130
        %v1132 = vpop.f32.mrb[0].mxu0
        %v1133 = vpop.f32.mrb[0].mxu0
        %v1134 = vadd.f32 0.0, %v1133
        %v1135 = vpop.f32.mrb[0].mxu0
        %1136 = vdwg.mxu0
        %v1138 = vsel %vm747, 0, 0
        %v1141 = vsel %vm844, %v744, 0
        %1143 = vmatprep.subr.bf16.mxu0 0
        %1144 = vmatpush1.bf16.msra.mxu0 %v1141
        %1145 = vmatprep.subr.bf16.mxu0 0
        %1146 = vmatpush1.bf16.msra.mxu0 0
        %1147 = vmatprep.subr.bf16.mxu0 0
        %1148 = vmatpush1.bf16.msra.mxu0 0
        %1149 = vmatprep.subr.bf16.mxu0 0
        %1150 = vmatpush1.bf16.msra.mxu0 0
        %1151 = vmatprep.subr.bf16.mxu0 0
        %1152 = vmatpush1.bf16.msra.mxu0 0
        %1153 = vmatprep.subr.bf16.mxu0 0
        %1154 = vmatpush1.bf16.msra.mxu0 0
        %1155 = vmatprep.subr.bf16.mxu0 0
        %1156 = vmatpush1.bf16.msra.mxu0 0
        %1157 = vmatprep.subr.bf16.mxu0 0
        %1158 = vmatpush1.bf16.msra.mxu0 0
        %1159 = vmatprep.subr.bf16.mxu0 0
        %1160 = vmatpush1.bf16.msra.mxu0 0
        %1161 = vmatprep.subr.bf16.mxu0 0
        %1162 = vmatpush1.bf16.msra.mxu0 0
        %1163 = vmatprep.subr.bf16.mxu0 0
        %1164 = vmatpush1.bf16.msra.mxu0 0
        %1165 = vmatprep.subr.bf16.mxu0 0
        %1166 = vmatpush1.bf16.msra.mxu0 0
        %1167 = vmatprep.subr.bf16.mxu0 0
        %1168 = vmatpush1.bf16.msra.mxu0 0
        %1169 = vmatprep.subr.bf16.mxu0 0
        %1170 = vmatpush1.bf16.msra.mxu0 0
        %1171 = vmatprep.subr.bf16.mxu0 0
        %1172 = vmatpush1.bf16.msra.mxu0 0
        %1173 = vmatprep.subr.bf16.mxu0 0
        %1174 = vmatpush1.bf16.msra.mxu0 0
        %1175 = vmatprep.mubr.bf16.mxu0 0
        %1176 = vmatmul.mubr.bf16.gmra.mrb[0].mxu0 %v1138
        %v1177 = vpop.f32.mrb[0].mxu0
        %v1178 = vadd.f32 %v883, %v1177
        %v1179 = vpop.f32.mrb[0].mxu0
        %v1180 = vpop.f32.mrb[0].mxu0
        %v1181 = vadd.f32 %v886, %v1180
        %v1182 = vpop.f32.mrb[0].mxu0
        %1183 = vmatprep.mubr.bf16.mxu0 0
        %1184 = vmatmul.mubr.bf16.gmra.mrb[0].mxu0 %v749
        %v1185 = vpop.f32.mrb[0].mxu0
        %v1186 = vadd.f32 %v891, %v1185
        %v1187 = vpop.f32.mrb[0].mxu0
        %v1188 = vpop.f32.mrb[0].mxu0
        %v1189 = vadd.f32 %v894, %v1188
        %v1190 = vpop.f32.mrb[0].mxu0
        %1191 = vmatprep.mubr.bf16.mxu0 0
        %1192 = vmatmul.mubr.bf16.gmra.mrb[0].mxu0 %v752
        %v1193 = vpop.f32.mrb[0].mxu0
        %v1194 = vadd.f32 %v899, %v1193
        %v1195 = vpop.f32.mrb[0].mxu0
        %v1196 = vpop.f32.mrb[0].mxu0
        %v1197 = vadd.f32 %v902, %v1196
        %v1198 = vpop.f32.mrb[0].mxu0
        %1199 = vmatprep.mubr.bf16.mxu0 0
        %1200 = vmatmul.mubr.bf16.gmra.mrb[0].mxu0 %v755
        %v1201 = vpop.f32.mrb[0].mxu0
        %v1202 = vadd.f32 %v907, %v1201
        %v1203 = vpop.f32.mrb[0].mxu0
        %v1204 = vpop.f32.mrb[0].mxu0
        %v1205 = vadd.f32 %v910, %v1204
        %v1206 = vpop.f32.mrb[0].mxu0
        %1207 = vmatprep.mubr.bf16.mxu0 0
        %1208 = vmatmul.mubr.bf16.gmra.mrb[0].mxu0 %v758
        %v1209 = vpop.f32.mrb[0].mxu0
        %v1210 = vadd.f32 %v915, %v1209
        %v1211 = vpop.f32.mrb[0].mxu0
        %v1212 = vpop.f32.mrb[0].mxu0
        %v1213 = vadd.f32 %v918, %v1212
        %v1214 = vpop.f32.mrb[0].mxu0
        %1215 = vmatprep.mubr.bf16.mxu0 0
        %1216 = vmatmul.mubr.bf16.gmra.mrb[0].mxu0 %v761
        %v1217 = vpop.f32.mrb[0].mxu0
        %v1218 = vadd.f32 %v923, %v1217
        %v1219 = vpop.f32.mrb[0].mxu0
        %v1220 = vpop.f32.mrb[0].mxu0
        %v1221 = vadd.f32 %v926, %v1220
        %v1222 = vpop.f32.mrb[0].mxu0
        %1223 = vmatprep.mubr.bf16.mxu0 0
        %1224 = vmatmul.mubr.bf16.gmra.mrb[0].mxu0 %v764
        %v1225 = vpop.f32.mrb[0].mxu0
        %v1226 = vadd.f32 %v931, %v1225
        %v1227 = vpop.f32.mrb[0].mxu0
        %v1228 = vpop.f32.mrb[0].mxu0
        %v1229 = vadd.f32 %v934, %v1228
        %v1230 = vpop.f32.mrb[0].mxu0
        %1231 = vmatprep.mubr.bf16.mxu0 0
        %1232 = vmatmul.mubr.bf16.gmra.mrb[0].mxu0 %v767
        %v1233 = vpop.f32.mrb[0].mxu0
        %v1234 = vadd.f32 %v939, %v1233
        %v1235 = vpop.f32.mrb[0].mxu0
        %v1236 = vpop.f32.mrb[0].mxu0
        %v1237 = vadd.f32 %v942, %v1236
        %v1238 = vpop.f32.mrb[0].mxu0
        %1239 = vmatprep.mubr.bf16.mxu0 0
        %1240 = vmatmul.mubr.bf16.gmra.mrb[0].mxu0 %v770
        %v1241 = vpop.f32.mrb[0].mxu0
        %v1242 = vadd.f32 %v947, %v1241
        %v1243 = vpop.f32.mrb[0].mxu0
        %v1244 = vpop.f32.mrb[0].mxu0
        %v1245 = vadd.f32 %v950, %v1244
        %v1246 = vpop.f32.mrb[0].mxu0
        %1247 = vmatprep.mubr.bf16.mxu0 0
        %1248 = vmatmul.mubr.bf16.gmra.mrb[0].mxu0 %v773
        %v1249 = vpop.f32.mrb[0].mxu0
        %v1250 = vadd.f32 %v955, %v1249
        %v1251 = vpop.f32.mrb[0].mxu0
        %v1252 = vpop.f32.mrb[0].mxu0
        %v1253 = vadd.f32 %v958, %v1252
        %v1254 = vpop.f32.mrb[0].mxu0
        %1255 = vmatprep.mubr.bf16.mxu0 0
        %1256 = vmatmul.mubr.bf16.gmra.mrb[0].mxu0 %v776
        %v1257 = vpop.f32.mrb[0].mxu0
        %v1258 = vadd.f32 %v963, %v1257
        %v1259 = vpop.f32.mrb[0].mxu0
        %v1260 = vpop.f32.mrb[0].mxu0
        %v1261 = vadd.f32 %v966, %v1260
        %v1262 = vpop.f32.mrb[0].mxu0
        %1263 = vmatprep.mubr.bf16.mxu0 0
        %1264 = vmatmul.mubr.bf16.gmra.mrb[0].mxu0 %v779
        %v1265 = vpop.f32.mrb[0].mxu0
        %v1266 = vadd.f32 %v971, %v1265
        %v1267 = vpop.f32.mrb[0].mxu0
        %v1268 = vpop.f32.mrb[0].mxu0
        %v1269 = vadd.f32 %v974, %v1268
        %v1270 = vpop.f32.mrb[0].mxu0
        %1271 = vmatprep.mubr.bf16.mxu0 0
        %1272 = vmatmul.mubr.bf16.gmra.mrb[0].mxu0 %v782
        %v1273 = vpop.f32.mrb[0].mxu0
        %v1274 = vadd.f32 %v979, %v1273
        %v1275 = vpop.f32.mrb[0].mxu0
        %v1276 = vpop.f32.mrb[0].mxu0
        %v1277 = vadd.f32 %v982, %v1276
        %v1278 = vpop.f32.mrb[0].mxu0
        %1279 = vmatprep.mubr.bf16.mxu0 0
        %1280 = vmatmul.mubr.bf16.gmra.mrb[0].mxu0 %v785
        %v1281 = vpop.f32.mrb[0].mxu0
        %v1282 = vadd.f32 %v987, %v1281
        %v1283 = vpop.f32.mrb[0].mxu0
        %v1284 = vpop.f32.mrb[0].mxu0
        %v1285 = vadd.f32 %v990, %v1284
        %v1286 = vpop.f32.mrb[0].mxu0
        %1287 = vmatprep.mubr.bf16.mxu0 0
        %1288 = vmatmul.mubr.bf16.gmra.mrb[0].mxu0 %v788
        %v1289 = vpop.f32.mrb[0].mxu0
        %v1290 = vadd.f32 %v995, %v1289
        %v1291 = vpop.f32.mrb[0].mxu0
        %v1292 = vpop.f32.mrb[0].mxu0
        %v1293 = vadd.f32 %v998, %v1292
        %v1294 = vpop.f32.mrb[0].mxu0
        %1295 = vmatprep.mubr.bf16.mxu0 0
        %1296 = vmatmul.mubr.bf16.gmra.mrb[0].mxu0 %v791
        %v1297 = vpop.f32.mrb[0].mxu0
        %v1298 = vadd.f32 %v1003, %v1297
        %v1299 = vpop.f32.mrb[0].mxu0
        %v1300 = vpop.f32.mrb[0].mxu0
        %v1301 = vadd.f32 %v1006, %v1300
        %v1302 = vpop.f32.mrb[0].mxu0
        %1303 = vmatprep.mubr.bf16.mxu0 0
        %1304 = vmatmul.mubr.bf16.gmra.mrb[0].mxu0 %v794
        %v1305 = vpop.f32.mrb[0].mxu0
        %v1306 = vadd.f32 %v1011, %v1305
        %v1307 = vpop.f32.mrb[0].mxu0
        %v1308 = vpop.f32.mrb[0].mxu0
        %v1309 = vadd.f32 %v1014, %v1308
        %v1310 = vpop.f32.mrb[0].mxu0
        %1311 = vmatprep.mubr.bf16.mxu0 0
        %1312 = vmatmul.mubr.bf16.gmra.mrb[0].mxu0 %v797
        %v1313 = vpop.f32.mrb[0].mxu0
        %v1314 = vadd.f32 %v1019, %v1313
        %v1315 = vpop.f32.mrb[0].mxu0
        %v1316 = vpop.f32.mrb[0].mxu0
        %v1317 = vadd.f32 %v1022, %v1316
        %v1318 = vpop.f32.mrb[0].mxu0
        %1319 = vmatprep.mubr.bf16.mxu0 0
        %1320 = vmatmul.mubr.bf16.gmra.mrb[0].mxu0 %v800
        %v1321 = vpop.f32.mrb[0].mxu0
        %v1322 = vadd.f32 %v1027, %v1321
        %v1323 = vpop.f32.mrb[0].mxu0
        %v1324 = vpop.f32.mrb[0].mxu0
        %v1325 = vadd.f32 %v1030, %v1324
        %v1326 = vpop.f32.mrb[0].mxu0
        %1327 = vmatprep.mubr.bf16.mxu0 0
        %1328 = vmatmul.mubr.bf16.gmra.mrb[0].mxu0 %v803
        %v1329 = vpop.f32.mrb[0].mxu0
        %v1330 = vadd.f32 %v1035, %v1329
        %v1331 = vpop.f32.mrb[0].mxu0
        %v1332 = vpop.f32.mrb[0].mxu0
        %v1333 = vadd.f32 %v1038, %v1332
        %v1334 = vpop.f32.mrb[0].mxu0
        %1335 = vmatprep.mubr.bf16.mxu0 0
        %1336 = vmatmul.mubr.bf16.gmra.mrb[0].mxu0 %v806
        %v1337 = vpop.f32.mrb[0].mxu0
        %v1338 = vadd.f32 %v1043, %v1337
        %v1339 = vpop.f32.mrb[0].mxu0
        %v1340 = vpop.f32.mrb[0].mxu0
        %v1341 = vadd.f32 %v1046, %v1340
        %v1342 = vpop.f32.mrb[0].mxu0
        %1343 = vmatprep.mubr.bf16.mxu0 0
        %1344 = vmatmul.mubr.bf16.gmra.mrb[0].mxu0 %v809
        %v1345 = vpop.f32.mrb[0].mxu0
        %v1346 = vadd.f32 %v1051, %v1345
        %v1347 = vpop.f32.mrb[0].mxu0
        %v1348 = vpop.f32.mrb[0].mxu0
        %v1349 = vadd.f32 %v1054, %v1348
        %v1350 = vpop.f32.mrb[0].mxu0
        %1351 = vmatprep.mubr.bf16.mxu0 0
        %1352 = vmatmul.mubr.bf16.gmra.mrb[0].mxu0 %v812
        %v1353 = vpop.f32.mrb[0].mxu0
        %v1354 = vadd.f32 %v1059, %v1353
        %v1355 = vpop.f32.mrb[0].mxu0
        %v1356 = vpop.f32.mrb[0].mxu0
        %v1357 = vadd.f32 %v1062, %v1356
        %v1358 = vpop.f32.mrb[0].mxu0
        %1359 = vmatprep.mubr.bf16.mxu0 0
        %1360 = vmatmul.mubr.bf16.gmra.mrb[0].mxu0 %v815
        %v1361 = vpop.f32.mrb[0].mxu0
        %v1362 = vadd.f32 %v1067, %v1361
        %v1363 = vpop.f32.mrb[0].mxu0
        %v1364 = vpop.f32.mrb[0].mxu0
        %v1365 = vadd.f32 %v1070, %v1364
        %v1366 = vpop.f32.mrb[0].mxu0
        %1367 = vmatprep.mubr.bf16.mxu0 0
        %1368 = vmatmul.mubr.bf16.gmra.mrb[0].mxu0 %v818
        %v1369 = vpop.f32.mrb[0].mxu0
        %v1370 = vadd.f32 %v1075, %v1369
        %v1371 = vpop.f32.mrb[0].mxu0
        %v1372 = vpop.f32.mrb[0].mxu0
        %v1373 = vadd.f32 %v1078, %v1372
        %v1374 = vpop.f32.mrb[0].mxu0
        %1375 = vmatprep.mubr.bf16.mxu0 0
        %1376 = vmatmul.mubr.bf16.gmra.mrb[0].mxu0 %v821
        %v1377 = vpop.f32.mrb[0].mxu0
        %v1378 = vadd.f32 %v1083, %v1377
        %v1379 = vpop.f32.mrb[0].mxu0
        %v1380 = vpop.f32.mrb[0].mxu0
        %v1381 = vadd.f32 %v1086, %v1380
        %v1382 = vpop.f32.mrb[0].mxu0
        %1383 = vmatprep.mubr.bf16.mxu0 0
        %1384 = vmatmul.mubr.bf16.gmra.mrb[0].mxu0 %v824
        %v1385 = vpop.f32.mrb[0].mxu0
        %v1386 = vadd.f32 %v1091, %v1385
        %v1387 = vpop.f32.mrb[0].mxu0
        %v1388 = vpop.f32.mrb[0].mxu0
        %v1389 = vadd.f32 %v1094, %v1388
        %v1390 = vpop.f32.mrb[0].mxu0
        %1391 = vmatprep.mubr.bf16.mxu0 0
        %1392 = vmatmul.mubr.bf16.gmra.mrb[0].mxu0 %v827
        %v1393 = vpop.f32.mrb[0].mxu0
        %v1394 = vadd.f32 %v1099, %v1393
        %v1395 = vpop.f32.mrb[0].mxu0
        %v1396 = vpop.f32.mrb[0].mxu0
        %v1397 = vadd.f32 %v1102, %v1396
        %v1398 = vpop.f32.mrb[0].mxu0
        %1399 = vmatprep.mubr.bf16.mxu0 0
        %1400 = vmatmul.mubr.bf16.gmra.mrb[0].mxu0 %v830
        %v1401 = vpop.f32.mrb[0].mxu0
        %v1402 = vadd.f32 %v1107, %v1401
        %v1403 = vpop.f32.mrb[0].mxu0
        %v1404 = vpop.f32.mrb[0].mxu0
        %v1405 = vadd.f32 %v1110, %v1404
        %v1406 = vpop.f32.mrb[0].mxu0
        %1407 = vmatprep.mubr.bf16.mxu0 0
        %1408 = vmatmul.mubr.bf16.gmra.mrb[0].mxu0 %v833
        %v1409 = vpop.f32.mrb[0].mxu0
        %v1410 = vadd.f32 %v1115, %v1409
        %v1411 = vpop.f32.mrb[0].mxu0
        %v1412 = vpop.f32.mrb[0].mxu0
        %v1413 = vadd.f32 %v1118, %v1412
        %v1414 = vpop.f32.mrb[0].mxu0
        %1415 = vmatprep.mubr.bf16.mxu0 0
        %1416 = vmatmul.mubr.bf16.gmra.mrb[0].mxu0 %v836
        %v1417 = vpop.f32.mrb[0].mxu0
        %v1418 = vadd.f32 %v1123, %v1417
        %v1419 = vpop.f32.mrb[0].mxu0
        %v1420 = vpop.f32.mrb[0].mxu0
        %v1421 = vadd.f32 %v1126, %v1420
        %v1422 = vpop.f32.mrb[0].mxu0
        %1423 = vmatprep.mubr.bf16.mxu0 0
        %1424 = vmatmul.mubr.bf16.gmra.mrb[0].mxu0 %v839
        %v1425 = vpop.f32.mrb[0].mxu0
        %v1426 = vadd.f32 %v1131, %v1425
        %v1427 = vpop.f32.mrb[0].mxu0
        %v1428 = vpop.f32.mrb[0].mxu0
        %v1429 = vadd.f32 %v1134, %v1428
        %v1430 = vpop.f32.mrb[0].mxu0
        %1431 = vdwg.mxu0
        %s1432 = scalar_lea.vmem %s1, 8
        %v1433 = vld [vmem:[%s1432] sm:$0xf]
        %v1435 = vsel %vm844, %v1433, 0
        %1437 = vmatprep.subr.bf16.mxu0 0
        %1438 = vmatpush1.bf16.msra.mxu0 %v1435
        %1439 = vmatprep.subr.bf16.mxu0 0
        %1440 = vmatpush1.bf16.msra.mxu0 0
        %1441 = vmatprep.subr.bf16.mxu0 0
        %1442 = vmatpush1.bf16.msra.mxu0 0
        %1443 = vmatprep.subr.bf16.mxu0 0
        %1444 = vmatpush1.bf16.msra.mxu0 0
        %1445 = vmatprep.subr.bf16.mxu0 0
        %1446 = vmatpush1.bf16.msra.mxu0 0
        %1447 = vmatprep.subr.bf16.mxu0 0
        %1448 = vmatpush1.bf16.msra.mxu0 0
        %1449 = vmatprep.subr.bf16.mxu0 0
        %1450 = vmatpush1.bf16.msra.mxu0 0
        %1451 = vmatprep.subr.bf16.mxu0 0
        %1452 = vmatpush1.bf16.msra.mxu0 0
        %1453 = vmatprep.subr.bf16.mxu0 0
        %1454 = vmatpush1.bf16.msra.mxu0 0
        %1455 = vmatprep.subr.bf16.mxu0 0
        %1456 = vmatpush1.bf16.msra.mxu0 0
        %1457 = vmatprep.subr.bf16.mxu0 0
        %1458 = vmatpush1.bf16.msra.mxu0 0
        %1459 = vmatprep.subr.bf16.mxu0 0
        %1460 = vmatpush1.bf16.msra.mxu0 0
        %1461 = vmatprep.subr.bf16.mxu0 0
        %1462 = vmatpush1.bf16.msra.mxu0 0
        %1463 = vmatprep.subr.bf16.mxu0 0
        %1464 = vmatpush1.bf16.msra.mxu0 0
        %1465 = vmatprep.subr.bf16.mxu0 0
        %1466 = vmatpush1.bf16.msra.mxu0 0
        %1467 = vmatprep.subr.bf16.mxu0 0
        %1468 = vmatpush1.bf16.msra.mxu0 0
        %1469 = vmatprep.mubr.bf16.mxu0 0
        %1470 = vmatmul.mubr.bf16.gmra.mrb[0].mxu0 %v752
        %v1471 = vpop.f32.mrb[0].mxu0
        %v1472 = vadd.f32 0.0, %v1471
        %v1473 = vpop.f32.mrb[0].mxu0
        %v1474 = vpop.f32.mrb[0].mxu0
        %v1475 = vadd.f32 0.0, %v1474
        %v1476 = vpop.f32.mrb[0].mxu0
        %1477 = vmatprep.mubr.bf16.mxu0 0
        %1478 = vmatmul.mubr.bf16.gmra.mrb[0].mxu0 %v755
        %v1479 = vpop.f32.mrb[0].mxu0
        %v1480 = vadd.f32 0.0, %v1479
        %v1481 = vpop.f32.mrb[0].mxu0
        %v1482 = vpop.f32.mrb[0].mxu0
        %v1483 = vadd.f32 0.0, %v1482
        %v1484 = vpop.f32.mrb[0].mxu0
        %1485 = vmatprep.mubr.bf16.mxu0 0
        %1486 = vmatmul.mubr.bf16.gmra.mrb[0].mxu0 %v758
        %v1487 = vpop.f32.mrb[0].mxu0
        %v1488 = vadd.f32 0.0, %v1487
        %v1489 = vpop.f32.mrb[0].mxu0
        %v1490 = vpop.f32.mrb[0].mxu0
        %v1491 = vadd.f32 0.0, %v1490
        %v1492 = vpop.f32.mrb[0].mxu0
        %1493 = vmatprep.mubr.bf16.mxu0 0
        %1494 = vmatmul.mubr.bf16.gmra.mrb[0].mxu0 %v761
        %v1495 = vpop.f32.mrb[0].mxu0
        %v1496 = vadd.f32 0.0, %v1495
        %v1497 = vpop.f32.mrb[0].mxu0
        %v1498 = vpop.f32.mrb[0].mxu0
        %v1499 = vadd.f32 0.0, %v1498
        %v1500 = vpop.f32.mrb[0].mxu0
        %1501 = vmatprep.mubr.bf16.mxu0 0
        %1502 = vmatmul.mubr.bf16.gmra.mrb[0].mxu0 %v764
        %v1503 = vpop.f32.mrb[0].mxu0
        %v1504 = vadd.f32 0.0, %v1503
        %v1505 = vpop.f32.mrb[0].mxu0
        %v1506 = vpop.f32.mrb[0].mxu0
        %v1507 = vadd.f32 0.0, %v1506
        %v1508 = vpop.f32.mrb[0].mxu0
        %1509 = vmatprep.mubr.bf16.mxu0 0
        %1510 = vmatmul.mubr.bf16.gmra.mrb[0].mxu0 %v767
        %v1511 = vpop.f32.mrb[0].mxu0
        %v1512 = vadd.f32 0.0, %v1511
        %v1513 = vpop.f32.mrb[0].mxu0
        %v1514 = vpop.f32.mrb[0].mxu0
        %v1515 = vadd.f32 0.0, %v1514
        %v1516 = vpop.f32.mrb[0].mxu0
        %1517 = vmatprep.mubr.bf16.mxu0 0
        %1518 = vmatmul.mubr.bf16.gmra.mrb[0].mxu0 %v770
        %v1519 = vpop.f32.mrb[0].mxu0
        %v1520 = vadd.f32 0.0, %v1519
        %v1521 = vpop.f32.mrb[0].mxu0
        %v1522 = vpop.f32.mrb[0].mxu0
        %v1523 = vadd.f32 0.0, %v1522
        %v1524 = vpop.f32.mrb[0].mxu0
        %1525 = vmatprep.mubr.bf16.mxu0 0
        %1526 = vmatmul.mubr.bf16.gmra.mrb[0].mxu0 %v773
        %v1527 = vpop.f32.mrb[0].mxu0
        %v1528 = vadd.f32 0.0, %v1527
        %v1529 = vpop.f32.mrb[0].mxu0
        %v1530 = vpop.f32.mrb[0].mxu0
        %v1531 = vadd.f32 0.0, %v1530
        %v1532 = vpop.f32.mrb[0].mxu0
        %1533 = vmatprep.mubr.bf16.mxu0 0
        %1534 = vmatmul.mubr.bf16.gmra.mrb[0].mxu0 %v776
        %v1535 = vpop.f32.mrb[0].mxu0
        %v1536 = vadd.f32 0.0, %v1535
        %v1537 = vpop.f32.mrb[0].mxu0
        %v1538 = vpop.f32.mrb[0].mxu0
        %v1539 = vadd.f32 0.0, %v1538
        %v1540 = vpop.f32.mrb[0].mxu0
        %1541 = vmatprep.mubr.bf16.mxu0 0
        %1542 = vmatmul.mubr.bf16.gmra.mrb[0].mxu0 %v779
        %v1543 = vpop.f32.mrb[0].mxu0
        %v1544 = vadd.f32 0.0, %v1543
        %v1545 = vpop.f32.mrb[0].mxu0
        %v1546 = vpop.f32.mrb[0].mxu0
        %v1547 = vadd.f32 0.0, %v1546
        %v1548 = vpop.f32.mrb[0].mxu0
        %1549 = vmatprep.mubr.bf16.mxu0 0
        %1550 = vmatmul.mubr.bf16.gmra.mrb[0].mxu0 %v782
        %v1551 = vpop.f32.mrb[0].mxu0
        %v1552 = vadd.f32 0.0, %v1551
        %v1553 = vpop.f32.mrb[0].mxu0
        %v1554 = vpop.f32.mrb[0].mxu0
        %v1555 = vadd.f32 0.0, %v1554
        %v1556 = vpop.f32.mrb[0].mxu0
        %1557 = vmatprep.mubr.bf16.mxu0 0
        %1558 = vmatmul.mubr.bf16.gmra.mrb[0].mxu0 %v785
        %v1559 = vpop.f32.mrb[0].mxu0
        %v1560 = vadd.f32 0.0, %v1559
        %v1561 = vpop.f32.mrb[0].mxu0
        %v1562 = vpop.f32.mrb[0].mxu0
        %v1563 = vadd.f32 0.0, %v1562
        %v1564 = vpop.f32.mrb[0].mxu0
        %1565 = vmatprep.mubr.bf16.mxu0 0
        %1566 = vmatmul.mubr.bf16.gmra.mrb[0].mxu0 %v788
        %v1567 = vpop.f32.mrb[0].mxu0
        %v1568 = vadd.f32 0.0, %v1567
        %v1569 = vpop.f32.mrb[0].mxu0
        %v1570 = vpop.f32.mrb[0].mxu0
        %v1571 = vadd.f32 0.0, %v1570
        %v1572 = vpop.f32.mrb[0].mxu0
        %1573 = vmatprep.mubr.bf16.mxu0 0
        %1574 = vmatmul.mubr.bf16.gmra.mrb[0].mxu0 %v791
        %v1575 = vpop.f32.mrb[0].mxu0
        %v1576 = vadd.f32 0.0, %v1575
        %v1577 = vpop.f32.mrb[0].mxu0
        %v1578 = vpop.f32.mrb[0].mxu0
        %v1579 = vadd.f32 0.0, %v1578
        %v1580 = vpop.f32.mrb[0].mxu0
        %1581 = vmatprep.mubr.bf16.mxu0 0
        %1582 = vmatmul.mubr.bf16.gmra.mrb[0].mxu0 %v794
        %v1583 = vpop.f32.mrb[0].mxu0
        %v1584 = vadd.f32 0.0, %v1583
        %v1585 = vpop.f32.mrb[0].mxu0
        %v1586 = vpop.f32.mrb[0].mxu0
        %v1587 = vadd.f32 0.0, %v1586
        %v1588 = vpop.f32.mrb[0].mxu0
        %1589 = vmatprep.mubr.bf16.mxu0 0
        %1590 = vmatmul.mubr.bf16.gmra.mrb[0].mxu0 %v797
        %v1591 = vpop.f32.mrb[0].mxu0
        %v1592 = vadd.f32 0.0, %v1591
        %v1593 = vpop.f32.mrb[0].mxu0
        %v1594 = vpop.f32.mrb[0].mxu0
        %v1595 = vadd.f32 0.0, %v1594
        %v1596 = vpop.f32.mrb[0].mxu0
        %1597 = vmatprep.mubr.bf16.mxu0 0
        %1598 = vmatmul.mubr.bf16.gmra.mrb[0].mxu0 %v800
        %v1599 = vpop.f32.mrb[0].mxu0
        %v1600 = vadd.f32 0.0, %v1599
        %v1601 = vpop.f32.mrb[0].mxu0
        %v1602 = vpop.f32.mrb[0].mxu0
        %v1603 = vadd.f32 0.0, %v1602
        %v1604 = vpop.f32.mrb[0].mxu0
        %1605 = vmatprep.mubr.bf16.mxu0 0
        %1606 = vmatmul.mubr.bf16.gmra.mrb[0].mxu0 %v803
        %v1607 = vpop.f32.mrb[0].mxu0
        %v1608 = vadd.f32 0.0, %v1607
        %v1609 = vpop.f32.mrb[0].mxu0
        %v1610 = vpop.f32.mrb[0].mxu0
        %v1611 = vadd.f32 0.0, %v1610
        %v1612 = vpop.f32.mrb[0].mxu0
        %1613 = vmatprep.mubr.bf16.mxu0 0
        %1614 = vmatmul.mubr.bf16.gmra.mrb[0].mxu0 %v806
        %v1615 = vpop.f32.mrb[0].mxu0
        %v1616 = vadd.f32 0.0, %v1615
        %v1617 = vpop.f32.mrb[0].mxu0
        %v1618 = vpop.f32.mrb[0].mxu0
        %v1619 = vadd.f32 0.0, %v1618
        %v1620 = vpop.f32.mrb[0].mxu0
        %1621 = vmatprep.mubr.bf16.mxu0 0
        %1622 = vmatmul.mubr.bf16.gmra.mrb[0].mxu0 %v809
        %v1623 = vpop.f32.mrb[0].mxu0
        %v1624 = vadd.f32 0.0, %v1623
        %v1625 = vpop.f32.mrb[0].mxu0
        %v1626 = vpop.f32.mrb[0].mxu0
        %v1627 = vadd.f32 0.0, %v1626
        %v1628 = vpop.f32.mrb[0].mxu0
        %1629 = vmatprep.mubr.bf16.mxu0 0
        %1630 = vmatmul.mubr.bf16.gmra.mrb[0].mxu0 %v812
        %v1631 = vpop.f32.mrb[0].mxu0
        %v1632 = vadd.f32 0.0, %v1631
        %v1633 = vpop.f32.mrb[0].mxu0
        %v1634 = vpop.f32.mrb[0].mxu0
        %v1635 = vadd.f32 0.0, %v1634
        %v1636 = vpop.f32.mrb[0].mxu0
        %1637 = vmatprep.mubr.bf16.mxu0 0
        %1638 = vmatmul.mubr.bf16.gmra.mrb[0].mxu0 %v815
        %v1639 = vpop.f32.mrb[0].mxu0
        %v1640 = vadd.f32 0.0, %v1639
        %v1641 = vpop.f32.mrb[0].mxu0
        %v1642 = vpop.f32.mrb[0].mxu0
        %v1643 = vadd.f32 0.0, %v1642
        %v1644 = vpop.f32.mrb[0].mxu0
        %1645 = vmatprep.mubr.bf16.mxu0 0
        %1646 = vmatmul.mubr.bf16.gmra.mrb[0].mxu0 %v818
        %v1647 = vpop.f32.mrb[0].mxu0
        %v1648 = vadd.f32 0.0, %v1647
        %v1649 = vpop.f32.mrb[0].mxu0
        %v1650 = vpop.f32.mrb[0].mxu0
        %v1651 = vadd.f32 0.0, %v1650
        %v1652 = vpop.f32.mrb[0].mxu0
        %1653 = vmatprep.mubr.bf16.mxu0 0
        %1654 = vmatmul.mubr.bf16.gmra.mrb[0].mxu0 %v821
        %v1655 = vpop.f32.mrb[0].mxu0
        %v1656 = vadd.f32 0.0, %v1655
        %v1657 = vpop.f32.mrb[0].mxu0
        %v1658 = vpop.f32.mrb[0].mxu0
        %v1659 = vadd.f32 0.0, %v1658
        %v1660 = vpop.f32.mrb[0].mxu0
        %1661 = vmatprep.mubr.bf16.mxu0 0
        %1662 = vmatmul.mubr.bf16.gmra.mrb[0].mxu0 %v824
        %v1663 = vpop.f32.mrb[0].mxu0
        %v1664 = vadd.f32 0.0, %v1663
        %v1665 = vpop.f32.mrb[0].mxu0
        %v1666 = vpop.f32.mrb[0].mxu0
        %v1667 = vadd.f32 0.0, %v1666
        %v1668 = vpop.f32.mrb[0].mxu0
        %1669 = vmatprep.mubr.bf16.mxu0 0
        %1670 = vmatmul.mubr.bf16.gmra.mrb[0].mxu0 %v827
        %v1671 = vpop.f32.mrb[0].mxu0
        %v1672 = vadd.f32 0.0, %v1671
        %v1673 = vpop.f32.mrb[0].mxu0
        %v1674 = vpop.f32.mrb[0].mxu0
        %v1675 = vadd.f32 0.0, %v1674
        %v1676 = vpop.f32.mrb[0].mxu0
        %1677 = vmatprep.mubr.bf16.mxu0 0
        %1678 = vmatmul.mubr.bf16.gmra.mrb[0].mxu0 %v830
        %v1679 = vpop.f32.mrb[0].mxu0
        %v1680 = vadd.f32 0.0, %v1679
        %v1681 = vpop.f32.mrb[0].mxu0
        %v1682 = vpop.f32.mrb[0].mxu0
        %v1683 = vadd.f32 0.0, %v1682
        %v1684 = vpop.f32.mrb[0].mxu0
        %1685 = vmatprep.mubr.bf16.mxu0 0
        %1686 = vmatmul.mubr.bf16.gmra.mrb[0].mxu0 %v833
        %v1687 = vpop.f32.mrb[0].mxu0
        %v1688 = vadd.f32 0.0, %v1687
        %v1689 = vpop.f32.mrb[0].mxu0
        %v1690 = vpop.f32.mrb[0].mxu0
        %v1691 = vadd.f32 0.0, %v1690
        %v1692 = vpop.f32.mrb[0].mxu0
        %1693 = vmatprep.mubr.bf16.mxu0 0
        %1694 = vmatmul.mubr.bf16.gmra.mrb[0].mxu0 %v836
        %v1695 = vpop.f32.mrb[0].mxu0
        %v1696 = vadd.f32 0.0, %v1695
        %v1697 = vpop.f32.mrb[0].mxu0
        %v1698 = vpop.f32.mrb[0].mxu0
        %v1699 = vadd.f32 0.0, %v1698
        %v1700 = vpop.f32.mrb[0].mxu0
        %1701 = vmatprep.mubr.bf16.mxu0 0
        %1702 = vmatmul.mubr.bf16.gmra.mrb[0].mxu0 %v839
        %v1703 = vpop.f32.mrb[0].mxu0
        %v1704 = vadd.f32 0.0, %v1703
        %v1705 = vpop.f32.mrb[0].mxu0
        %v1706 = vpop.f32.mrb[0].mxu0
        %v1707 = vadd.f32 0.0, %v1706
        %v1708 = vpop.f32.mrb[0].mxu0
        %1709 = vmatprep.mubr.bf16.mxu0 0
        %1710 = vmatmul.mubr.bf16.gmra.mrb[0].mxu0 %v842
        %v1711 = vpop.f32.mrb[0].mxu0
        %v1712 = vadd.f32 0.0, %v1711
        %v1713 = vpop.f32.mrb[0].mxu0
        %v1714 = vpop.f32.mrb[0].mxu0
        %v1715 = vadd.f32 0.0, %v1714
        %v1716 = vpop.f32.mrb[0].mxu0
        %1717 = vmatprep.mubr.bf16.mxu0 0
        %1718 = vmatmul.mubr.bf16.gmra.mrb[0].mxu0 %v1138
        %v1719 = vpop.f32.mrb[0].mxu0
        %v1720 = vadd.f32 0.0, %v1719
        %v1721 = vpop.f32.mrb[0].mxu0
        %v1722 = vpop.f32.mrb[0].mxu0
        %v1723 = vadd.f32 0.0, %v1722
        %v1724 = vpop.f32.mrb[0].mxu0
        %1725 = vdwg.mxu0
        %v1726 = vadd.f32 %v1178, %v1472
        %v1727 = vadd.f32 %v1181, %v1475
        %v1728 = vadd.f32 %v1186, %v1480
        %v1729 = vadd.f32 %v1189, %v1483
        %v1730 = vadd.f32 %v1194, %v1488
        %v1731 = vadd.f32 %v1197, %v1491
        %v1732 = vadd.f32 %v1202, %v1496
        %v1733 = vadd.f32 %v1205, %v1499
        %v1734 = vadd.f32 %v1210, %v1504
        %v1735 = vadd.f32 %v1213, %v1507
        %v1736 = vadd.f32 %v1218, %v1512
        %v1737 = vadd.f32 %v1221, %v1515
        %v1738 = vadd.f32 %v1226, %v1520
        %v1739 = vadd.f32 %v1229, %v1523
        %v1740 = vadd.f32 %v1234, %v1528
        %v1741 = vadd.f32 %v1237, %v1531
        %v1742 = vadd.f32 %v1242, %v1536
        %v1743 = vadd.f32 %v1245, %v1539
        %v1744 = vadd.f32 %v1250, %v1544
        %v1745 = vadd.f32 %v1253, %v1547
        %v1746 = vadd.f32 %v1258, %v1552
        %v1747 = vadd.f32 %v1261, %v1555
        %v1748 = vadd.f32 %v1266, %v1560
        %v1749 = vadd.f32 %v1269, %v1563
        %v1750 = vadd.f32 %v1274, %v1568
        %v1751 = vadd.f32 %v1277, %v1571
        %v1752 = vadd.f32 %v1282, %v1576
        %v1753 = vadd.f32 %v1285, %v1579
        %v1754 = vadd.f32 %v1290, %v1584
        %v1755 = vadd.f32 %v1293, %v1587
        %v1756 = vadd.f32 %v1298, %v1592
        %v1757 = vadd.f32 %v1301, %v1595
        %v1758 = vadd.f32 %v1306, %v1600
        %v1759 = vadd.f32 %v1309, %v1603
        %v1760 = vadd.f32 %v1314, %v1608
        %v1761 = vadd.f32 %v1317, %v1611
        %v1762 = vadd.f32 %v1322, %v1616
        %v1763 = vadd.f32 %v1325, %v1619
        %v1764 = vadd.f32 %v1330, %v1624
        %v1765 = vadd.f32 %v1333, %v1627
        %v1766 = vadd.f32 %v1338, %v1632
        %v1767 = vadd.f32 %v1341, %v1635
        %v1768 = vadd.f32 %v1346, %v1640
        %v1769 = vadd.f32 %v1349, %v1643
        %v1770 = vadd.f32 %v1354, %v1648
        %v1771 = vadd.f32 %v1357, %v1651
        %v1772 = vadd.f32 %v1362, %v1656
        %v1773 = vadd.f32 %v1365, %v1659
        %v1774 = vadd.f32 %v1370, %v1664
        %v1775 = vadd.f32 %v1373, %v1667
        %v1776 = vadd.f32 %v1378, %v1672
        %v1777 = vadd.f32 %v1381, %v1675
        %v1778 = vadd.f32 %v1386, %v1680
        %v1779 = vadd.f32 %v1389, %v1683
        %v1780 = vadd.f32 %v1394, %v1688
        %v1781 = vadd.f32 %v1397, %v1691
        %v1782 = vadd.f32 %v1402, %v1696
        %v1783 = vadd.f32 %v1405, %v1699
        %v1784 = vadd.f32 %v1410, %v1704
        %v1785 = vadd.f32 %v1413, %v1707
        %v1786 = vadd.f32 %v1418, %v1712
        %v1787 = vadd.f32 %v1421, %v1715
        %v1788 = vadd.f32 %v1426, %v1720
        %v1789 = vadd.f32 %v1429, %v1723
        %v1790 = vld [vmem:[%s2] sm:$0x1]
        %v1792 = vlaneseq
        %v1793 = vshrl.u32 %v1792, 7
        %v1794 = vsub.s32 0, %v1793
        %v1795 = vrot.slane %v1790, %v1794
        %v1797 = vadd.f32 %v1726, %v1795
        %v1798 = vadd.f32 %v1727, %v1795
        %v1799 = vadd.f32 %v1728, %v1795
        %v1800 = vadd.f32 %v1729, %v1795
        %v1801 = vadd.f32 %v1730, %v1795
        %v1802 = vadd.f32 %v1731, %v1795
        %v1803 = vadd.f32 %v1732, %v1795
        %v1804 = vadd.f32 %v1733, %v1795
        %v1805 = vadd.f32 %v1734, %v1795
        %v1806 = vadd.f32 %v1735, %v1795
        %v1807 = vadd.f32 %v1736, %v1795
        %v1808 = vadd.f32 %v1737, %v1795
        %v1809 = vadd.f32 %v1738, %v1795
        %v1810 = vadd.f32 %v1739, %v1795
        %v1811 = vadd.f32 %v1740, %v1795
        %v1812 = vadd.f32 %v1741, %v1795
        %v1813 = vadd.f32 %v1742, %v1795
        %v1814 = vadd.f32 %v1743, %v1795
        %v1815 = vadd.f32 %v1744, %v1795
        %v1816 = vadd.f32 %v1745, %v1795
        %v1817 = vadd.f32 %v1746, %v1795
        %v1818 = vadd.f32 %v1747, %v1795
        %v1819 = vadd.f32 %v1748, %v1795
        %v1820 = vadd.f32 %v1749, %v1795
        %v1821 = vadd.f32 %v1750, %v1795
        %v1822 = vadd.f32 %v1751, %v1795
        %v1823 = vadd.f32 %v1752, %v1795
        %v1824 = vadd.f32 %v1753, %v1795
        %v1825 = vadd.f32 %v1754, %v1795
        %v1826 = vadd.f32 %v1755, %v1795
        %v1827 = vadd.f32 %v1756, %v1795
        %v1828 = vadd.f32 %v1757, %v1795
        %v1829 = vadd.f32 %v1758, %v1795
        %v1830 = vadd.f32 %v1759, %v1795
        %v1831 = vadd.f32 %v1760, %v1795
        %v1832 = vadd.f32 %v1761, %v1795
        %v1833 = vadd.f32 %v1762, %v1795
        %v1834 = vadd.f32 %v1763, %v1795
        %v1835 = vadd.f32 %v1764, %v1795
        %v1836 = vadd.f32 %v1765, %v1795
        %v1837 = vadd.f32 %v1766, %v1795
        %v1838 = vadd.f32 %v1767, %v1795
        %v1839 = vadd.f32 %v1768, %v1795
        %v1840 = vadd.f32 %v1769, %v1795
        %v1841 = vadd.f32 %v1770, %v1795
        %v1842 = vadd.f32 %v1771, %v1795
        %v1843 = vadd.f32 %v1772, %v1795
        %v1844 = vadd.f32 %v1773, %v1795
        %v1845 = vadd.f32 %v1774, %v1795
        %v1846 = vadd.f32 %v1775, %v1795
        %v1847 = vadd.f32 %v1776, %v1795
        %v1848 = vadd.f32 %v1777, %v1795
        %v1849 = vadd.f32 %v1778, %v1795
        %v1850 = vadd.f32 %v1779, %v1795
        %v1851 = vadd.f32 %v1780, %v1795
        %v1852 = vadd.f32 %v1781, %v1795
        %v1853 = vadd.f32 %v1782, %v1795
        %v1854 = vadd.f32 %v1783, %v1795
        %v1855 = vadd.f32 %v1784, %v1795
        %v1856 = vadd.f32 %v1785, %v1795
        %v1857 = vadd.f32 %v1786, %v1795
        %v1858 = vadd.f32 %v1787, %v1795
        %v1859 = vadd.f32 %v1788, %v1795
        %v1860 = vadd.f32 %v1789, %v1795
        %v1861 = vmax.f32 %v1797, 0.0
        %v1862 = vmax.f32 %v1798, 0.0
        %v1863 = vmax.f32 %v1799, 0.0
        %v1864 = vmax.f32 %v1800, 0.0
        %v1865 = vmax.f32 %v1801, 0.0
        %v1866 = vmax.f32 %v1802, 0.0
        %v1867 = vmax.f32 %v1803, 0.0
        %v1868 = vmax.f32 %v1804, 0.0
        %v1869 = vmax.f32 %v1805, 0.0
        %v1870 = vmax.f32 %v1806, 0.0
        %v1871 = vmax.f32 %v1807, 0.0
        %v1872 = vmax.f32 %v1808, 0.0
        %v1873 = vmax.f32 %v1809, 0.0
        %v1874 = vmax.f32 %v1810, 0.0
        %v1875 = vmax.f32 %v1811, 0.0
        %v1876 = vmax.f32 %v1812, 0.0
        %v1877 = vmax.f32 %v1813, 0.0
        %v1878 = vmax.f32 %v1814, 0.0
        %v1879 = vmax.f32 %v1815, 0.0
        %v1880 = vmax.f32 %v1816, 0.0
        %v1881 = vmax.f32 %v1817, 0.0
        %v1882 = vmax.f32 %v1818, 0.0
        %v1883 = vmax.f32 %v1819, 0.0
        %v1884 = vmax.f32 %v1820, 0.0
        %v1885 = vmax.f32 %v1821, 0.0
        %v1886 = vmax.f32 %v1822, 0.0
        %v1887 = vmax.f32 %v1823, 0.0
        %v1888 = vmax.f32 %v1824, 0.0
        %v1889 = vmax.f32 %v1825, 0.0
        %v1890 = vmax.f32 %v1826, 0.0
        %v1891 = vmax.f32 %v1827, 0.0
        %v1892 = vmax.f32 %v1828, 0.0
        %v1893 = vmax.f32 %v1829, 0.0
        %v1894 = vmax.f32 %v1830, 0.0
        %v1895 = vmax.f32 %v1831, 0.0
        %v1896 = vmax.f32 %v1832, 0.0
        %v1897 = vmax.f32 %v1833, 0.0
        %v1898 = vmax.f32 %v1834, 0.0
        %v1899 = vmax.f32 %v1835, 0.0
        %v1900 = vmax.f32 %v1836, 0.0
        %v1901 = vmax.f32 %v1837, 0.0
        %v1902 = vmax.f32 %v1838, 0.0
        %v1903 = vmax.f32 %v1839, 0.0
        %v1904 = vmax.f32 %v1840, 0.0
        %v1905 = vmax.f32 %v1841, 0.0
        %v1906 = vmax.f32 %v1842, 0.0
        %v1907 = vmax.f32 %v1843, 0.0
        %v1908 = vmax.f32 %v1844, 0.0
        %v1909 = vmax.f32 %v1845, 0.0
        %v1910 = vmax.f32 %v1846, 0.0
        %v1911 = vmax.f32 %v1847, 0.0
        %v1912 = vmax.f32 %v1848, 0.0
        %v1913 = vmax.f32 %v1849, 0.0
        %v1914 = vmax.f32 %v1850, 0.0
        %v1915 = vmax.f32 %v1851, 0.0
        %v1916 = vmax.f32 %v1852, 0.0
        %v1917 = vmax.f32 %v1853, 0.0
        %v1918 = vmax.f32 %v1854, 0.0
        %v1919 = vmax.f32 %v1855, 0.0
        %v1920 = vmax.f32 %v1856, 0.0
        %v1921 = vmax.f32 %v1857, 0.0
        %v1922 = vmax.f32 %v1858, 0.0
        %v1923 = vmax.f32 %v1859, 0.0
        %v1924 = vmax.f32 %v1860, 0.0
        %v1925 = vpack.c.bf16 %v1862, %v1861
        %v1926 = vpack.c.bf16 %v1864, %v1863
        %v1927 = vpack.c.bf16 %v1866, %v1865
        %v1928 = vpack.c.bf16 %v1868, %v1867
        %v1929 = vpack.c.bf16 %v1870, %v1869
        %v1930 = vpack.c.bf16 %v1872, %v1871
        %v1931 = vpack.c.bf16 %v1874, %v1873
        %v1932 = vpack.c.bf16 %v1876, %v1875
        %v1933 = vpack.c.bf16 %v1878, %v1877
        %v1934 = vpack.c.bf16 %v1880, %v1879
        %v1935 = vpack.c.bf16 %v1882, %v1881
        %v1936 = vpack.c.bf16 %v1884, %v1883
        %v1937 = vpack.c.bf16 %v1886, %v1885
        %v1938 = vpack.c.bf16 %v1888, %v1887
        %v1939 = vpack.c.bf16 %v1890, %v1889
        %v1940 = vpack.c.bf16 %v1892, %v1891
        %v1941 = vpack.c.bf16 %v1894, %v1893
        %v1942 = vpack.c.bf16 %v1896, %v1895
        %v1943 = vpack.c.bf16 %v1898, %v1897
        %v1944 = vpack.c.bf16 %v1900, %v1899
        %v1945 = vpack.c.bf16 %v1902, %v1901
        %v1946 = vpack.c.bf16 %v1904, %v1903
        %v1947 = vpack.c.bf16 %v1906, %v1905
        %v1948 = vpack.c.bf16 %v1908, %v1907
        %v1949 = vpack.c.bf16 %v1910, %v1909
        %v1950 = vpack.c.bf16 %v1912, %v1911
        %v1951 = vpack.c.bf16 %v1914, %v1913
        %v1952 = vpack.c.bf16 %v1916, %v1915
        %v1953 = vpack.c.bf16 %v1918, %v1917
        %v1954 = vpack.c.bf16 %v1920, %v1919
        %v1955 = vpack.c.bf16 %v1922, %v1921
        %v1956 = vpack.c.bf16 %v1924, %v1923
        %s1957 = scalar_lea.vmem %s1, 12
        %v1958 = vld [vmem:[%s1957] sm:$0xf]
        %s1959 = scalar_lea.vmem %s1, 16
        %v1960 = vld [vmem:[%s1959] sm:$0xf]
        %v1962 = vsel %vm747, %v1925, 0
        %v1965 = vsel %vm747, %v1927, 0
        %v1968 = vsel %vm747, %v1929, 0
        %v1971 = vsel %vm747, %v1931, 0
        %v1974 = vsel %vm747, %v1933, 0
        %v1977 = vsel %vm747, %v1935, 0
        %v1980 = vsel %vm747, %v1937, 0
        %v1983 = vsel %vm747, %v1939, 0
        %v1986 = vsel %vm747, %v1941, 0
        %v1989 = vsel %vm747, %v1943, 0
        %v1992 = vsel %vm747, %v1945, 0
        %v1995 = vsel %vm747, %v1947, 0
        %v1998 = vsel %vm747, %v1949, 0
        %v2001 = vsel %vm747, %v1951, 0
        %v2004 = vsel %vm747, %v1953, 0
        %v2007 = vsel %vm747, %v1955, 0
        %v2010 = vsel %vm844, %v1960, 0
        %2012 = vmatprep.subr.bf16.mxu0 0
        %2013 = vmatpush1.bf16.msra.mxu0 %v2010
        %2014 = vmatprep.subr.bf16.mxu0 0
        %2015 = vmatpush1.bf16.msra.mxu0 0
        %2016 = vmatprep.subr.bf16.mxu0 0
        %2017 = vmatpush1.bf16.msra.mxu0 0
        %2018 = vmatprep.subr.bf16.mxu0 0
        %2019 = vmatpush1.bf16.msra.mxu0 0
        %2020 = vmatprep.subr.bf16.mxu0 0
        %2021 = vmatpush1.bf16.msra.mxu0 0
        %2022 = vmatprep.subr.bf16.mxu0 0
        %2023 = vmatpush1.bf16.msra.mxu0 0
        %2024 = vmatprep.subr.bf16.mxu0 0
        %2025 = vmatpush1.bf16.msra.mxu0 0
        %2026 = vmatprep.subr.bf16.mxu0 0
        %2027 = vmatpush1.bf16.msra.mxu0 0
        %2028 = vmatprep.subr.bf16.mxu0 0
        %2029 = vmatpush1.bf16.msra.mxu0 0
        %2030 = vmatprep.subr.bf16.mxu0 0
        %2031 = vmatpush1.bf16.msra.mxu0 0
        %2032 = vmatprep.subr.bf16.mxu0 0
        %2033 = vmatpush1.bf16.msra.mxu0 0
        %2034 = vmatprep.subr.bf16.mxu0 0
        %2035 = vmatpush1.bf16.msra.mxu0 0
        %2036 = vmatprep.subr.bf16.mxu0 0
        %2037 = vmatpush1.bf16.msra.mxu0 0
        %2038 = vmatprep.subr.bf16.mxu0 0
        %2039 = vmatpush1.bf16.msra.mxu0 0
        %2040 = vmatprep.subr.bf16.mxu0 0
        %2041 = vmatpush1.bf16.msra.mxu0 0
        %2042 = vmatprep.subr.bf16.mxu0 0
        %2043 = vmatpush1.bf16.msra.mxu0 0
        %2044 = vmatprep.mubr.bf16.mxu0 0
        %2045 = vmatmul.mubr.bf16.gmra.mrb[0].mxu0 %v1962
        %v2046 = vpop.f32.mrb[0].mxu0
        %v2047 = vadd.f32 0.0, %v2046
        %v2048 = vpop.f32.mrb[0].mxu0
        %v2049 = vpop.f32.mrb[0].mxu0
        %v2050 = vadd.f32 0.0, %v2049
        %v2051 = vpop.f32.mrb[0].mxu0
        %2052 = vmatprep.mubr.bf16.mxu0 0
        %2053 = vmatmul.mubr.bf16.gmra.mrb[0].mxu0 %v1965
        %v2054 = vpop.f32.mrb[0].mxu0
        %v2055 = vadd.f32 0.0, %v2054
        %v2056 = vpop.f32.mrb[0].mxu0
        %v2057 = vpop.f32.mrb[0].mxu0
        %v2058 = vadd.f32 0.0, %v2057
        %v2059 = vpop.f32.mrb[0].mxu0
        %2060 = vmatprep.mubr.bf16.mxu0 0
        %2061 = vmatmul.mubr.bf16.gmra.mrb[0].mxu0 %v1968
        %v2062 = vpop.f32.mrb[0].mxu0
        %v2063 = vadd.f32 0.0, %v2062
        %v2064 = vpop.f32.mrb[0].mxu0
        %v2065 = vpop.f32.mrb[0].mxu0
        %v2066 = vadd.f32 0.0, %v2065
        %v2067 = vpop.f32.mrb[0].mxu0
        %2068 = vmatprep.mubr.bf16.mxu0 0
        %2069 = vmatmul.mubr.bf16.gmra.mrb[0].mxu0 %v1971
        %v2070 = vpop.f32.mrb[0].mxu0
        %v2071 = vadd.f32 0.0, %v2070
        %v2072 = vpop.f32.mrb[0].mxu0
        %v2073 = vpop.f32.mrb[0].mxu0
        %v2074 = vadd.f32 0.0, %v2073
        %v2075 = vpop.f32.mrb[0].mxu0
        %2076 = vmatprep.mubr.bf16.mxu0 0
        %2077 = vmatmul.mubr.bf16.gmra.mrb[0].mxu0 %v1974
        %v2078 = vpop.f32.mrb[0].mxu0
        %v2079 = vadd.f32 0.0, %v2078
        %v2080 = vpop.f32.mrb[0].mxu0
        %v2081 = vpop.f32.mrb[0].mxu0
        %v2082 = vadd.f32 0.0, %v2081
        %v2083 = vpop.f32.mrb[0].mxu0
        %2084 = vmatprep.mubr.bf16.mxu0 0
        %2085 = vmatmul.mubr.bf16.gmra.mrb[0].mxu0 %v1977
        %v2086 = vpop.f32.mrb[0].mxu0
        %v2087 = vadd.f32 0.0, %v2086
        %v2088 = vpop.f32.mrb[0].mxu0
        %v2089 = vpop.f32.mrb[0].mxu0
        %v2090 = vadd.f32 0.0, %v2089
        %v2091 = vpop.f32.mrb[0].mxu0
        %2092 = vmatprep.mubr.bf16.mxu0 0
        %2093 = vmatmul.mubr.bf16.gmra.mrb[0].mxu0 %v1980
        %v2094 = vpop.f32.mrb[0].mxu0
        %v2095 = vadd.f32 0.0, %v2094
        %v2096 = vpop.f32.mrb[0].mxu0
        %v2097 = vpop.f32.mrb[0].mxu0
        %v2098 = vadd.f32 0.0, %v2097
        %v2099 = vpop.f32.mrb[0].mxu0
        %2100 = vmatprep.mubr.bf16.mxu0 0
        %2101 = vmatmul.mubr.bf16.gmra.mrb[0].mxu0 %v1983
        %v2102 = vpop.f32.mrb[0].mxu0
        %v2103 = vadd.f32 0.0, %v2102
        %v2104 = vpop.f32.mrb[0].mxu0
        %v2105 = vpop.f32.mrb[0].mxu0
        %v2106 = vadd.f32 0.0, %v2105
        %v2107 = vpop.f32.mrb[0].mxu0
        %2108 = vmatprep.mubr.bf16.mxu0 0
        %2109 = vmatmul.mubr.bf16.gmra.mrb[0].mxu0 %v1986
        %v2110 = vpop.f32.mrb[0].mxu0
        %v2111 = vadd.f32 0.0, %v2110
        %v2112 = vpop.f32.mrb[0].mxu0
        %v2113 = vpop.f32.mrb[0].mxu0
        %v2114 = vadd.f32 0.0, %v2113
        %v2115 = vpop.f32.mrb[0].mxu0
        %2116 = vmatprep.mubr.bf16.mxu0 0
        %2117 = vmatmul.mubr.bf16.gmra.mrb[0].mxu0 %v1989
        %v2118 = vpop.f32.mrb[0].mxu0
        %v2119 = vadd.f32 0.0, %v2118
        %v2120 = vpop.f32.mrb[0].mxu0
        %v2121 = vpop.f32.mrb[0].mxu0
        %v2122 = vadd.f32 0.0, %v2121
        %v2123 = vpop.f32.mrb[0].mxu0
        %2124 = vmatprep.mubr.bf16.mxu0 0
        %2125 = vmatmul.mubr.bf16.gmra.mrb[0].mxu0 %v1992
        %v2126 = vpop.f32.mrb[0].mxu0
        %v2127 = vadd.f32 0.0, %v2126
        %v2128 = vpop.f32.mrb[0].mxu0
        %v2129 = vpop.f32.mrb[0].mxu0
        %v2130 = vadd.f32 0.0, %v2129
        %v2131 = vpop.f32.mrb[0].mxu0
        %2132 = vmatprep.mubr.bf16.mxu0 0
        %2133 = vmatmul.mubr.bf16.gmra.mrb[0].mxu0 %v1995
        %v2134 = vpop.f32.mrb[0].mxu0
        %v2135 = vadd.f32 0.0, %v2134
        %v2136 = vpop.f32.mrb[0].mxu0
        %v2137 = vpop.f32.mrb[0].mxu0
        %v2138 = vadd.f32 0.0, %v2137
        %v2139 = vpop.f32.mrb[0].mxu0
        %2140 = vmatprep.mubr.bf16.mxu0 0
        %2141 = vmatmul.mubr.bf16.gmra.mrb[0].mxu0 %v1998
        %v2142 = vpop.f32.mrb[0].mxu0
        %v2143 = vadd.f32 0.0, %v2142
        %v2144 = vpop.f32.mrb[0].mxu0
        %v2145 = vpop.f32.mrb[0].mxu0
        %v2146 = vadd.f32 0.0, %v2145
        %v2147 = vpop.f32.mrb[0].mxu0
        %2148 = vmatprep.mubr.bf16.mxu0 0
        %2149 = vmatmul.mubr.bf16.gmra.mrb[0].mxu0 %v2001
        %v2150 = vpop.f32.mrb[0].mxu0
        %v2151 = vadd.f32 0.0, %v2150
        %v2152 = vpop.f32.mrb[0].mxu0
        %v2153 = vpop.f32.mrb[0].mxu0
        %v2154 = vadd.f32 0.0, %v2153
        %v2155 = vpop.f32.mrb[0].mxu0
        %2156 = vmatprep.mubr.bf16.mxu0 0
        %2157 = vmatmul.mubr.bf16.gmra.mrb[0].mxu0 %v2004
        %v2158 = vpop.f32.mrb[0].mxu0
        %v2159 = vadd.f32 0.0, %v2158
        %v2160 = vpop.f32.mrb[0].mxu0
        %v2161 = vpop.f32.mrb[0].mxu0
        %v2162 = vadd.f32 0.0, %v2161
        %v2163 = vpop.f32.mrb[0].mxu0
        %2164 = vmatprep.mubr.bf16.mxu0 0
        %2165 = vmatmul.mubr.bf16.gmra.mrb[0].mxu0 %v2007
        %v2166 = vpop.f32.mrb[0].mxu0
        %v2167 = vadd.f32 0.0, %v2166
        %v2168 = vpop.f32.mrb[0].mxu0
        %v2169 = vpop.f32.mrb[0].mxu0
        %v2170 = vadd.f32 0.0, %v2169
        %v2171 = vpop.f32.mrb[0].mxu0
        %2172 = vdwg.mxu0
        %v2174 = vsel %vm747, %v1926, 0
        %v2177 = vsel %vm747, %v1928, 0
        %v2180 = vsel %vm747, %v1930, 0
        %v2183 = vsel %vm747, %v1932, 0
        %v2186 = vsel %vm747, %v1934, 0
        %v2189 = vsel %vm747, %v1936, 0
        %v2192 = vsel %vm747, %v1938, 0
        %v2195 = vsel %vm747, %v1940, 0
        %v2198 = vsel %vm747, %v1942, 0
        %v2201 = vsel %vm747, %v1944, 0
        %v2204 = vsel %vm747, %v1946, 0
        %v2207 = vsel %vm747, %v1948, 0
        %v2210 = vsel %vm747, %v1950, 0
        %v2213 = vsel %vm747, %v1952, 0
        %v2216 = vsel %vm747, %v1954, 0
        %v2219 = vsel %vm844, %v1958, 0
        %2221 = vmatprep.subr.bf16.mxu0 0
        %2222 = vmatpush1.bf16.msra.mxu0 %v2219
        %2223 = vmatprep.subr.bf16.mxu0 0
        %2224 = vmatpush1.bf16.msra.mxu0 0
        %2225 = vmatprep.subr.bf16.mxu0 0
        %2226 = vmatpush1.bf16.msra.mxu0 0
        %2227 = vmatprep.subr.bf16.mxu0 0
        %2228 = vmatpush1.bf16.msra.mxu0 0
        %2229 = vmatprep.subr.bf16.mxu0 0
        %2230 = vmatpush1.bf16.msra.mxu0 0
        %2231 = vmatprep.subr.bf16.mxu0 0
        %2232 = vmatpush1.bf16.msra.mxu0 0
        %2233 = vmatprep.subr.bf16.mxu0 0
        %2234 = vmatpush1.bf16.msra.mxu0 0
        %2235 = vmatprep.subr.bf16.mxu0 0
        %2236 = vmatpush1.bf16.msra.mxu0 0
        %2237 = vmatprep.subr.bf16.mxu0 0
        %2238 = vmatpush1.bf16.msra.mxu0 0
        %2239 = vmatprep.subr.bf16.mxu0 0
        %2240 = vmatpush1.bf16.msra.mxu0 0
        %2241 = vmatprep.subr.bf16.mxu0 0
        %2242 = vmatpush1.bf16.msra.mxu0 0
        %2243 = vmatprep.subr.bf16.mxu0 0
        %2244 = vmatpush1.bf16.msra.mxu0 0
        %2245 = vmatprep.subr.bf16.mxu0 0
        %2246 = vmatpush1.bf16.msra.mxu0 0
        %2247 = vmatprep.subr.bf16.mxu0 0
        %2248 = vmatpush1.bf16.msra.mxu0 0
        %2249 = vmatprep.subr.bf16.mxu0 0
        %2250 = vmatpush1.bf16.msra.mxu0 0
        %2251 = vmatprep.subr.bf16.mxu0 0
        %2252 = vmatpush1.bf16.msra.mxu0 0
        %2253 = vmatprep.mubr.bf16.mxu0 0
        %2254 = vmatmul.mubr.bf16.gmra.mrb[0].mxu0 %v1138
        %v2255 = vpop.f32.mrb[0].mxu0
        %v2256 = vadd.f32 %v2047, %v2255
        %v2257 = vpop.f32.mrb[0].mxu0
        %v2258 = vpop.f32.mrb[0].mxu0
        %v2259 = vadd.f32 %v2050, %v2258
        %v2260 = vpop.f32.mrb[0].mxu0
        %2261 = vmatprep.mubr.bf16.mxu0 0
        %2262 = vmatmul.mubr.bf16.gmra.mrb[0].mxu0 %v2174
        %v2263 = vpop.f32.mrb[0].mxu0
        %v2264 = vadd.f32 %v2055, %v2263
        %v2265 = vpop.f32.mrb[0].mxu0
        %v2266 = vpop.f32.mrb[0].mxu0
        %v2267 = vadd.f32 %v2058, %v2266
        %v2268 = vpop.f32.mrb[0].mxu0
        %2269 = vmatprep.mubr.bf16.mxu0 0
        %2270 = vmatmul.mubr.bf16.gmra.mrb[0].mxu0 %v2177
        %v2271 = vpop.f32.mrb[0].mxu0
        %v2272 = vadd.f32 %v2063, %v2271
        %v2273 = vpop.f32.mrb[0].mxu0
        %v2274 = vpop.f32.mrb[0].mxu0
        %v2275 = vadd.f32 %v2066, %v2274
        %v2276 = vpop.f32.mrb[0].mxu0
        %2277 = vmatprep.mubr.bf16.mxu0 0
        %2278 = vmatmul.mubr.bf16.gmra.mrb[0].mxu0 %v2180
        %v2279 = vpop.f32.mrb[0].mxu0
        %v2280 = vadd.f32 %v2071, %v2279
        %v2281 = vpop.f32.mrb[0].mxu0
        %v2282 = vpop.f32.mrb[0].mxu0
        %v2283 = vadd.f32 %v2074, %v2282
        %v2284 = vpop.f32.mrb[0].mxu0
        %2285 = vmatprep.mubr.bf16.mxu0 0
        %2286 = vmatmul.mubr.bf16.gmra.mrb[0].mxu0 %v2183
        %v2287 = vpop.f32.mrb[0].mxu0
        %v2288 = vadd.f32 %v2079, %v2287
        %v2289 = vpop.f32.mrb[0].mxu0
        %v2290 = vpop.f32.mrb[0].mxu0
        %v2291 = vadd.f32 %v2082, %v2290
        %v2292 = vpop.f32.mrb[0].mxu0
        %2293 = vmatprep.mubr.bf16.mxu0 0
        %2294 = vmatmul.mubr.bf16.gmra.mrb[0].mxu0 %v2186
        %v2295 = vpop.f32.mrb[0].mxu0
        %v2296 = vadd.f32 %v2087, %v2295
        %v2297 = vpop.f32.mrb[0].mxu0
        %v2298 = vpop.f32.mrb[0].mxu0
        %v2299 = vadd.f32 %v2090, %v2298
        %v2300 = vpop.f32.mrb[0].mxu0
        %2301 = vmatprep.mubr.bf16.mxu0 0
        %2302 = vmatmul.mubr.bf16.gmra.mrb[0].mxu0 %v2189
        %v2303 = vpop.f32.mrb[0].mxu0
        %v2304 = vadd.f32 %v2095, %v2303
        %v2305 = vpop.f32.mrb[0].mxu0
        %v2306 = vpop.f32.mrb[0].mxu0
        %v2307 = vadd.f32 %v2098, %v2306
        %v2308 = vpop.f32.mrb[0].mxu0
        %2309 = vmatprep.mubr.bf16.mxu0 0
        %2310 = vmatmul.mubr.bf16.gmra.mrb[0].mxu0 %v2192
        %v2311 = vpop.f32.mrb[0].mxu0
        %v2312 = vadd.f32 %v2103, %v2311
        %v2313 = vpop.f32.mrb[0].mxu0
        %v2314 = vpop.f32.mrb[0].mxu0
        %v2315 = vadd.f32 %v2106, %v2314
        %v2316 = vpop.f32.mrb[0].mxu0
        %2317 = vmatprep.mubr.bf16.mxu0 0
        %2318 = vmatmul.mubr.bf16.gmra.mrb[0].mxu0 %v2195
        %v2319 = vpop.f32.mrb[0].mxu0
        %v2320 = vadd.f32 %v2111, %v2319
        %v2321 = vpop.f32.mrb[0].mxu0
        %v2322 = vpop.f32.mrb[0].mxu0
        %v2323 = vadd.f32 %v2114, %v2322
        %v2324 = vpop.f32.mrb[0].mxu0
        %2325 = vmatprep.mubr.bf16.mxu0 0
        %2326 = vmatmul.mubr.bf16.gmra.mrb[0].mxu0 %v2198
        %v2327 = vpop.f32.mrb[0].mxu0
        %v2328 = vadd.f32 %v2119, %v2327
        %v2329 = vpop.f32.mrb[0].mxu0
        %v2330 = vpop.f32.mrb[0].mxu0
        %v2331 = vadd.f32 %v2122, %v2330
        %v2332 = vpop.f32.mrb[0].mxu0
        %2333 = vmatprep.mubr.bf16.mxu0 0
        %2334 = vmatmul.mubr.bf16.gmra.mrb[0].mxu0 %v2201
        %v2335 = vpop.f32.mrb[0].mxu0
        %v2336 = vadd.f32 %v2127, %v2335
        %v2337 = vpop.f32.mrb[0].mxu0
        %v2338 = vpop.f32.mrb[0].mxu0
        %v2339 = vadd.f32 %v2130, %v2338
        %v2340 = vpop.f32.mrb[0].mxu0
        %2341 = vmatprep.mubr.bf16.mxu0 0
        %2342 = vmatmul.mubr.bf16.gmra.mrb[0].mxu0 %v2204
        %v2343 = vpop.f32.mrb[0].mxu0
        %v2344 = vadd.f32 %v2135, %v2343
        %v2345 = vpop.f32.mrb[0].mxu0
        %v2346 = vpop.f32.mrb[0].mxu0
        %v2347 = vadd.f32 %v2138, %v2346
        %v2348 = vpop.f32.mrb[0].mxu0
        %2349 = vmatprep.mubr.bf16.mxu0 0
        %2350 = vmatmul.mubr.bf16.gmra.mrb[0].mxu0 %v2207
        %v2351 = vpop.f32.mrb[0].mxu0
        %v2352 = vadd.f32 %v2143, %v2351
        %v2353 = vpop.f32.mrb[0].mxu0
        %v2354 = vpop.f32.mrb[0].mxu0
        %v2355 = vadd.f32 %v2146, %v2354
        %v2356 = vpop.f32.mrb[0].mxu0
        %2357 = vmatprep.mubr.bf16.mxu0 0
        %2358 = vmatmul.mubr.bf16.gmra.mrb[0].mxu0 %v2210
        %v2359 = vpop.f32.mrb[0].mxu0
        %v2360 = vadd.f32 %v2151, %v2359
        %v2361 = vpop.f32.mrb[0].mxu0
        %v2362 = vpop.f32.mrb[0].mxu0
        %v2363 = vadd.f32 %v2154, %v2362
        %v2364 = vpop.f32.mrb[0].mxu0
        %2365 = vmatprep.mubr.bf16.mxu0 0
        %2366 = vmatmul.mubr.bf16.gmra.mrb[0].mxu0 %v2213
        %v2367 = vpop.f32.mrb[0].mxu0
        %v2368 = vadd.f32 %v2159, %v2367
        %v2369 = vpop.f32.mrb[0].mxu0
        %v2370 = vpop.f32.mrb[0].mxu0
        %v2371 = vadd.f32 %v2162, %v2370
        %v2372 = vpop.f32.mrb[0].mxu0
        %2373 = vmatprep.mubr.bf16.mxu0 0
        %2374 = vmatmul.mubr.bf16.gmra.mrb[0].mxu0 %v2216
        %v2375 = vpop.f32.mrb[0].mxu0
        %v2376 = vadd.f32 %v2167, %v2375
        %v2377 = vpop.f32.mrb[0].mxu0
        %v2378 = vpop.f32.mrb[0].mxu0
        %v2379 = vadd.f32 %v2170, %v2378
        %v2380 = vpop.f32.mrb[0].mxu0
        %2381 = vdwg.mxu0
        %s2382 = scalar_lea.vmem %s1, 20
        %v2383 = vld [vmem:[%s2382] sm:$0xf]
        %v2385 = vsel %vm747, %v1956, 0
        %v2388 = vsel %vm844, %v2383, 0
        %2390 = vmatprep.subr.bf16.mxu0 0
        %2391 = vmatpush1.bf16.msra.mxu0 %v2388
        %2392 = vmatprep.subr.bf16.mxu0 0
        %2393 = vmatpush1.bf16.msra.mxu0 0
        %2394 = vmatprep.subr.bf16.mxu0 0
        %2395 = vmatpush1.bf16.msra.mxu0 0
        %2396 = vmatprep.subr.bf16.mxu0 0
        %2397 = vmatpush1.bf16.msra.mxu0 0
        %2398 = vmatprep.subr.bf16.mxu0 0
        %2399 = vmatpush1.bf16.msra.mxu0 0
        %2400 = vmatprep.subr.bf16.mxu0 0
        %2401 = vmatpush1.bf16.msra.mxu0 0
        %2402 = vmatprep.subr.bf16.mxu0 0
        %2403 = vmatpush1.bf16.msra.mxu0 0
        %2404 = vmatprep.subr.bf16.mxu0 0
        %2405 = vmatpush1.bf16.msra.mxu0 0
        %2406 = vmatprep.subr.bf16.mxu0 0
        %2407 = vmatpush1.bf16.msra.mxu0 0
        %2408 = vmatprep.subr.bf16.mxu0 0
        %2409 = vmatpush1.bf16.msra.mxu0 0
        %2410 = vmatprep.subr.bf16.mxu0 0
        %2411 = vmatpush1.bf16.msra.mxu0 0
        %2412 = vmatprep.subr.bf16.mxu0 0
        %2413 = vmatpush1.bf16.msra.mxu0 0
        %2414 = vmatprep.subr.bf16.mxu0 0
        %2415 = vmatpush1.bf16.msra.mxu0 0
        %2416 = vmatprep.subr.bf16.mxu0 0
        %2417 = vmatpush1.bf16.msra.mxu0 0
        %2418 = vmatprep.subr.bf16.mxu0 0
        %2419 = vmatpush1.bf16.msra.mxu0 0
        %2420 = vmatprep.subr.bf16.mxu0 0
        %2421 = vmatpush1.bf16.msra.mxu0 0
        %2422 = vmatprep.mubr.bf16.mxu0 0
        %2423 = vmatmul.mubr.bf16.gmra.mrb[0].mxu0 %v2174
        %v2424 = vpop.f32.mrb[0].mxu0
        %v2425 = vadd.f32 0.0, %v2424
        %v2426 = vpop.f32.mrb[0].mxu0
        %v2427 = vpop.f32.mrb[0].mxu0
        %v2428 = vadd.f32 0.0, %v2427
        %v2429 = vpop.f32.mrb[0].mxu0
        %2430 = vmatprep.mubr.bf16.mxu0 0
        %2431 = vmatmul.mubr.bf16.gmra.mrb[0].mxu0 %v2177
        %v2432 = vpop.f32.mrb[0].mxu0
        %v2433 = vadd.f32 0.0, %v2432
        %v2434 = vpop.f32.mrb[0].mxu0
        %v2435 = vpop.f32.mrb[0].mxu0
        %v2436 = vadd.f32 0.0, %v2435
        %v2437 = vpop.f32.mrb[0].mxu0
        %2438 = vmatprep.mubr.bf16.mxu0 0
        %2439 = vmatmul.mubr.bf16.gmra.mrb[0].mxu0 %v2180
        %v2440 = vpop.f32.mrb[0].mxu0
        %v2441 = vadd.f32 0.0, %v2440
        %v2442 = vpop.f32.mrb[0].mxu0
        %v2443 = vpop.f32.mrb[0].mxu0
        %v2444 = vadd.f32 0.0, %v2443
        %v2445 = vpop.f32.mrb[0].mxu0
        %2446 = vmatprep.mubr.bf16.mxu0 0
        %2447 = vmatmul.mubr.bf16.gmra.mrb[0].mxu0 %v2183
        %v2448 = vpop.f32.mrb[0].mxu0
        %v2449 = vadd.f32 0.0, %v2448
        %v2450 = vpop.f32.mrb[0].mxu0
        %v2451 = vpop.f32.mrb[0].mxu0
        %v2452 = vadd.f32 0.0, %v2451
        %v2453 = vpop.f32.mrb[0].mxu0
        %2454 = vmatprep.mubr.bf16.mxu0 0
        %2455 = vmatmul.mubr.bf16.gmra.mrb[0].mxu0 %v2186
        %v2456 = vpop.f32.mrb[0].mxu0
        %v2457 = vadd.f32 0.0, %v2456
        %v2458 = vpop.f32.mrb[0].mxu0
        %v2459 = vpop.f32.mrb[0].mxu0
        %v2460 = vadd.f32 0.0, %v2459
        %v2461 = vpop.f32.mrb[0].mxu0
        %2462 = vmatprep.mubr.bf16.mxu0 0
        %2463 = vmatmul.mubr.bf16.gmra.mrb[0].mxu0 %v2189
        %v2464 = vpop.f32.mrb[0].mxu0
        %v2465 = vadd.f32 0.0, %v2464
        %v2466 = vpop.f32.mrb[0].mxu0
        %v2467 = vpop.f32.mrb[0].mxu0
        %v2468 = vadd.f32 0.0, %v2467
        %v2469 = vpop.f32.mrb[0].mxu0
        %2470 = vmatprep.mubr.bf16.mxu0 0
        %2471 = vmatmul.mubr.bf16.gmra.mrb[0].mxu0 %v2192
        %v2472 = vpop.f32.mrb[0].mxu0
        %v2473 = vadd.f32 0.0, %v2472
        %v2474 = vpop.f32.mrb[0].mxu0
        %v2475 = vpop.f32.mrb[0].mxu0
        %v2476 = vadd.f32 0.0, %v2475
        %v2477 = vpop.f32.mrb[0].mxu0
        %2478 = vmatprep.mubr.bf16.mxu0 0
        %2479 = vmatmul.mubr.bf16.gmra.mrb[0].mxu0 %v2195
        %v2480 = vpop.f32.mrb[0].mxu0
        %v2481 = vadd.f32 0.0, %v2480
        %v2482 = vpop.f32.mrb[0].mxu0
        %v2483 = vpop.f32.mrb[0].mxu0
        %v2484 = vadd.f32 0.0, %v2483
        %v2485 = vpop.f32.mrb[0].mxu0
        %2486 = vmatprep.mubr.bf16.mxu0 0
        %2487 = vmatmul.mubr.bf16.gmra.mrb[0].mxu0 %v2198
        %v2488 = vpop.f32.mrb[0].mxu0
        %v2489 = vadd.f32 0.0, %v2488
        %v2490 = vpop.f32.mrb[0].mxu0
        %v2491 = vpop.f32.mrb[0].mxu0
        %v2492 = vadd.f32 0.0, %v2491
        %v2493 = vpop.f32.mrb[0].mxu0
        %2494 = vmatprep.mubr.bf16.mxu0 0
        %2495 = vmatmul.mubr.bf16.gmra.mrb[0].mxu0 %v2201
        %v2496 = vpop.f32.mrb[0].mxu0
        %v2497 = vadd.f32 0.0, %v2496
        %v2498 = vpop.f32.mrb[0].mxu0
        %v2499 = vpop.f32.mrb[0].mxu0
        %v2500 = vadd.f32 0.0, %v2499
        %v2501 = vpop.f32.mrb[0].mxu0
        %2502 = vmatprep.mubr.bf16.mxu0 0
        %2503 = vmatmul.mubr.bf16.gmra.mrb[0].mxu0 %v2204
        %v2504 = vpop.f32.mrb[0].mxu0
        %v2505 = vadd.f32 0.0, %v2504
        %v2506 = vpop.f32.mrb[0].mxu0
        %v2507 = vpop.f32.mrb[0].mxu0
        %v2508 = vadd.f32 0.0, %v2507
        %v2509 = vpop.f32.mrb[0].mxu0
        %2510 = vmatprep.mubr.bf16.mxu0 0
        %2511 = vmatmul.mubr.bf16.gmra.mrb[0].mxu0 %v2207
        %v2512 = vpop.f32.mrb[0].mxu0
        %v2513 = vadd.f32 0.0, %v2512
        %v2514 = vpop.f32.mrb[0].mxu0
        %v2515 = vpop.f32.mrb[0].mxu0
        %v2516 = vadd.f32 0.0, %v2515
        %v2517 = vpop.f32.mrb[0].mxu0
        %2518 = vmatprep.mubr.bf16.mxu0 0
        %2519 = vmatmul.mubr.bf16.gmra.mrb[0].mxu0 %v2210
        %v2520 = vpop.f32.mrb[0].mxu0
        %v2521 = vadd.f32 0.0, %v2520
        %v2522 = vpop.f32.mrb[0].mxu0
        %v2523 = vpop.f32.mrb[0].mxu0
        %v2524 = vadd.f32 0.0, %v2523
        %v2525 = vpop.f32.mrb[0].mxu0
        %2526 = vmatprep.mubr.bf16.mxu0 0
        %2527 = vmatmul.mubr.bf16.gmra.mrb[0].mxu0 %v2213
        %v2528 = vpop.f32.mrb[0].mxu0
        %v2529 = vadd.f32 0.0, %v2528
        %v2530 = vpop.f32.mrb[0].mxu0
        %v2531 = vpop.f32.mrb[0].mxu0
        %v2532 = vadd.f32 0.0, %v2531
        %v2533 = vpop.f32.mrb[0].mxu0
        %2534 = vmatprep.mubr.bf16.mxu0 0
        %2535 = vmatmul.mubr.bf16.gmra.mrb[0].mxu0 %v2216
        %v2536 = vpop.f32.mrb[0].mxu0
        %v2537 = vadd.f32 0.0, %v2536
        %v2538 = vpop.f32.mrb[0].mxu0
        %v2539 = vpop.f32.mrb[0].mxu0
        %v2540 = vadd.f32 0.0, %v2539
        %v2541 = vpop.f32.mrb[0].mxu0
        %2542 = vmatprep.mubr.bf16.mxu0 0
        %2543 = vmatmul.mubr.bf16.gmra.mrb[0].mxu0 %v2385
        %v2544 = vpop.f32.mrb[0].mxu0
        %v2545 = vadd.f32 0.0, %v2544
        %v2546 = vpop.f32.mrb[0].mxu0
        %v2547 = vpop.f32.mrb[0].mxu0
        %v2548 = vadd.f32 0.0, %v2547
        %v2549 = vpop.f32.mrb[0].mxu0
        %2550 = vdwg.mxu0
        %v2551 = vadd.f32 %v2256, %v2425
        %v2552 = vadd.f32 %v2259, %v2428
        %v2553 = vadd.f32 %v2264, %v2433
        %v2554 = vadd.f32 %v2267, %v2436
        %v2555 = vadd.f32 %v2272, %v2441
        %v2556 = vadd.f32 %v2275, %v2444
        %v2557 = vadd.f32 %v2280, %v2449
        %v2558 = vadd.f32 %v2283, %v2452
        %v2559 = vadd.f32 %v2288, %v2457
        %v2560 = vadd.f32 %v2291, %v2460
        %v2561 = vadd.f32 %v2296, %v2465
        %v2562 = vadd.f32 %v2299, %v2468
        %v2563 = vadd.f32 %v2304, %v2473
        %v2564 = vadd.f32 %v2307, %v2476
        %v2565 = vadd.f32 %v2312, %v2481
        %v2566 = vadd.f32 %v2315, %v2484
        %v2567 = vadd.f32 %v2320, %v2489
        %v2568 = vadd.f32 %v2323, %v2492
        %v2569 = vadd.f32 %v2328, %v2497
        %v2570 = vadd.f32 %v2331, %v2500
        %v2571 = vadd.f32 %v2336, %v2505
        %v2572 = vadd.f32 %v2339, %v2508
        %v2573 = vadd.f32 %v2344, %v2513
        %v2574 = vadd.f32 %v2347, %v2516
        %v2575 = vadd.f32 %v2352, %v2521
        %v2576 = vadd.f32 %v2355, %v2524
        %v2577 = vadd.f32 %v2360, %v2529
        %v2578 = vadd.f32 %v2363, %v2532
        %v2579 = vadd.f32 %v2368, %v2537
        %v2580 = vadd.f32 %v2371, %v2540
        %v2581 = vadd.f32 %v2376, %v2545
        %v2582 = vadd.f32 %v2379, %v2548
        %s2583 = scalar_lea.vmem %s2, 1
        %v2584 = vld [vmem:[%s2583] sm:$0x1]
        %v2586 = vlaneseq
        %v2587 = vshrl.u32 %v2586, 7
        %v2588 = vsub.s32 0, %v2587
        %v2589 = vrot.slane %v2584, %v2588
        %v2591 = vadd.f32 %v2551, %v2589
        %v2592 = vadd.f32 %v2552, %v2589
        %v2593 = vadd.f32 %v2553, %v2589
        %v2594 = vadd.f32 %v2554, %v2589
        %v2595 = vadd.f32 %v2555, %v2589
        %v2596 = vadd.f32 %v2556, %v2589
        %v2597 = vadd.f32 %v2557, %v2589
        %v2598 = vadd.f32 %v2558, %v2589
        %v2599 = vadd.f32 %v2559, %v2589
        %v2600 = vadd.f32 %v2560, %v2589
        %v2601 = vadd.f32 %v2561, %v2589
        %v2602 = vadd.f32 %v2562, %v2589
        %v2603 = vadd.f32 %v2563, %v2589
        %v2604 = vadd.f32 %v2564, %v2589
        %v2605 = vadd.f32 %v2565, %v2589
        %v2606 = vadd.f32 %v2566, %v2589
        %v2607 = vadd.f32 %v2567, %v2589
        %v2608 = vadd.f32 %v2568, %v2589
        %v2609 = vadd.f32 %v2569, %v2589
        %v2610 = vadd.f32 %v2570, %v2589
        %v2611 = vadd.f32 %v2571, %v2589
        %v2612 = vadd.f32 %v2572, %v2589
        %v2613 = vadd.f32 %v2573, %v2589
        %v2614 = vadd.f32 %v2574, %v2589
        %v2615 = vadd.f32 %v2575, %v2589
        %v2616 = vadd.f32 %v2576, %v2589
        %v2617 = vadd.f32 %v2577, %v2589
        %v2618 = vadd.f32 %v2578, %v2589
        %v2619 = vadd.f32 %v2579, %v2589
        %v2620 = vadd.f32 %v2580, %v2589
        %v2621 = vadd.f32 %v2581, %v2589
        %v2622 = vadd.f32 %v2582, %v2589
        %v2623 = vmax.f32 %v2591, 0.0
        %v2624 = vmax.f32 %v2592, 0.0
        %v2625 = vmax.f32 %v2593, 0.0
        %v2626 = vmax.f32 %v2594, 0.0
        %v2627 = vmax.f32 %v2595, 0.0
        %v2628 = vmax.f32 %v2596, 0.0
        %v2629 = vmax.f32 %v2597, 0.0
        %v2630 = vmax.f32 %v2598, 0.0
        %v2631 = vmax.f32 %v2599, 0.0
        %v2632 = vmax.f32 %v2600, 0.0
        %v2633 = vmax.f32 %v2601, 0.0
        %v2634 = vmax.f32 %v2602, 0.0
        %v2635 = vmax.f32 %v2603, 0.0
        %v2636 = vmax.f32 %v2604, 0.0
        %v2637 = vmax.f32 %v2605, 0.0
        %v2638 = vmax.f32 %v2606, 0.0
        %v2639 = vmax.f32 %v2607, 0.0
        %v2640 = vmax.f32 %v2608, 0.0
        %v2641 = vmax.f32 %v2609, 0.0
        %v2642 = vmax.f32 %v2610, 0.0
        %v2643 = vmax.f32 %v2611, 0.0
        %v2644 = vmax.f32 %v2612, 0.0
        %v2645 = vmax.f32 %v2613, 0.0
        %v2646 = vmax.f32 %v2614, 0.0
        %v2647 = vmax.f32 %v2615, 0.0
        %v2648 = vmax.f32 %v2616, 0.0
        %v2649 = vmax.f32 %v2617, 0.0
        %v2650 = vmax.f32 %v2618, 0.0
        %v2651 = vmax.f32 %v2619, 0.0
        %v2652 = vmax.f32 %v2620, 0.0
        %v2653 = vmax.f32 %v2621, 0.0
        %v2654 = vmax.f32 %v2622, 0.0
        %v2655 = vpack.c.bf16 %v2624, %v2623
        %v2656 = vpack.c.bf16 %v2626, %v2625
        %v2657 = vpack.c.bf16 %v2628, %v2627
        %v2658 = vpack.c.bf16 %v2630, %v2629
        %v2659 = vpack.c.bf16 %v2632, %v2631
        %v2660 = vpack.c.bf16 %v2634, %v2633
        %v2661 = vpack.c.bf16 %v2636, %v2635
        %v2662 = vpack.c.bf16 %v2638, %v2637
        %v2663 = vpack.c.bf16 %v2640, %v2639
        %v2664 = vpack.c.bf16 %v2642, %v2641
        %v2665 = vpack.c.bf16 %v2644, %v2643
        %v2666 = vpack.c.bf16 %v2646, %v2645
        %v2667 = vpack.c.bf16 %v2648, %v2647
        %v2668 = vpack.c.bf16 %v2650, %v2649
        %v2669 = vpack.c.bf16 %v2652, %v2651
        %v2670 = vpack.c.bf16 %v2654, %v2653
        %s2671 = scalar_lea.vmem %s1, 24
        %v2672 = vld [vmem:[%s2671] sm:$0xf]
        %s2673 = scalar_lea.vmem %s1, 28
        %v2674 = vld [vmem:[%s2673] sm:$0xf]
        %v2676 = vsel %vm747, %v2655, 0
        %v2679 = vsel %vm747, %v2657, 0
        %v2682 = vsel %vm747, %v2659, 0
        %v2685 = vsel %vm747, %v2661, 0
        %v2688 = vsel %vm747, %v2663, 0
        %v2691 = vsel %vm747, %v2665, 0
        %v2694 = vsel %vm747, %v2667, 0
        %v2697 = vsel %vm747, %v2669, 0
        %v2700 = vsel %vm844, %v2674, 0
        %2702 = vmatprep.subr.bf16.mxu0 0
        %2703 = vmatpush1.bf16.msra.mxu0 %v2700
        %2704 = vmatprep.subr.bf16.mxu0 0
        %2705 = vmatpush1.bf16.msra.mxu0 0
        %2706 = vmatprep.subr.bf16.mxu0 0
        %2707 = vmatpush1.bf16.msra.mxu0 0
        %2708 = vmatprep.subr.bf16.mxu0 0
        %2709 = vmatpush1.bf16.msra.mxu0 0
        %2710 = vmatprep.subr.bf16.mxu0 0
        %2711 = vmatpush1.bf16.msra.mxu0 0
        %2712 = vmatprep.subr.bf16.mxu0 0
        %2713 = vmatpush1.bf16.msra.mxu0 0
        %2714 = vmatprep.subr.bf16.mxu0 0
        %2715 = vmatpush1.bf16.msra.mxu0 0
        %2716 = vmatprep.subr.bf16.mxu0 0
        %2717 = vmatpush1.bf16.msra.mxu0 0
        %2718 = vmatprep.subr.bf16.mxu0 0
        %2719 = vmatpush1.bf16.msra.mxu0 0
        %2720 = vmatprep.subr.bf16.mxu0 0
        %2721 = vmatpush1.bf16.msra.mxu0 0
        %2722 = vmatprep.subr.bf16.mxu0 0
        %2723 = vmatpush1.bf16.msra.mxu0 0
        %2724 = vmatprep.subr.bf16.mxu0 0
        %2725 = vmatpush1.bf16.msra.mxu0 0
        %2726 = vmatprep.subr.bf16.mxu0 0
        %2727 = vmatpush1.bf16.msra.mxu0 0
        %2728 = vmatprep.subr.bf16.mxu0 0
        %2729 = vmatpush1.bf16.msra.mxu0 0
        %2730 = vmatprep.subr.bf16.mxu0 0
        %2731 = vmatpush1.bf16.msra.mxu0 0
        %2732 = vmatprep.subr.bf16.mxu0 0
        %2733 = vmatpush1.bf16.msra.mxu0 0
        %2734 = vmatprep.mubr.bf16.mxu0 0
        %2735 = vmatmul.mubr.bf16.gmra.mrb[0].mxu0 %v2676
        %v2736 = vpop.f32.mrb[0].mxu0
        %v2737 = vadd.f32 0.0, %v2736
        %v2738 = vpop.f32.mrb[0].mxu0
        %v2739 = vpop.f32.mrb[0].mxu0
        %v2740 = vadd.f32 0.0, %v2739
        %v2741 = vpop.f32.mrb[0].mxu0
        %2742 = vmatprep.mubr.bf16.mxu0 0
        %2743 = vmatmul.mubr.bf16.gmra.mrb[0].mxu0 %v2679
        %v2744 = vpop.f32.mrb[0].mxu0
        %v2745 = vadd.f32 0.0, %v2744
        %v2746 = vpop.f32.mrb[0].mxu0
        %v2747 = vpop.f32.mrb[0].mxu0
        %v2748 = vadd.f32 0.0, %v2747
        %v2749 = vpop.f32.mrb[0].mxu0
        %2750 = vmatprep.mubr.bf16.mxu0 0
        %2751 = vmatmul.mubr.bf16.gmra.mrb[0].mxu0 %v2682
        %v2752 = vpop.f32.mrb[0].mxu0
        %v2753 = vadd.f32 0.0, %v2752
        %v2754 = vpop.f32.mrb[0].mxu0
        %v2755 = vpop.f32.mrb[0].mxu0
        %v2756 = vadd.f32 0.0, %v2755
        %v2757 = vpop.f32.mrb[0].mxu0
        %2758 = vmatprep.mubr.bf16.mxu0 0
        %2759 = vmatmul.mubr.bf16.gmra.mrb[0].mxu0 %v2685
        %v2760 = vpop.f32.mrb[0].mxu0
        %v2761 = vadd.f32 0.0, %v2760
        %v2762 = vpop.f32.mrb[0].mxu0
        %v2763 = vpop.f32.mrb[0].mxu0
        %v2764 = vadd.f32 0.0, %v2763
        %v2765 = vpop.f32.mrb[0].mxu0
        %2766 = vmatprep.mubr.bf16.mxu0 0
        %2767 = vmatmul.mubr.bf16.gmra.mrb[0].mxu0 %v2688
        %v2768 = vpop.f32.mrb[0].mxu0
        %v2769 = vadd.f32 0.0, %v2768
        %v2770 = vpop.f32.mrb[0].mxu0
        %v2771 = vpop.f32.mrb[0].mxu0
        %v2772 = vadd.f32 0.0, %v2771
        %v2773 = vpop.f32.mrb[0].mxu0
        %2774 = vmatprep.mubr.bf16.mxu0 0
        %2775 = vmatmul.mubr.bf16.gmra.mrb[0].mxu0 %v2691
        %v2776 = vpop.f32.mrb[0].mxu0
        %v2777 = vadd.f32 0.0, %v2776
        %v2778 = vpop.f32.mrb[0].mxu0
        %v2779 = vpop.f32.mrb[0].mxu0
        %v2780 = vadd.f32 0.0, %v2779
        %v2781 = vpop.f32.mrb[0].mxu0
        %2782 = vmatprep.mubr.bf16.mxu0 0
        %2783 = vmatmul.mubr.bf16.gmra.mrb[0].mxu0 %v2694
        %v2784 = vpop.f32.mrb[0].mxu0
        %v2785 = vadd.f32 0.0, %v2784
        %v2786 = vpop.f32.mrb[0].mxu0
        %v2787 = vpop.f32.mrb[0].mxu0
        %v2788 = vadd.f32 0.0, %v2787
        %v2789 = vpop.f32.mrb[0].mxu0
        %2790 = vmatprep.mubr.bf16.mxu0 0
        %2791 = vmatmul.mubr.bf16.gmra.mrb[0].mxu0 %v2697
        %v2792 = vpop.f32.mrb[0].mxu0
        %v2793 = vadd.f32 0.0, %v2792
        %v2794 = vpop.f32.mrb[0].mxu0
        %v2795 = vpop.f32.mrb[0].mxu0
        %v2796 = vadd.f32 0.0, %v2795
        %v2797 = vpop.f32.mrb[0].mxu0
        %2798 = vdwg.mxu0
        %v2800 = vsel %vm747, %v2656, 0
        %v2803 = vsel %vm747, %v2658, 0
        %v2806 = vsel %vm747, %v2660, 0
        %v2809 = vsel %vm747, %v2662, 0
        %v2812 = vsel %vm747, %v2664, 0
        %v2815 = vsel %vm747, %v2666, 0
        %v2818 = vsel %vm747, %v2668, 0
        %v2821 = vsel %vm844, %v2672, 0
        %2823 = vmatprep.subr.bf16.mxu0 0
        %2824 = vmatpush1.bf16.msra.mxu0 %v2821
        %2825 = vmatprep.subr.bf16.mxu0 0
        %2826 = vmatpush1.bf16.msra.mxu0 0
        %2827 = vmatprep.subr.bf16.mxu0 0
        %2828 = vmatpush1.bf16.msra.mxu0 0
        %2829 = vmatprep.subr.bf16.mxu0 0
        %2830 = vmatpush1.bf16.msra.mxu0 0
        %2831 = vmatprep.subr.bf16.mxu0 0
        %2832 = vmatpush1.bf16.msra.mxu0 0
        %2833 = vmatprep.subr.bf16.mxu0 0
        %2834 = vmatpush1.bf16.msra.mxu0 0
        %2835 = vmatprep.subr.bf16.mxu0 0
        %2836 = vmatpush1.bf16.msra.mxu0 0
        %2837 = vmatprep.subr.bf16.mxu0 0
        %2838 = vmatpush1.bf16.msra.mxu0 0
        %2839 = vmatprep.subr.bf16.mxu0 0
        %2840 = vmatpush1.bf16.msra.mxu0 0
        %2841 = vmatprep.subr.bf16.mxu0 0
        %2842 = vmatpush1.bf16.msra.mxu0 0
        %2843 = vmatprep.subr.bf16.mxu0 0
        %2844 = vmatpush1.bf16.msra.mxu0 0
        %2845 = vmatprep.subr.bf16.mxu0 0
        %2846 = vmatpush1.bf16.msra.mxu0 0
        %2847 = vmatprep.subr.bf16.mxu0 0
        %2848 = vmatpush1.bf16.msra.mxu0 0
        %2849 = vmatprep.subr.bf16.mxu0 0
        %2850 = vmatpush1.bf16.msra.mxu0 0
        %2851 = vmatprep.subr.bf16.mxu0 0
        %2852 = vmatpush1.bf16.msra.mxu0 0
        %2853 = vmatprep.subr.bf16.mxu0 0
        %2854 = vmatpush1.bf16.msra.mxu0 0
        %2855 = vmatprep.mubr.bf16.mxu0 0
        %2856 = vmatmul.mubr.bf16.gmra.mrb[0].mxu0 %v1138
        %v2857 = vpop.f32.mrb[0].mxu0
        %v2858 = vadd.f32 %v2737, %v2857
        %v2859 = vpop.f32.mrb[0].mxu0
        %v2860 = vpop.f32.mrb[0].mxu0
        %v2861 = vadd.f32 %v2740, %v2860
        %v2862 = vpop.f32.mrb[0].mxu0
        %2863 = vmatprep.mubr.bf16.mxu0 0
        %2864 = vmatmul.mubr.bf16.gmra.mrb[0].mxu0 %v2800
        %v2865 = vpop.f32.mrb[0].mxu0
        %v2866 = vadd.f32 %v2745, %v2865
        %v2867 = vpop.f32.mrb[0].mxu0
        %v2868 = vpop.f32.mrb[0].mxu0
        %v2869 = vadd.f32 %v2748, %v2868
        %v2870 = vpop.f32.mrb[0].mxu0
        %2871 = vmatprep.mubr.bf16.mxu0 0
        %2872 = vmatmul.mubr.bf16.gmra.mrb[0].mxu0 %v2803
        %v2873 = vpop.f32.mrb[0].mxu0
        %v2874 = vadd.f32 %v2753, %v2873
        %v2875 = vpop.f32.mrb[0].mxu0
        %v2876 = vpop.f32.mrb[0].mxu0
        %v2877 = vadd.f32 %v2756, %v2876
        %v2878 = vpop.f32.mrb[0].mxu0
        %2879 = vmatprep.mubr.bf16.mxu0 0
        %2880 = vmatmul.mubr.bf16.gmra.mrb[0].mxu0 %v2806
        %v2881 = vpop.f32.mrb[0].mxu0
        %v2882 = vadd.f32 %v2761, %v2881
        %v2883 = vpop.f32.mrb[0].mxu0
        %v2884 = vpop.f32.mrb[0].mxu0
        %v2885 = vadd.f32 %v2764, %v2884
        %v2886 = vpop.f32.mrb[0].mxu0
        %2887 = vmatprep.mubr.bf16.mxu0 0
        %2888 = vmatmul.mubr.bf16.gmra.mrb[0].mxu0 %v2809
        %v2889 = vpop.f32.mrb[0].mxu0
        %v2890 = vadd.f32 %v2769, %v2889
        %v2891 = vpop.f32.mrb[0].mxu0
        %v2892 = vpop.f32.mrb[0].mxu0
        %v2893 = vadd.f32 %v2772, %v2892
        %v2894 = vpop.f32.mrb[0].mxu0
        %2895 = vmatprep.mubr.bf16.mxu0 0
        %2896 = vmatmul.mubr.bf16.gmra.mrb[0].mxu0 %v2812
        %v2897 = vpop.f32.mrb[0].mxu0
        %v2898 = vadd.f32 %v2777, %v2897
        %v2899 = vpop.f32.mrb[0].mxu0
        %v2900 = vpop.f32.mrb[0].mxu0
        %v2901 = vadd.f32 %v2780, %v2900
        %v2902 = vpop.f32.mrb[0].mxu0
        %2903 = vmatprep.mubr.bf16.mxu0 0
        %2904 = vmatmul.mubr.bf16.gmra.mrb[0].mxu0 %v2815
        %v2905 = vpop.f32.mrb[0].mxu0
        %v2906 = vadd.f32 %v2785, %v2905
        %v2907 = vpop.f32.mrb[0].mxu0
        %v2908 = vpop.f32.mrb[0].mxu0
        %v2909 = vadd.f32 %v2788, %v2908
        %v2910 = vpop.f32.mrb[0].mxu0
        %2911 = vmatprep.mubr.bf16.mxu0 0
        %2912 = vmatmul.mubr.bf16.gmra.mrb[0].mxu0 %v2818
        %v2913 = vpop.f32.mrb[0].mxu0
        %v2914 = vadd.f32 %v2793, %v2913
        %v2915 = vpop.f32.mrb[0].mxu0
        %v2916 = vpop.f32.mrb[0].mxu0
        %v2917 = vadd.f32 %v2796, %v2916
        %v2918 = vpop.f32.mrb[0].mxu0
        %2919 = vdwg.mxu0
        %s2920 = scalar_lea.vmem %s1, 32
        %v2921 = vld [vmem:[%s2920] sm:$0xf]
        %v2923 = vsel %vm747, %v2670, 0
        %v2926 = vsel %vm844, %v2921, 0
        %2928 = vmatprep.subr.bf16.mxu0 0
        %2929 = vmatpush1.bf16.msra.mxu0 %v2926
        %2930 = vmatprep.subr.bf16.mxu0 0
        %2931 = vmatpush1.bf16.msra.mxu0 0
        %2932 = vmatprep.subr.bf16.mxu0 0
        %2933 = vmatpush1.bf16.msra.mxu0 0
        %2934 = vmatprep.subr.bf16.mxu0 0
        %2935 = vmatpush1.bf16.msra.mxu0 0
        %2936 = vmatprep.subr.bf16.mxu0 0
        %2937 = vmatpush1.bf16.msra.mxu0 0
        %2938 = vmatprep.subr.bf16.mxu0 0
        %2939 = vmatpush1.bf16.msra.mxu0 0
        %2940 = vmatprep.subr.bf16.mxu0 0
        %2941 = vmatpush1.bf16.msra.mxu0 0
        %2942 = vmatprep.subr.bf16.mxu0 0
        %2943 = vmatpush1.bf16.msra.mxu0 0
        %2944 = vmatprep.subr.bf16.mxu0 0
        %2945 = vmatpush1.bf16.msra.mxu0 0
        %2946 = vmatprep.subr.bf16.mxu0 0
        %2947 = vmatpush1.bf16.msra.mxu0 0
        %2948 = vmatprep.subr.bf16.mxu0 0
        %2949 = vmatpush1.bf16.msra.mxu0 0
        %2950 = vmatprep.subr.bf16.mxu0 0
        %2951 = vmatpush1.bf16.msra.mxu0 0
        %2952 = vmatprep.subr.bf16.mxu0 0
        %2953 = vmatpush1.bf16.msra.mxu0 0
        %2954 = vmatprep.subr.bf16.mxu0 0
        %2955 = vmatpush1.bf16.msra.mxu0 0
        %2956 = vmatprep.subr.bf16.mxu0 0
        %2957 = vmatpush1.bf16.msra.mxu0 0
        %2958 = vmatprep.subr.bf16.mxu0 0
        %2959 = vmatpush1.bf16.msra.mxu0 0
        %2960 = vmatprep.mubr.bf16.mxu0 0
        %2961 = vmatmul.mubr.bf16.gmra.mrb[0].mxu0 %v2800
        %v2962 = vpop.f32.mrb[0].mxu0
        %v2963 = vadd.f32 0.0, %v2962
        %v2964 = vpop.f32.mrb[0].mxu0
        %v2965 = vpop.f32.mrb[0].mxu0
        %v2966 = vadd.f32 0.0, %v2965
        %v2967 = vpop.f32.mrb[0].mxu0
        %2968 = vmatprep.mubr.bf16.mxu0 0
        %2969 = vmatmul.mubr.bf16.gmra.mrb[0].mxu0 %v2803
        %v2970 = vpop.f32.mrb[0].mxu0
        %v2971 = vadd.f32 0.0, %v2970
        %v2972 = vpop.f32.mrb[0].mxu0
        %v2973 = vpop.f32.mrb[0].mxu0
        %v2974 = vadd.f32 0.0, %v2973
        %v2975 = vpop.f32.mrb[0].mxu0
        %2976 = vmatprep.mubr.bf16.mxu0 0
        %2977 = vmatmul.mubr.bf16.gmra.mrb[0].mxu0 %v2806
        %v2978 = vpop.f32.mrb[0].mxu0
        %v2979 = vadd.f32 0.0, %v2978
        %v2980 = vpop.f32.mrb[0].mxu0
        %v2981 = vpop.f32.mrb[0].mxu0
        %v2982 = vadd.f32 0.0, %v2981
        %v2983 = vpop.f32.mrb[0].mxu0
        %2984 = vmatprep.mubr.bf16.mxu0 0
        %2985 = vmatmul.mubr.bf16.gmra.mrb[0].mxu0 %v2809
        %v2986 = vpop.f32.mrb[0].mxu0
        %v2987 = vadd.f32 0.0, %v2986
        %v2988 = vpop.f32.mrb[0].mxu0
        %v2989 = vpop.f32.mrb[0].mxu0
        %v2990 = vadd.f32 0.0, %v2989
        %v2991 = vpop.f32.mrb[0].mxu0
        %2992 = vmatprep.mubr.bf16.mxu0 0
        %2993 = vmatmul.mubr.bf16.gmra.mrb[0].mxu0 %v2812
        %v2994 = vpop.f32.mrb[0].mxu0
        %v2995 = vadd.f32 0.0, %v2994
        %v2996 = vpop.f32.mrb[0].mxu0
        %v2997 = vpop.f32.mrb[0].mxu0
        %v2998 = vadd.f32 0.0, %v2997
        %v2999 = vpop.f32.mrb[0].mxu0
        %3000 = vmatprep.mubr.bf16.mxu0 0
        %3001 = vmatmul.mubr.bf16.gmra.mrb[0].mxu0 %v2815
        %v3002 = vpop.f32.mrb[0].mxu0
        %v3003 = vadd.f32 0.0, %v3002
        %v3004 = vpop.f32.mrb[0].mxu0
        %v3005 = vpop.f32.mrb[0].mxu0
        %v3006 = vadd.f32 0.0, %v3005
        %v3007 = vpop.f32.mrb[0].mxu0
        %3008 = vmatprep.mubr.bf16.mxu0 0
        %3009 = vmatmul.mubr.bf16.gmra.mrb[0].mxu0 %v2818
        %v3010 = vpop.f32.mrb[0].mxu0
        %v3011 = vadd.f32 0.0, %v3010
        %v3012 = vpop.f32.mrb[0].mxu0
        %v3013 = vpop.f32.mrb[0].mxu0
        %v3014 = vadd.f32 0.0, %v3013
        %v3015 = vpop.f32.mrb[0].mxu0
        %3016 = vmatprep.mubr.bf16.mxu0 0
        %3017 = vmatmul.mubr.bf16.gmra.mrb[0].mxu0 %v2923
        %v3018 = vpop.f32.mrb[0].mxu0
        %v3019 = vadd.f32 0.0, %v3018
        %v3020 = vpop.f32.mrb[0].mxu0
        %v3021 = vpop.f32.mrb[0].mxu0
        %v3022 = vadd.f32 0.0, %v3021
        %v3023 = vpop.f32.mrb[0].mxu0
        %3024 = vdwg.mxu0
        %v3025 = vadd.f32 %v2858, %v2963
        %v3026 = vadd.f32 %v2861, %v2966
        %v3027 = vadd.f32 %v2866, %v2971
        %v3028 = vadd.f32 %v2869, %v2974
        %v3029 = vadd.f32 %v2874, %v2979
        %v3030 = vadd.f32 %v2877, %v2982
        %v3031 = vadd.f32 %v2882, %v2987
        %v3032 = vadd.f32 %v2885, %v2990
        %v3033 = vadd.f32 %v2890, %v2995
        %v3034 = vadd.f32 %v2893, %v2998
        %v3035 = vadd.f32 %v2898, %v3003
        %v3036 = vadd.f32 %v2901, %v3006
        %v3037 = vadd.f32 %v2906, %v3011
        %v3038 = vadd.f32 %v2909, %v3014
        %v3039 = vadd.f32 %v2914, %v3019
        %v3040 = vadd.f32 %v2917, %v3022
        %s3041 = scalar_lea.vmem %s2, 2
        %v3042 = vld [vmem:[%s3041] sm:$0x1]
        %v3044 = vlaneseq
        %v3045 = vshrl.u32 %v3044, 7
        %v3046 = vsub.s32 0, %v3045
        %v3047 = vrot.slane %v3042, %v3046
        %v3049 = vadd.f32 %v3025, %v3047
        %v3050 = vadd.f32 %v3026, %v3047
        %v3051 = vadd.f32 %v3027, %v3047
        %v3052 = vadd.f32 %v3028, %v3047
        %v3053 = vadd.f32 %v3029, %v3047
        %v3054 = vadd.f32 %v3030, %v3047
        %v3055 = vadd.f32 %v3031, %v3047
        %v3056 = vadd.f32 %v3032, %v3047
        %v3057 = vadd.f32 %v3033, %v3047
        %v3058 = vadd.f32 %v3034, %v3047
        %v3059 = vadd.f32 %v3035, %v3047
        %v3060 = vadd.f32 %v3036, %v3047
        %v3061 = vadd.f32 %v3037, %v3047
        %v3062 = vadd.f32 %v3038, %v3047
        %v3063 = vadd.f32 %v3039, %v3047
        %v3064 = vadd.f32 %v3040, %v3047
        %v3065 = vmax.f32 %v3049, 0.0
        %v3066 = vmax.f32 %v3050, 0.0
        %v3067 = vmax.f32 %v3051, 0.0
        %v3068 = vmax.f32 %v3052, 0.0
        %v3069 = vmax.f32 %v3053, 0.0
        %v3070 = vmax.f32 %v3054, 0.0
        %v3071 = vmax.f32 %v3055, 0.0
        %v3072 = vmax.f32 %v3056, 0.0
        %v3073 = vmax.f32 %v3057, 0.0
        %v3074 = vmax.f32 %v3058, 0.0
        %v3075 = vmax.f32 %v3059, 0.0
        %v3076 = vmax.f32 %v3060, 0.0
        %v3077 = vmax.f32 %v3061, 0.0
        %v3078 = vmax.f32 %v3062, 0.0
        %v3079 = vmax.f32 %v3063, 0.0
        %v3080 = vmax.f32 %v3064, 0.0
        %v3081 = vpack.c.bf16 %v3066, %v3065
        %v3082 = vpack.c.bf16 %v3068, %v3067
        %v3083 = vpack.c.bf16 %v3070, %v3069
        %v3084 = vpack.c.bf16 %v3072, %v3071
        %v3085 = vpack.c.bf16 %v3074, %v3073
        %v3086 = vpack.c.bf16 %v3076, %v3075
        %v3087 = vpack.c.bf16 %v3078, %v3077
        %v3088 = vpack.c.bf16 %v3080, %v3079
        %s3089 = scalar_lea.vmem %s1, 36
        %v3090 = vld [vmem:[%s3089] sm:$0xf]
        %s3091 = scalar_lea.vmem %s1, 40
        %v3092 = vld [vmem:[%s3091] sm:$0xf]
        %v3094 = vsel %vm747, %v3081, 0
        %v3097 = vsel %vm747, %v3083, 0
        %v3100 = vsel %vm747, %v3085, 0
        %v3103 = vsel %vm747, %v3087, 0
        %v3106 = vsel %vm844, %v3092, 0
        %3108 = vmatprep.subr.bf16.mxu0 0
        %3109 = vmatpush1.bf16.msra.mxu0 %v3106
        %3110 = vmatprep.subr.bf16.mxu0 0
        %3111 = vmatpush1.bf16.msra.mxu0 0
        %3112 = vmatprep.subr.bf16.mxu0 0
        %3113 = vmatpush1.bf16.msra.mxu0 0
        %3114 = vmatprep.subr.bf16.mxu0 0
        %3115 = vmatpush1.bf16.msra.mxu0 0
        %3116 = vmatprep.subr.bf16.mxu0 0
        %3117 = vmatpush1.bf16.msra.mxu0 0
        %3118 = vmatprep.subr.bf16.mxu0 0
        %3119 = vmatpush1.bf16.msra.mxu0 0
        %3120 = vmatprep.subr.bf16.mxu0 0
        %3121 = vmatpush1.bf16.msra.mxu0 0
        %3122 = vmatprep.subr.bf16.mxu0 0
        %3123 = vmatpush1.bf16.msra.mxu0 0
        %3124 = vmatprep.subr.bf16.mxu0 0
        %3125 = vmatpush1.bf16.msra.mxu0 0
        %3126 = vmatprep.subr.bf16.mxu0 0
        %3127 = vmatpush1.bf16.msra.mxu0 0
        %3128 = vmatprep.subr.bf16.mxu0 0
        %3129 = vmatpush1.bf16.msra.mxu0 0
        %3130 = vmatprep.subr.bf16.mxu0 0
        %3131 = vmatpush1.bf16.msra.mxu0 0
        %3132 = vmatprep.subr.bf16.mxu0 0
        %3133 = vmatpush1.bf16.msra.mxu0 0
        %3134 = vmatprep.subr.bf16.mxu0 0
        %3135 = vmatpush1.bf16.msra.mxu0 0
        %3136 = vmatprep.subr.bf16.mxu0 0
        %3137 = vmatpush1.bf16.msra.mxu0 0
        %3138 = vmatprep.subr.bf16.mxu0 0
        %3139 = vmatpush1.bf16.msra.mxu0 0
        %3140 = vmatprep.mubr.bf16.mxu0 0
        %3141 = vmatmul.mubr.bf16.gmra.mrb[0].mxu0 %v3094
        %v3142 = vpop.f32.mrb[0].mxu0
        %v3143 = vadd.f32 0.0, %v3142
        %v3144 = vpop.f32.mrb[0].mxu0
        %v3145 = vpop.f32.mrb[0].mxu0
        %v3146 = vadd.f32 0.0, %v3145
        %v3147 = vpop.f32.mrb[0].mxu0
        %3148 = vmatprep.mubr.bf16.mxu0 0
        %3149 = vmatmul.mubr.bf16.gmra.mrb[0].mxu0 %v3097
        %v3150 = vpop.f32.mrb[0].mxu0
        %v3151 = vadd.f32 0.0, %v3150
        %v3152 = vpop.f32.mrb[0].mxu0
        %v3153 = vpop.f32.mrb[0].mxu0
        %v3154 = vadd.f32 0.0, %v3153
        %v3155 = vpop.f32.mrb[0].mxu0
        %3156 = vmatprep.mubr.bf16.mxu0 0
        %3157 = vmatmul.mubr.bf16.gmra.mrb[0].mxu0 %v3100
        %v3158 = vpop.f32.mrb[0].mxu0
        %v3159 = vadd.f32 0.0, %v3158
        %v3160 = vpop.f32.mrb[0].mxu0
        %v3161 = vpop.f32.mrb[0].mxu0
        %v3162 = vadd.f32 0.0, %v3161
        %v3163 = vpop.f32.mrb[0].mxu0
        %3164 = vmatprep.mubr.bf16.mxu0 0
        %3165 = vmatmul.mubr.bf16.gmra.mrb[0].mxu0 %v3103
        %v3166 = vpop.f32.mrb[0].mxu0
        %v3167 = vadd.f32 0.0, %v3166
        %v3168 = vpop.f32.mrb[0].mxu0
        %v3169 = vpop.f32.mrb[0].mxu0
        %v3170 = vadd.f32 0.0, %v3169
        %v3171 = vpop.f32.mrb[0].mxu0
        %3172 = vdwg.mxu0
        %v3174 = vsel %vm747, %v3082, 0
        %v3177 = vsel %vm747, %v3084, 0
        %v3180 = vsel %vm747, %v3086, 0
        %v3183 = vsel %vm844, %v3090, 0
        %3185 = vmatprep.subr.bf16.mxu0 0
        %3186 = vmatpush1.bf16.msra.mxu0 %v3183
        %3187 = vmatprep.subr.bf16.mxu0 0
        %3188 = vmatpush1.bf16.msra.mxu0 0
        %3189 = vmatprep.subr.bf16.mxu0 0
        %3190 = vmatpush1.bf16.msra.mxu0 0
        %3191 = vmatprep.subr.bf16.mxu0 0
        %3192 = vmatpush1.bf16.msra.mxu0 0
        %3193 = vmatprep.subr.bf16.mxu0 0
        %3194 = vmatpush1.bf16.msra.mxu0 0
        %3195 = vmatprep.subr.bf16.mxu0 0
        %3196 = vmatpush1.bf16.msra.mxu0 0
        %3197 = vmatprep.subr.bf16.mxu0 0
        %3198 = vmatpush1.bf16.msra.mxu0 0
        %3199 = vmatprep.subr.bf16.mxu0 0
        %3200 = vmatpush1.bf16.msra.mxu0 0
        %3201 = vmatprep.subr.bf16.mxu0 0
        %3202 = vmatpush1.bf16.msra.mxu0 0
        %3203 = vmatprep.subr.bf16.mxu0 0
        %3204 = vmatpush1.bf16.msra.mxu0 0
        %3205 = vmatprep.subr.bf16.mxu0 0
        %3206 = vmatpush1.bf16.msra.mxu0 0
        %3207 = vmatprep.subr.bf16.mxu0 0
        %3208 = vmatpush1.bf16.msra.mxu0 0
        %3209 = vmatprep.subr.bf16.mxu0 0
        %3210 = vmatpush1.bf16.msra.mxu0 0
        %3211 = vmatprep.subr.bf16.mxu0 0
        %3212 = vmatpush1.bf16.msra.mxu0 0
        %3213 = vmatprep.subr.bf16.mxu0 0
        %3214 = vmatpush1.bf16.msra.mxu0 0
        %3215 = vmatprep.subr.bf16.mxu0 0
        %3216 = vmatpush1.bf16.msra.mxu0 0
        %3217 = vmatprep.mubr.bf16.mxu0 0
        %3218 = vmatmul.mubr.bf16.gmra.mrb[0].mxu0 %v1138
        %v3219 = vpop.f32.mrb[0].mxu0
        %v3220 = vadd.f32 %v3143, %v3219
        %v3221 = vpop.f32.mrb[0].mxu0
        %v3222 = vpop.f32.mrb[0].mxu0
        %v3223 = vadd.f32 %v3146, %v3222
        %v3224 = vpop.f32.mrb[0].mxu0
        %3225 = vmatprep.mubr.bf16.mxu0 0
        %3226 = vmatmul.mubr.bf16.gmra.mrb[0].mxu0 %v3174
        %v3227 = vpop.f32.mrb[0].mxu0
        %v3228 = vadd.f32 %v3151, %v3227
        %v3229 = vpop.f32.mrb[0].mxu0
        %v3230 = vpop.f32.mrb[0].mxu0
        %v3231 = vadd.f32 %v3154, %v3230
        %v3232 = vpop.f32.mrb[0].mxu0
        %3233 = vmatprep.mubr.bf16.mxu0 0
        %3234 = vmatmul.mubr.bf16.gmra.mrb[0].mxu0 %v3177
        %v3235 = vpop.f32.mrb[0].mxu0
        %v3236 = vadd.f32 %v3159, %v3235
        %v3237 = vpop.f32.mrb[0].mxu0
        %v3238 = vpop.f32.mrb[0].mxu0
        %v3239 = vadd.f32 %v3162, %v3238
        %v3240 = vpop.f32.mrb[0].mxu0
        %3241 = vmatprep.mubr.bf16.mxu0 0
        %3242 = vmatmul.mubr.bf16.gmra.mrb[0].mxu0 %v3180
        %v3243 = vpop.f32.mrb[0].mxu0
        %v3244 = vadd.f32 %v3167, %v3243
        %v3245 = vpop.f32.mrb[0].mxu0
        %v3246 = vpop.f32.mrb[0].mxu0
        %v3247 = vadd.f32 %v3170, %v3246
        %v3248 = vpop.f32.mrb[0].mxu0
        %3249 = vdwg.mxu0
        %s3250 = scalar_lea.vmem %s1, 44
        %v3251 = vld [vmem:[%s3250] sm:$0xf]
        %v3253 = vsel %vm747, %v3088, 0
        %v3256 = vsel %vm844, %v3251, 0
        %3258 = vmatprep.subr.bf16.mxu0 0
        %3259 = vmatpush1.bf16.msra.mxu0 %v3256
        %3260 = vmatprep.subr.bf16.mxu0 0
        %3261 = vmatpush1.bf16.msra.mxu0 0
        %3262 = vmatprep.subr.bf16.mxu0 0
        %3263 = vmatpush1.bf16.msra.mxu0 0
        %3264 = vmatprep.subr.bf16.mxu0 0
        %3265 = vmatpush1.bf16.msra.mxu0 0
        %3266 = vmatprep.subr.bf16.mxu0 0
        %3267 = vmatpush1.bf16.msra.mxu0 0
        %3268 = vmatprep.subr.bf16.mxu0 0
        %3269 = vmatpush1.bf16.msra.mxu0 0
        %3270 = vmatprep.subr.bf16.mxu0 0
        %3271 = vmatpush1.bf16.msra.mxu0 0
        %3272 = vmatprep.subr.bf16.mxu0 0
        %3273 = vmatpush1.bf16.msra.mxu0 0
        %3274 = vmatprep.subr.bf16.mxu0 0
        %3275 = vmatpush1.bf16.msra.mxu0 0
        %3276 = vmatprep.subr.bf16.mxu0 0
        %3277 = vmatpush1.bf16.msra.mxu0 0
        %3278 = vmatprep.subr.bf16.mxu0 0
        %3279 = vmatpush1.bf16.msra.mxu0 0
        %3280 = vmatprep.subr.bf16.mxu0 0
        %3281 = vmatpush1.bf16.msra.mxu0 0
        %3282 = vmatprep.subr.bf16.mxu0 0
        %3283 = vmatpush1.bf16.msra.mxu0 0
        %3284 = vmatprep.subr.bf16.mxu0 0
        %3285 = vmatpush1.bf16.msra.mxu0 0
        %3286 = vmatprep.subr.bf16.mxu0 0
        %3287 = vmatpush1.bf16.msra.mxu0 0
        %3288 = vmatprep.subr.bf16.mxu0 0
        %3289 = vmatpush1.bf16.msra.mxu0 0
        %3290 = vmatprep.mubr.bf16.mxu0 0
        %3291 = vmatmul.mubr.bf16.gmra.mrb[0].mxu0 %v3174
        %v3292 = vpop.f32.mrb[0].mxu0
        %v3293 = vadd.f32 0.0, %v3292
        %v3294 = vpop.f32.mrb[0].mxu0
        %v3295 = vpop.f32.mrb[0].mxu0
        %v3296 = vadd.f32 0.0, %v3295
        %v3297 = vpop.f32.mrb[0].mxu0
        %3298 = vmatprep.mubr.bf16.mxu0 0
        %3299 = vmatmul.mubr.bf16.gmra.mrb[0].mxu0 %v3177
        %v3300 = vpop.f32.mrb[0].mxu0
        %v3301 = vadd.f32 0.0, %v3300
        %v3302 = vpop.f32.mrb[0].mxu0
        %v3303 = vpop.f32.mrb[0].mxu0
        %v3304 = vadd.f32 0.0, %v3303
        %v3305 = vpop.f32.mrb[0].mxu0
        %3306 = vmatprep.mubr.bf16.mxu0 0
        %3307 = vmatmul.mubr.bf16.gmra.mrb[0].mxu0 %v3180
        %v3308 = vpop.f32.mrb[0].mxu0
        %v3309 = vadd.f32 0.0, %v3308
        %v3310 = vpop.f32.mrb[0].mxu0
        %v3311 = vpop.f32.mrb[0].mxu0
        %v3312 = vadd.f32 0.0, %v3311
        %v3313 = vpop.f32.mrb[0].mxu0
        %3314 = vmatprep.mubr.bf16.mxu0 0
        %3315 = vmatmul.mubr.bf16.gmra.mrb[0].mxu0 %v3253
        %v3316 = vpop.f32.mrb[0].mxu0
        %v3317 = vadd.f32 0.0, %v3316
        %v3318 = vpop.f32.mrb[0].mxu0
        %v3319 = vpop.f32.mrb[0].mxu0
        %v3320 = vadd.f32 0.0, %v3319
        %v3321 = vpop.f32.mrb[0].mxu0
        %3322 = vdwg.mxu0
        %v3323 = vadd.f32 %v3220, %v3293
        %v3324 = vadd.f32 %v3223, %v3296
        %v3325 = vadd.f32 %v3228, %v3301
        %v3326 = vadd.f32 %v3231, %v3304
        %v3327 = vadd.f32 %v3236, %v3309
        %v3328 = vadd.f32 %v3239, %v3312
        %v3329 = vadd.f32 %v3244, %v3317
        %v3330 = vadd.f32 %v3247, %v3320
        %s3331 = scalar_lea.vmem %s2, 3
        %v3332 = vld [vmem:[%s3331] sm:$0x1]
        %v3334 = vlaneseq
        %v3335 = vshrl.u32 %v3334, 7
        %v3336 = vsub.s32 0, %v3335
        %v3337 = vrot.slane %v3332, %v3336
        %v3339 = vadd.f32 %v3323, %v3337
        %v3340 = vadd.f32 %v3324, %v3337
        %v3341 = vadd.f32 %v3325, %v3337
        %v3342 = vadd.f32 %v3326, %v3337
        %v3343 = vadd.f32 %v3327, %v3337
        %v3344 = vadd.f32 %v3328, %v3337
        %v3345 = vadd.f32 %v3329, %v3337
        %v3346 = vadd.f32 %v3330, %v3337
        %v3347 = vmax.f32 %v3339, 0.0
        %v3348 = vmax.f32 %v3340, 0.0
        %v3349 = vmax.f32 %v3341, 0.0
        %v3350 = vmax.f32 %v3342, 0.0
        %v3351 = vmax.f32 %v3343, 0.0
        %v3352 = vmax.f32 %v3344, 0.0
        %v3353 = vmax.f32 %v3345, 0.0
        %v3354 = vmax.f32 %v3346, 0.0
        %v3355 = vpack.c.bf16 %v3348, %v3347
        %v3356 = vpack.c.bf16 %v3350, %v3349
        %v3357 = vpack.c.bf16 %v3352, %v3351
        %v3358 = vpack.c.bf16 %v3354, %v3353
        %s3359 = scalar_lea.vmem %s1, 48
        %v3360 = vld [vmem:[%s3359] sm:$0xf]
        %s3361 = scalar_lea.vmem %s1, 52
        %v3362 = vld [vmem:[%s3361] sm:$0xf]
        %v3364 = vsel %vm747, %v3355, 0
        %v3367 = vsel %vm747, %v3357, 0
        %v3370 = vsel %vm844, %v3362, 0
        %3372 = vmatprep.subr.bf16.mxu0 0
        %3373 = vmatpush1.bf16.msra.mxu0 %v3370
        %3374 = vmatprep.subr.bf16.mxu0 0
        %3375 = vmatpush1.bf16.msra.mxu0 0
        %3376 = vmatprep.subr.bf16.mxu0 0
        %3377 = vmatpush1.bf16.msra.mxu0 0
        %3378 = vmatprep.subr.bf16.mxu0 0
        %3379 = vmatpush1.bf16.msra.mxu0 0
        %3380 = vmatprep.subr.bf16.mxu0 0
        %3381 = vmatpush1.bf16.msra.mxu0 0
        %3382 = vmatprep.subr.bf16.mxu0 0
        %3383 = vmatpush1.bf16.msra.mxu0 0
        %3384 = vmatprep.subr.bf16.mxu0 0
        %3385 = vmatpush1.bf16.msra.mxu0 0
        %3386 = vmatprep.subr.bf16.mxu0 0
        %3387 = vmatpush1.bf16.msra.mxu0 0
        %3388 = vmatprep.subr.bf16.mxu0 0
        %3389 = vmatpush1.bf16.msra.mxu0 0
        %3390 = vmatprep.subr.bf16.mxu0 0
        %3391 = vmatpush1.bf16.msra.mxu0 0
        %3392 = vmatprep.subr.bf16.mxu0 0
        %3393 = vmatpush1.bf16.msra.mxu0 0
        %3394 = vmatprep.subr.bf16.mxu0 0
        %3395 = vmatpush1.bf16.msra.mxu0 0
        %3396 = vmatprep.subr.bf16.mxu0 0
        %3397 = vmatpush1.bf16.msra.mxu0 0
        %3398 = vmatprep.subr.bf16.mxu0 0
        %3399 = vmatpush1.bf16.msra.mxu0 0
        %3400 = vmatprep.subr.bf16.mxu0 0
        %3401 = vmatpush1.bf16.msra.mxu0 0
        %3402 = vmatprep.subr.bf16.mxu0 0
        %3403 = vmatpush1.bf16.msra.mxu0 0
        %3404 = vmatprep.mubr.bf16.mxu0 0
        %3405 = vmatmul.mubr.bf16.gmra.mrb[0].mxu0 %v3364
        %v3406 = vpop.f32.mrb[0].mxu0
        %v3407 = vadd.f32 0.0, %v3406
        %v3408 = vpop.f32.mrb[0].mxu0
        %v3409 = vpop.f32.mrb[0].mxu0
        %v3410 = vadd.f32 0.0, %v3409
        %v3411 = vpop.f32.mrb[0].mxu0
        %3412 = vmatprep.mubr.bf16.mxu0 0
        %3413 = vmatmul.mubr.bf16.gmra.mrb[0].mxu0 %v3367
        %v3414 = vpop.f32.mrb[0].mxu0
        %v3415 = vadd.f32 0.0, %v3414
        %v3416 = vpop.f32.mrb[0].mxu0
        %v3417 = vpop.f32.mrb[0].mxu0
        %v3418 = vadd.f32 0.0, %v3417
        %v3419 = vpop.f32.mrb[0].mxu0
        %3420 = vdwg.mxu0
        %v3422 = vsel %vm747, %v3356, 0
        %v3425 = vsel %vm844, %v3360, 0
        %3427 = vmatprep.subr.bf16.mxu0 0
        %3428 = vmatpush1.bf16.msra.mxu0 %v3425
        %3429 = vmatprep.subr.bf16.mxu0 0
        %3430 = vmatpush1.bf16.msra.mxu0 0
        %3431 = vmatprep.subr.bf16.mxu0 0
        %3432 = vmatpush1.bf16.msra.mxu0 0
        %3433 = vmatprep.subr.bf16.mxu0 0
        %3434 = vmatpush1.bf16.msra.mxu0 0
        %3435 = vmatprep.subr.bf16.mxu0 0
        %3436 = vmatpush1.bf16.msra.mxu0 0
        %3437 = vmatprep.subr.bf16.mxu0 0
        %3438 = vmatpush1.bf16.msra.mxu0 0
        %3439 = vmatprep.subr.bf16.mxu0 0
        %3440 = vmatpush1.bf16.msra.mxu0 0
        %3441 = vmatprep.subr.bf16.mxu0 0
        %3442 = vmatpush1.bf16.msra.mxu0 0
        %3443 = vmatprep.subr.bf16.mxu0 0
        %3444 = vmatpush1.bf16.msra.mxu0 0
        %3445 = vmatprep.subr.bf16.mxu0 0
        %3446 = vmatpush1.bf16.msra.mxu0 0
        %3447 = vmatprep.subr.bf16.mxu0 0
        %3448 = vmatpush1.bf16.msra.mxu0 0
        %3449 = vmatprep.subr.bf16.mxu0 0
        %3450 = vmatpush1.bf16.msra.mxu0 0
        %3451 = vmatprep.subr.bf16.mxu0 0
        %3452 = vmatpush1.bf16.msra.mxu0 0
        %3453 = vmatprep.subr.bf16.mxu0 0
        %3454 = vmatpush1.bf16.msra.mxu0 0
        %3455 = vmatprep.subr.bf16.mxu0 0
        %3456 = vmatpush1.bf16.msra.mxu0 0
        %3457 = vmatprep.subr.bf16.mxu0 0
        %3458 = vmatpush1.bf16.msra.mxu0 0
        %3459 = vmatprep.mubr.bf16.mxu0 0
        %3460 = vmatmul.mubr.bf16.gmra.mrb[0].mxu0 %v1138
        %v3461 = vpop.f32.mrb[0].mxu0
        %v3462 = vadd.f32 %v3407, %v3461
        %v3463 = vpop.f32.mrb[0].mxu0
        %v3464 = vpop.f32.mrb[0].mxu0
        %v3465 = vadd.f32 %v3410, %v3464
        %v3466 = vpop.f32.mrb[0].mxu0
        %3467 = vmatprep.mubr.bf16.mxu0 0
        %3468 = vmatmul.mubr.bf16.gmra.mrb[0].mxu0 %v3422
        %v3469 = vpop.f32.mrb[0].mxu0
        %v3470 = vadd.f32 %v3415, %v3469
        %v3471 = vpop.f32.mrb[0].mxu0
        %v3472 = vpop.f32.mrb[0].mxu0
        %v3473 = vadd.f32 %v3418, %v3472
        %v3474 = vpop.f32.mrb[0].mxu0
        %3475 = vdwg.mxu0
        %s3476 = scalar_lea.vmem %s1, 56
        %v3477 = vld [vmem:[%s3476] sm:$0xf]
        %v3479 = vsel %vm747, %v3358, 0
        %v3482 = vsel %vm844, %v3477, 0
        %3484 = vmatprep.subr.bf16.mxu0 0
        %3485 = vmatpush1.bf16.msra.mxu0 %v3482
        %3486 = vmatprep.subr.bf16.mxu0 0
        %3487 = vmatpush1.bf16.msra.mxu0 0
        %3488 = vmatprep.subr.bf16.mxu0 0
        %3489 = vmatpush1.bf16.msra.mxu0 0
        %3490 = vmatprep.subr.bf16.mxu0 0
        %3491 = vmatpush1.bf16.msra.mxu0 0
        %3492 = vmatprep.subr.bf16.mxu0 0
        %3493 = vmatpush1.bf16.msra.mxu0 0
        %3494 = vmatprep.subr.bf16.mxu0 0
        %3495 = vmatpush1.bf16.msra.mxu0 0
        %3496 = vmatprep.subr.bf16.mxu0 0
        %3497 = vmatpush1.bf16.msra.mxu0 0
        %3498 = vmatprep.subr.bf16.mxu0 0
        %3499 = vmatpush1.bf16.msra.mxu0 0
        %3500 = vmatprep.subr.bf16.mxu0 0
        %3501 = vmatpush1.bf16.msra.mxu0 0
        %3502 = vmatprep.subr.bf16.mxu0 0
        %3503 = vmatpush1.bf16.msra.mxu0 0
        %3504 = vmatprep.subr.bf16.mxu0 0
        %3505 = vmatpush1.bf16.msra.mxu0 0
        %3506 = vmatprep.subr.bf16.mxu0 0
        %3507 = vmatpush1.bf16.msra.mxu0 0
        %3508 = vmatprep.subr.bf16.mxu0 0
        %3509 = vmatpush1.bf16.msra.mxu0 0
        %3510 = vmatprep.subr.bf16.mxu0 0
        %3511 = vmatpush1.bf16.msra.mxu0 0
        %3512 = vmatprep.subr.bf16.mxu0 0
        %3513 = vmatpush1.bf16.msra.mxu0 0
        %3514 = vmatprep.subr.bf16.mxu0 0
        %3515 = vmatpush1.bf16.msra.mxu0 0
        %3516 = vmatprep.mubr.bf16.mxu0 0
        %3517 = vmatmul.mubr.bf16.gmra.mrb[0].mxu0 %v3422
        %v3518 = vpop.f32.mrb[0].mxu0
        %v3519 = vadd.f32 0.0, %v3518
        %v3520 = vpop.f32.mrb[0].mxu0
        %v3521 = vpop.f32.mrb[0].mxu0
        %v3522 = vadd.f32 0.0, %v3521
        %v3523 = vpop.f32.mrb[0].mxu0
        %3524 = vmatprep.mubr.bf16.mxu0 0
        %3525 = vmatmul.mubr.bf16.gmra.mrb[0].mxu0 %v3479
        %v3526 = vpop.f32.mrb[0].mxu0
        %v3527 = vadd.f32 0.0, %v3526
        %v3528 = vpop.f32.mrb[0].mxu0
        %v3529 = vpop.f32.mrb[0].mxu0
        %v3530 = vadd.f32 0.0, %v3529
        %v3531 = vpop.f32.mrb[0].mxu0
        %3532 = vdwg.mxu0
        %v3533 = vadd.f32 %v3462, %v3519
        %v3534 = vadd.f32 %v3465, %v3522
        %v3535 = vadd.f32 %v3470, %v3527
        %v3536 = vadd.f32 %v3473, %v3530
        %s3537 = scalar_lea.vmem %s2, 4
        %v3538 = vld [vmem:[%s3537] sm:$0x1]
        %v3540 = vlaneseq
        %v3541 = vshrl.u32 %v3540, 7
        %v3542 = vsub.s32 0, %v3541
        %v3543 = vrot.slane %v3538, %v3542
        %v3545 = vadd.f32 %v3533, %v3543
        %v3546 = vadd.f32 %v3534, %v3543
        %v3547 = vadd.f32 %v3535, %v3543
        %v3548 = vadd.f32 %v3536, %v3543
        %v3549 = vmax.f32 %v3545, 0.0
        %v3550 = vmax.f32 %v3546, 0.0
        %v3551 = vmax.f32 %v3547, 0.0
        %v3552 = vmax.f32 %v3548, 0.0
        %v3553 = vpack.c.bf16 %v3550, %v3549
        %v3554 = vpack.c.bf16 %v3552, %v3551
        %s3555 = scalar_lea.vmem %s1, 60
        %v3556 = vld [vmem:[%s3555] sm:$0xf]
        %s3557 = scalar_lea.vmem %s1, 64
        %v3558 = vld [vmem:[%s3557] sm:$0xf]
        %v3560 = vsel %vm747, %v3553, 0
        %v3563 = vsel %vm844, %v3558, 0
        %3565 = vmatprep.subr.bf16.mxu0 0
        %3566 = vmatpush1.bf16.msra.mxu0 %v3563
        %3567 = vmatprep.subr.bf16.mxu0 0
        %3568 = vmatpush1.bf16.msra.mxu0 0
        %3569 = vmatprep.subr.bf16.mxu0 0
        %3570 = vmatpush1.bf16.msra.mxu0 0
        %3571 = vmatprep.subr.bf16.mxu0 0
        %3572 = vmatpush1.bf16.msra.mxu0 0
        %3573 = vmatprep.subr.bf16.mxu0 0
        %3574 = vmatpush1.bf16.msra.mxu0 0
        %3575 = vmatprep.subr.bf16.mxu0 0
        %3576 = vmatpush1.bf16.msra.mxu0 0
        %3577 = vmatprep.subr.bf16.mxu0 0
        %3578 = vmatpush1.bf16.msra.mxu0 0
        %3579 = vmatprep.subr.bf16.mxu0 0
        %3580 = vmatpush1.bf16.msra.mxu0 0
        %3581 = vmatprep.subr.bf16.mxu0 0
        %3582 = vmatpush1.bf16.msra.mxu0 0
        %3583 = vmatprep.subr.bf16.mxu0 0
        %3584 = vmatpush1.bf16.msra.mxu0 0
        %3585 = vmatprep.subr.bf16.mxu0 0
        %3586 = vmatpush1.bf16.msra.mxu0 0
        %3587 = vmatprep.subr.bf16.mxu0 0
        %3588 = vmatpush1.bf16.msra.mxu0 0
        %3589 = vmatprep.subr.bf16.mxu0 0
        %3590 = vmatpush1.bf16.msra.mxu0 0
        %3591 = vmatprep.subr.bf16.mxu0 0
        %3592 = vmatpush1.bf16.msra.mxu0 0
        %3593 = vmatprep.subr.bf16.mxu0 0
        %3594 = vmatpush1.bf16.msra.mxu0 0
        %3595 = vmatprep.subr.bf16.mxu0 0
        %3596 = vmatpush1.bf16.msra.mxu0 0
        %3597 = vmatprep.mubr.bf16.mxu0 0
        %3598 = vmatmul.mubr.bf16.gmra.mrb[0].mxu0 %v3560
        %v3599 = vpop.f32.mrb[0].mxu0
        %v3600 = vadd.f32 0.0, %v3599
        %v3601 = vpop.f32.mrb[0].mxu0
        %v3602 = vpop.f32.mrb[0].mxu0
        %v3603 = vadd.f32 0.0, %v3602
        %v3604 = vpop.f32.mrb[0].mxu0
        %3605 = vdwg.mxu0
        %v3607 = vsel %vm844, %v3556, 0
        %3609 = vmatprep.subr.bf16.mxu0 0
        %3610 = vmatpush1.bf16.msra.mxu0 %v3607
        %3611 = vmatprep.subr.bf16.mxu0 0
        %3612 = vmatpush1.bf16.msra.mxu0 0
        %3613 = vmatprep.subr.bf16.mxu0 0
        %3614 = vmatpush1.bf16.msra.mxu0 0
        %3615 = vmatprep.subr.bf16.mxu0 0
        %3616 = vmatpush1.bf16.msra.mxu0 0
        %3617 = vmatprep.subr.bf16.mxu0 0
        %3618 = vmatpush1.bf16.msra.mxu0 0
        %3619 = vmatprep.subr.bf16.mxu0 0
        %3620 = vmatpush1.bf16.msra.mxu0 0
        %3621 = vmatprep.subr.bf16.mxu0 0
        %3622 = vmatpush1.bf16.msra.mxu0 0
        %3623 = vmatprep.subr.bf16.mxu0 0
        %3624 = vmatpush1.bf16.msra.mxu0 0
        %3625 = vmatprep.subr.bf16.mxu0 0
        %3626 = vmatpush1.bf16.msra.mxu0 0
        %3627 = vmatprep.subr.bf16.mxu0 0
        %3628 = vmatpush1.bf16.msra.mxu0 0
        %3629 = vmatprep.subr.bf16.mxu0 0
        %3630 = vmatpush1.bf16.msra.mxu0 0
        %3631 = vmatprep.subr.bf16.mxu0 0
        %3632 = vmatpush1.bf16.msra.mxu0 0
        %3633 = vmatprep.subr.bf16.mxu0 0
        %3634 = vmatpush1.bf16.msra.mxu0 0
        %3635 = vmatprep.subr.bf16.mxu0 0
        %3636 = vmatpush1.bf16.msra.mxu0 0
        %3637 = vmatprep.subr.bf16.mxu0 0
        %3638 = vmatpush1.bf16.msra.mxu0 0
        %3639 = vmatprep.subr.bf16.mxu0 0
        %3640 = vmatpush1.bf16.msra.mxu0 0
        %3641 = vmatprep.mubr.bf16.mxu0 0
        %3642 = vmatmul.mubr.bf16.gmra.mrb[0].mxu0 %v1138
        %v3643 = vpop.f32.mrb[0].mxu0
        %v3644 = vadd.f32 %v3600, %v3643
        %v3645 = vpop.f32.mrb[0].mxu0
        %v3646 = vpop.f32.mrb[0].mxu0
        %v3647 = vadd.f32 %v3603, %v3646
        %v3648 = vpop.f32.mrb[0].mxu0
        %3649 = vdwg.mxu0
        %s3650 = scalar_lea.vmem %s1, 68
        %v3651 = vld [vmem:[%s3650] sm:$0xf]
        %v3653 = vsel %vm747, %v3554, 0
        %v3656 = vsel %vm844, %v3651, 0
        %3658 = vmatprep.subr.bf16.mxu0 0
        %3659 = vmatpush1.bf16.msra.mxu0 %v3656
        %3660 = vmatprep.subr.bf16.mxu0 0
        %3661 = vmatpush1.bf16.msra.mxu0 0
        %3662 = vmatprep.subr.bf16.mxu0 0
        %3663 = vmatpush1.bf16.msra.mxu0 0
        %3664 = vmatprep.subr.bf16.mxu0 0
        %3665 = vmatpush1.bf16.msra.mxu0 0
        %3666 = vmatprep.subr.bf16.mxu0 0
        %3667 = vmatpush1.bf16.msra.mxu0 0
        %3668 = vmatprep.subr.bf16.mxu0 0
        %3669 = vmatpush1.bf16.msra.mxu0 0
        %3670 = vmatprep.subr.bf16.mxu0 0
        %3671 = vmatpush1.bf16.msra.mxu0 0
        %3672 = vmatprep.subr.bf16.mxu0 0
        %3673 = vmatpush1.bf16.msra.mxu0 0
        %3674 = vmatprep.subr.bf16.mxu0 0
        %3675 = vmatpush1.bf16.msra.mxu0 0
        %3676 = vmatprep.subr.bf16.mxu0 0
        %3677 = vmatpush1.bf16.msra.mxu0 0
        %3678 = vmatprep.subr.bf16.mxu0 0
        %3679 = vmatpush1.bf16.msra.mxu0 0
        %3680 = vmatprep.subr.bf16.mxu0 0
        %3681 = vmatpush1.bf16.msra.mxu0 0
        %3682 = vmatprep.subr.bf16.mxu0 0
        %3683 = vmatpush1.bf16.msra.mxu0 0
        %3684 = vmatprep.subr.bf16.mxu0 0
        %3685 = vmatpush1.bf16.msra.mxu0 0
        %3686 = vmatprep.subr.bf16.mxu0 0
        %3687 = vmatpush1.bf16.msra.mxu0 0
        %3688 = vmatprep.subr.bf16.mxu0 0
        %3689 = vmatpush1.bf16.msra.mxu0 0
        %3690 = vmatprep.mubr.bf16.mxu0 0
        %3691 = vmatmul.mubr.bf16.gmra.mrb[0].mxu0 %v3653
        %v3692 = vpop.f32.mrb[0].mxu0
        %v3693 = vadd.f32 0.0, %v3692
        %v3694 = vpop.f32.mrb[0].mxu0
        %v3695 = vpop.f32.mrb[0].mxu0
        %v3696 = vadd.f32 0.0, %v3695
        %v3697 = vpop.f32.mrb[0].mxu0
        %3698 = vdwg.mxu0
        %v3699 = vadd.f32 %v3644, %v3693
        %v3700 = vadd.f32 %v3647, %v3696
        %s3701 = scalar_lea.vmem %s2, 5
        %v3702 = vld [vmem:[%s3701] sm:$0x1]
        %v3704 = vlaneseq
        %v3705 = vshrl.u32 %v3704, 7
        %v3706 = vsub.s32 0, %v3705
        %v3707 = vrot.slane %v3702, %v3706
        %v3709 = vadd.f32 %v3699, %v3707
        %v3710 = vadd.f32 %v3700, %v3707
        %v3711 = vpack.c.bf16 %v3710, %v3709
        %v3712 = vld [vmem:[%s3] sm:$0xf]
        %v3713 = vld [vmem:[%s4] sm:$0x1]
        %v3715 = vlaneseq
        %v3716 = vshrl.u32 %v3715, 7
        %v3717 = vsub.s32 0, %v3716
        %v3718 = vrot.slane %v3713, %v3717
        %v3721 = vsel %vm747, %v3711, 0
        %v3724 = vsel %vm844, %v3712, 0
        %3726 = vmatprep.subr.bf16.mxu0 0
        %3727 = vmatpush1.bf16.msra.mxu0 %v3724
        %3728 = vmatprep.subr.bf16.mxu0 0
        %3729 = vmatpush1.bf16.msra.mxu0 0
        %3730 = vmatprep.subr.bf16.mxu0 0
        %3731 = vmatpush1.bf16.msra.mxu0 0
        %3732 = vmatprep.subr.bf16.mxu0 0
        %3733 = vmatpush1.bf16.msra.mxu0 0
        %3734 = vmatprep.subr.bf16.mxu0 0
        %3735 = vmatpush1.bf16.msra.mxu0 0
        %3736 = vmatprep.subr.bf16.mxu0 0
        %3737 = vmatpush1.bf16.msra.mxu0 0
        %3738 = vmatprep.subr.bf16.mxu0 0
        %3739 = vmatpush1.bf16.msra.mxu0 0
        %3740 = vmatprep.subr.bf16.mxu0 0
        %3741 = vmatpush1.bf16.msra.mxu0 0
        %3742 = vmatprep.subr.bf16.mxu0 0
        %3743 = vmatpush1.bf16.msra.mxu0 0
        %3744 = vmatprep.subr.bf16.mxu0 0
        %3745 = vmatpush1.bf16.msra.mxu0 0
        %3746 = vmatprep.subr.bf16.mxu0 0
        %3747 = vmatpush1.bf16.msra.mxu0 0
        %3748 = vmatprep.subr.bf16.mxu0 0
        %3749 = vmatpush1.bf16.msra.mxu0 0
        %3750 = vmatprep.subr.bf16.mxu0 0
        %3751 = vmatpush1.bf16.msra.mxu0 0
        %3752 = vmatprep.subr.bf16.mxu0 0
        %3753 = vmatpush1.bf16.msra.mxu0 0
        %3754 = vmatprep.subr.bf16.mxu0 0
        %3755 = vmatpush1.bf16.msra.mxu0 0
        %3756 = vmatprep.subr.bf16.mxu0 0
        %3757 = vmatpush1.bf16.msra.mxu0 0
        %3758 = vmatprep.mubr.bf16.mxu0 0
        %3759 = vmatmul.mubr.bf16.gmra.mrb[0].mxu0 %v3721
        %v3760 = vpop.f32.mrb[0].mxu0
        %v3761 = vadd.f32 %v3718, %v3760
        %v3762 = vpop.f32.mrb[0].mxu0
        %v3763 = vpop.f32.mrb[0].mxu0
        %v3764 = vadd.f32 %v3718, %v3763
        %v3765 = vpop.f32.mrb[0].mxu0
        %3766 = vdwg.mxu0
        %v3767 = vpack.c.bf16 %v3764, %v3761
        %s3768 = scalar_lea.vmem %s3, 64
        %v3769 = vld [vmem:[%s3768] sm:$0xf]
        %v3770 = vld [vmem:[%s3768 + $0x4] sm:$0xf]
        %v3771 = vld [vmem:[%s3768 + $0x8] sm:$0xf]
        %v3772 = vld [vmem:[%s3768 + $0xc] sm:$0xf]
        %v3773 = vld [vmem:[%s3768 + $0x10] sm:$0xf]
        %v3774 = vld [vmem:[%s3768 + $0x14] sm:$0xf]
        %v3775 = vld [vmem:[%s3768 + $0x18] sm:$0xf]
        %v3776 = vld [vmem:[%s3768 + $0x1c] sm:$0xf]
        %v3777 = vld [vmem:[%s3768 + $0x20] sm:$0xf]
        %v3778 = vld [vmem:[%s3768 + $0x24] sm:$0xf]
        %v3779 = vld [vmem:[%s3768 + $0x28] sm:$0xf]
        %v3780 = vld [vmem:[%s3768 + $0x2c] sm:$0xf]
        %v3781 = vld [vmem:[%s3768 + $0x30] sm:$0xf]
        %v3782 = vld [vmem:[%s3768 + $0x34] sm:$0xf]
        %v3783 = vld [vmem:[%s3768 + $0x38] sm:$0xf]
        %v3784 = vld [vmem:[%s3768 + $0x3c] sm:$0xf]
        %s3785 = scalar_lea.vmem %s4, 1
        %v3786 = vld [vmem:[%s3785] sm:$0x1]
        %v3788 = vlaneseq
        %v3789 = vshrl.u32 %v3788, 7
        %v3790 = vsub.s32 0, %v3789
        %v3791 = vrot.slane %v3786, %v3790
        %v3809 = vunpack.c.l.b16 %v3769
        %v3810 = vunpack.c.l.b16 %v3770
        %v3811 = vunpack.c.l.b16 %v3771
        %v3812 = vunpack.c.l.b16 %v3772
        %v3813 = vunpack.c.l.b16 %v3773
        %v3814 = vunpack.c.l.b16 %v3774
        %v3815 = vunpack.c.l.b16 %v3775
        %v3816 = vunpack.c.l.b16 %v3776
        %v3817 = vunpack.c.l.b16 %v3777
        %v3818 = vunpack.c.l.b16 %v3778
        %v3819 = vunpack.c.l.b16 %v3779
        %v3820 = vunpack.c.l.b16 %v3780
        %v3821 = vunpack.c.l.b16 %v3781
        %v3822 = vunpack.c.l.b16 %v3782
        %v3823 = vunpack.c.l.b16 %v3783
        %v3824 = vunpack.c.l.b16 %v3784
        %v3825 = vpack.c.b16 %v3810, %v3809
        %v3826 = vpack.c.b16 %v3812, %v3811
        %v3827 = vpack.c.b16 %v3814, %v3813
        %v3828 = vpack.c.b16 %v3816, %v3815
        %v3829 = vpack.c.b16 %v3818, %v3817
        %v3830 = vpack.c.b16 %v3820, %v3819
        %v3831 = vpack.c.b16 %v3822, %v3821
        %v3832 = vpack.c.b16 %v3824, %v3823
        %3841 = vmatprep.subr.bf16.mxu0 0
        %3842 = vmatpush1.bf16.msra.mxu0 %v3825
        %3843 = vmatprep.subr.bf16.mxu0 0
        %3844 = vmatpush1.bf16.msra.mxu0 %v3826
        %3845 = vmatprep.subr.bf16.mxu0 0
        %3846 = vmatpush1.bf16.msra.mxu0 %v3827
        %3847 = vmatprep.subr.bf16.mxu0 0
        %3848 = vmatpush1.bf16.msra.mxu0 %v3828
        %3849 = vmatprep.subr.bf16.mxu0 0
        %3850 = vmatpush1.bf16.msra.mxu0 %v3829
        %3851 = vmatprep.subr.bf16.mxu0 0
        %3852 = vmatpush1.bf16.msra.mxu0 %v3830
        %3853 = vmatprep.subr.bf16.mxu0 0
        %3854 = vmatpush1.bf16.msra.mxu0 %v3831
        %3855 = vmatprep.subr.bf16.mxu0 0
        %3856 = vmatpush1.bf16.msra.mxu0 %v3832
        %3857 = vmatprep.subr.bf16.mxu0 0
        %3858 = vmatpush1.bf16.msra.mxu0 0
        %3859 = vmatprep.subr.bf16.mxu0 0
        %3860 = vmatpush1.bf16.msra.mxu0 0
        %3861 = vmatprep.subr.bf16.mxu0 0
        %3862 = vmatpush1.bf16.msra.mxu0 0
        %3863 = vmatprep.subr.bf16.mxu0 0
        %3864 = vmatpush1.bf16.msra.mxu0 0
        %3865 = vmatprep.subr.bf16.mxu0 0
        %3866 = vmatpush1.bf16.msra.mxu0 0
        %3867 = vmatprep.subr.bf16.mxu0 0
        %3868 = vmatpush1.bf16.msra.mxu0 0
        %3869 = vmatprep.subr.bf16.mxu0 0
        %3870 = vmatpush1.bf16.msra.mxu0 0
        %3871 = vmatprep.subr.bf16.mxu0 0
        %3872 = vmatpush1.bf16.msra.mxu0 0
        %3873 = vmatprep.mubr.bf16.mxu0 0
        %3874 = vmatmul.mubr.bf16.gmra.mrb[0].mxu0 %v3767
        %v3875 = vpop.f32.mrb[0].mxu0
        %v3876 = vadd.f32 %v3791, %v3875
        %v3877 = vpop.f32.mrb[0].mxu0
        %v3878 = vpop.f32.mrb[0].mxu0
        %v3879 = vadd.f32 %v3791, %v3878
        %v3880 = vpop.f32.mrb[0].mxu0
        %3881 = vdwg.mxu0
        %v3882 = vmax.f32 %v3876, 0.0
        %v3883 = vmax.f32 %v3879, 0.0
        %v3884 = vpack.c.bf16 %v3883, %v3882
        %s3885 = scalar_lea.vmem %s3, 128
        %v3886 = vld [vmem:[%s3885] sm:$0xf]
        %v3887 = vld [vmem:[%s3885 + $0x4] sm:$0xf]
        %v3888 = vld [vmem:[%s3885 + $0x8] sm:$0xf]
        %v3889 = vld [vmem:[%s3885 + $0xc] sm:$0xf]
        %v3890 = vld [vmem:[%s3885 + $0x10] sm:$0xf]
        %v3891 = vld [vmem:[%s3885 + $0x14] sm:$0xf]
        %v3892 = vld [vmem:[%s3885 + $0x18] sm:$0xf]
        %v3893 = vld [vmem:[%s3885 + $0x1c] sm:$0xf]
        %v3894 = vld [vmem:[%s3885 + $0x20] sm:$0xf]
        %v3895 = vld [vmem:[%s3885 + $0x24] sm:$0xf]
        %v3896 = vld [vmem:[%s3885 + $0x28] sm:$0xf]
        %v3897 = vld [vmem:[%s3885 + $0x2c] sm:$0xf]
        %v3898 = vld [vmem:[%s3885 + $0x30] sm:$0xf]
        %v3899 = vld [vmem:[%s3885 + $0x34] sm:$0xf]
        %v3900 = vld [vmem:[%s3885 + $0x38] sm:$0xf]
        %v3901 = vld [vmem:[%s3885 + $0x3c] sm:$0xf]
        %s3902 = scalar_lea.vmem %s4, 2
        %v3903 = vld [vmem:[%s3902] sm:$0x1]
        %v3905 = vlaneseq
        %v3906 = vshrl.u32 %v3905, 7
        %v3907 = vsub.s32 0, %v3906
        %v3908 = vrot.slane %v3903, %v3907
        %v3926 = vunpack.c.l.b16 %v3886
        %v3927 = vunpack.c.l.b16 %v3887
        %v3928 = vunpack.c.l.b16 %v3888
        %v3929 = vunpack.c.l.b16 %v3889
        %v3930 = vunpack.c.l.b16 %v3890
        %v3931 = vunpack.c.l.b16 %v3891
        %v3932 = vunpack.c.l.b16 %v3892
        %v3933 = vunpack.c.l.b16 %v3893
        %v3934 = vunpack.c.l.b16 %v3894
        %v3935 = vunpack.c.l.b16 %v3895
        %v3936 = vunpack.c.l.b16 %v3896
        %v3937 = vunpack.c.l.b16 %v3897
        %v3938 = vunpack.c.l.b16 %v3898
        %v3939 = vunpack.c.l.b16 %v3899
        %v3940 = vunpack.c.l.b16 %v3900
        %v3941 = vunpack.c.l.b16 %v3901
        %v3942 = vpack.c.b16 %v3927, %v3926
        %v3943 = vpack.c.b16 %v3929, %v3928
        %v3944 = vpack.c.b16 %v3931, %v3930
        %v3945 = vpack.c.b16 %v3933, %v3932
        %v3946 = vpack.c.b16 %v3935, %v3934
        %v3947 = vpack.c.b16 %v3937, %v3936
        %v3948 = vpack.c.b16 %v3939, %v3938
        %v3949 = vpack.c.b16 %v3941, %v3940
        %3958 = vmatprep.subr.bf16.mxu0 0
        %3959 = vmatpush1.bf16.msra.mxu0 %v3942
        %3960 = vmatprep.subr.bf16.mxu0 0
        %3961 = vmatpush1.bf16.msra.mxu0 %v3943
        %3962 = vmatprep.subr.bf16.mxu0 0
        %3963 = vmatpush1.bf16.msra.mxu0 %v3944
        %3964 = vmatprep.subr.bf16.mxu0 0
        %3965 = vmatpush1.bf16.msra.mxu0 %v3945
        %3966 = vmatprep.subr.bf16.mxu0 0
        %3967 = vmatpush1.bf16.msra.mxu0 %v3946
        %3968 = vmatprep.subr.bf16.mxu0 0
        %3969 = vmatpush1.bf16.msra.mxu0 %v3947
        %3970 = vmatprep.subr.bf16.mxu0 0
        %3971 = vmatpush1.bf16.msra.mxu0 %v3948
        %3972 = vmatprep.subr.bf16.mxu0 0
        %3973 = vmatpush1.bf16.msra.mxu0 %v3949
        %3974 = vmatprep.subr.bf16.mxu0 0
        %3975 = vmatpush1.bf16.msra.mxu0 0
        %3976 = vmatprep.subr.bf16.mxu0 0
        %3977 = vmatpush1.bf16.msra.mxu0 0
        %3978 = vmatprep.subr.bf16.mxu0 0
        %3979 = vmatpush1.bf16.msra.mxu0 0
        %3980 = vmatprep.subr.bf16.mxu0 0
        %3981 = vmatpush1.bf16.msra.mxu0 0
        %3982 = vmatprep.subr.bf16.mxu0 0
        %3983 = vmatpush1.bf16.msra.mxu0 0
        %3984 = vmatprep.subr.bf16.mxu0 0
        %3985 = vmatpush1.bf16.msra.mxu0 0
        %3986 = vmatprep.subr.bf16.mxu0 0
        %3987 = vmatpush1.bf16.msra.mxu0 0
        %3988 = vmatprep.subr.bf16.mxu0 0
        %3989 = vmatpush1.bf16.msra.mxu0 0
        %3990 = vmatprep.mubr.bf16.mxu0 0
        %3991 = vmatmul.mubr.bf16.gmra.mrb[0].mxu0 %v3884
        %v3992 = vpop.f32.mrb[0].mxu0
        %v3993 = vadd.f32 %v3908, %v3992
        %v3994 = vpop.f32.mrb[0].mxu0
        %v3995 = vpop.f32.mrb[0].mxu0
        %v3996 = vadd.f32 %v3908, %v3995
        %v3997 = vpop.f32.mrb[0].mxu0
        %3998 = vdwg.mxu0
        %v3999 = vmax.f32 %v3993, 0.0
        %v4000 = vmax.f32 %v3996, 0.0
        %v4001 = vpack.c.bf16 %v4000, %v3999
        %s4002 = scalar_lea.vmem %s3, 192
        %v4003 = vld [vmem:[%s4002] sm:$0xf]
        %v4004 = vld [vmem:[%s4002 + $0x4] sm:$0xf]
        %v4005 = vld [vmem:[%s4002 + $0x8] sm:$0xf]
        %v4006 = vld [vmem:[%s4002 + $0xc] sm:$0xf]
        %v4007 = vld [vmem:[%s4002 + $0x10] sm:$0xf]
        %v4008 = vld [vmem:[%s4002 + $0x14] sm:$0xf]
        %v4009 = vld [vmem:[%s4002 + $0x18] sm:$0xf]
        %v4010 = vld [vmem:[%s4002 + $0x1c] sm:$0xf]
        %v4011 = vld [vmem:[%s4002 + $0x20] sm:$0xf]
        %v4012 = vld [vmem:[%s4002 + $0x24] sm:$0xf]
        %v4013 = vld [vmem:[%s4002 + $0x28] sm:$0xf]
        %v4014 = vld [vmem:[%s4002 + $0x2c] sm:$0xf]
        %v4015 = vld [vmem:[%s4002 + $0x30] sm:$0xf]
        %v4016 = vld [vmem:[%s4002 + $0x34] sm:$0xf]
        %v4017 = vld [vmem:[%s4002 + $0x38] sm:$0xf]
        %v4018 = vld [vmem:[%s4002 + $0x3c] sm:$0xf]
        %s4019 = scalar_lea.vmem %s4, 3
        %v4020 = vld [vmem:[%s4019] sm:$0x1]
        %v4022 = vlaneseq
        %v4023 = vshrl.u32 %v4022, 7
        %v4024 = vsub.s32 0, %v4023
        %v4025 = vrot.slane %v4020, %v4024
        %v4043 = vunpack.c.l.b16 %v4003
        %v4044 = vunpack.c.l.b16 %v4004
        %v4045 = vunpack.c.l.b16 %v4005
        %v4046 = vunpack.c.l.b16 %v4006
        %v4047 = vunpack.c.l.b16 %v4007
        %v4048 = vunpack.c.l.b16 %v4008
        %v4049 = vunpack.c.l.b16 %v4009
        %v4050 = vunpack.c.l.b16 %v4010
        %v4051 = vunpack.c.l.b16 %v4011
        %v4052 = vunpack.c.l.b16 %v4012
        %v4053 = vunpack.c.l.b16 %v4013
        %v4054 = vunpack.c.l.b16 %v4014
        %v4055 = vunpack.c.l.b16 %v4015
        %v4056 = vunpack.c.l.b16 %v4016
        %v4057 = vunpack.c.l.b16 %v4017
        %v4058 = vunpack.c.l.b16 %v4018
        %v4059 = vpack.c.b16 %v4044, %v4043
        %v4060 = vpack.c.b16 %v4046, %v4045
        %v4061 = vpack.c.b16 %v4048, %v4047
        %v4062 = vpack.c.b16 %v4050, %v4049
        %v4063 = vpack.c.b16 %v4052, %v4051
        %v4064 = vpack.c.b16 %v4054, %v4053
        %v4065 = vpack.c.b16 %v4056, %v4055
        %v4066 = vpack.c.b16 %v4058, %v4057
        %4075 = vmatprep.subr.bf16.mxu0 0
        %4076 = vmatpush1.bf16.msra.mxu0 %v4059
        %4077 = vmatprep.subr.bf16.mxu0 0
        %4078 = vmatpush1.bf16.msra.mxu0 %v4060
        %4079 = vmatprep.subr.bf16.mxu0 0
        %4080 = vmatpush1.bf16.msra.mxu0 %v4061
        %4081 = vmatprep.subr.bf16.mxu0 0
        %4082 = vmatpush1.bf16.msra.mxu0 %v4062
        %4083 = vmatprep.subr.bf16.mxu0 0
        %4084 = vmatpush1.bf16.msra.mxu0 %v4063
        %4085 = vmatprep.subr.bf16.mxu0 0
        %4086 = vmatpush1.bf16.msra.mxu0 %v4064
        %4087 = vmatprep.subr.bf16.mxu0 0
        %4088 = vmatpush1.bf16.msra.mxu0 %v4065
        %4089 = vmatprep.subr.bf16.mxu0 0
        %4090 = vmatpush1.bf16.msra.mxu0 %v4066
        %4091 = vmatprep.subr.bf16.mxu0 0
        %4092 = vmatpush1.bf16.msra.mxu0 0
        %4093 = vmatprep.subr.bf16.mxu0 0
        %4094 = vmatpush1.bf16.msra.mxu0 0
        %4095 = vmatprep.subr.bf16.mxu0 0
        %4096 = vmatpush1.bf16.msra.mxu0 0
        %4097 = vmatprep.subr.bf16.mxu0 0
        %4098 = vmatpush1.bf16.msra.mxu0 0
        %4099 = vmatprep.subr.bf16.mxu0 0
        %4100 = vmatpush1.bf16.msra.mxu0 0
        %4101 = vmatprep.subr.bf16.mxu0 0
        %4102 = vmatpush1.bf16.msra.mxu0 0
        %4103 = vmatprep.subr.bf16.mxu0 0
        %4104 = vmatpush1.bf16.msra.mxu0 0
        %4105 = vmatprep.subr.bf16.mxu0 0
        %4106 = vmatpush1.bf16.msra.mxu0 0
        %4107 = vmatprep.mubr.bf16.mxu0 0
        %4108 = vmatmul.mubr.bf16.gmra.mrb[0].mxu0 %v4001
        %v4109 = vpop.f32.mrb[0].mxu0
        %v4110 = vadd.f32 %v4025, %v4109
        %v4111 = vpop.f32.mrb[0].mxu0
        %v4112 = vpop.f32.mrb[0].mxu0
        %v4113 = vadd.f32 %v4025, %v4112
        %v4114 = vpop.f32.mrb[0].mxu0
        %4115 = vdwg.mxu0
        %4116 = vst [vmem:[%s516] sm:$0xff] %v3761
        %4117 = vst [vmem:[%s516 + $0x8] sm:$0xff] %v4110
        %4118 = vst [vmem:[%s516 + $0x10] sm:$0xff] %v3764
        %4119 = vst [vmem:[%s516 + $0x18] sm:$0xff] %v4113
        %s4120 = sand.u32 %s137, 1
        %s4121 = scalar_lea.sflag [#allocation4], %s4120
        %s4122 = sand.u32 %s137, 1
        %s4123 = smul.addr %s4122, 32
        %s4124 = scalar_lea.vmem [#allocation3], %s4123
        // Predicated region
        $region82: #{tpu_custom_call.1} parent=76 // pred_check
          %p4125 = pneg %p147
        $region83: #{tpu_custom_call.1} parent=76 // pred_check_branch
          %4127 = sbr.rel (%p4125) target = $region85
        $region84: #{tpu_custom_call.1} parent=76 // pred_region
          %s4128 = smul.u32 2, %s19
          %s4130 = ssub.s32 512, 512
          %4131 = vsyncadd %s4121, %s4130
          %s4132 = smul.addr %s4128, 2
          %s4133 = smul.addr %s4132, 128
          %s4134 = scalar_lea.hbm %s5, %s4133
          %s4135 = sshll.u32 %s4124, 4
          %s4136 = int_to_ptr.vmem [resolvable:$true] %s4135
          %4141 = dma.vmem_to_hbm [thread:$0]  %s4136, 512, %s4134, %s4121, 256, 256, 16
        $region85: #{tpu_custom_call.1} parent=76 // pred_fallthru
          _
      $region77: #{tpu_custom_call.1} parent=5 // pred_fallthru
        _
      %p4142 = scmp.le.s32.totalorder 2, %s14
      // Predicated region
      $region86: #{tpu_custom_call.1} parent=5 // pred_check
        %p4143 = pneg %p4142
      $region87: #{tpu_custom_call.1} parent=5 // pred_check_branch
        %4145 = sbr.rel (%p4143) target = $region89
      $region88: #{tpu_custom_call.1} parent=5 // pred_region
        %s4146 = ssub.s32 %s14, 2
        // Predicated region
        $region90: #{tpu_custom_call.1} parent=88 // pred_check
          %p4147 = pneg %p153
        $region91: #{tpu_custom_call.1} parent=88 // pred_check_branch
          %4149 = sbr.rel (%p4147) target = $region93
        $region92: #{tpu_custom_call.1} parent=88 // pred_region
          %s4150 = sand.u32 %s138, 1
          %s4151 = scalar_lea.sflag [#allocation4], %s4150
          %s4152 = sand.u32 %s138, 1
          %s4153 = smul.addr %s4152, 32
          %s4154 = scalar_lea.vmem [#allocation3], %s4153
          %4155 = dma.done %s4151, 512
        $region93: #{tpu_custom_call.1} parent=88 // pred_fallthru
          _
      $region89: #{tpu_custom_call.1} parent=5 // pred_fallthru
        _
    $region6: #{tpu_custom_call.1} parent=1 // loop_footer
      %s18 = sadd.s32 1, %s14
    $region7: #{tpu_custom_call.1} parent=1 // loop_footer_branch
      %13 = sbr.rel target = $region3
    $region8: #{tpu_custom_call.1} parent=1 // loop_exit
      _
    %4156 = vsyncpa [#allocation4], 1
    %s4157 = scalar_lea.sflag [#allocation4], 1
    %4158 = vsyncpa %s4157, 1

</llo_original>
